<compile_context>
chip_gen: v7x
topology: tpu7x:2x2x1
jax: 0.10.0
libtpu: 0.0.40
codegen_flags: <defaults>
</compile_context>

<pallas_src>
import jax
import jax.numpy as jnp
from jax.experimental import pallas as pl
from jax.experimental.pallas import tpu as pltpu

NUM_CLASSES = 18
PADDED_CLASSES = 128      # lane-aligned fc2 width inside the kernel (minimum pad)
HIDDEN = 2048
NEG_INF = -1e30           # baked into padded b2 lanes; exp() underflows to exactly 0


def _round_up(x, m):
    return ((x + m - 1) // m) * m


def domain_classifier_kernel(x_ref, w1_ref, b1_ref, w2_ref, b2_ref, o_ref):
    # x arrives f32; cast to bf16 on the VPU (free slot) right before the MXU.
    x = x_ref[...].astype(jnp.bfloat16)

    # fc1: bf16 operands, f32 accumulation; bias + ReLU in f32.
    h = jnp.dot(x, w1_ref[...], preferred_element_type=jnp.float32)
    h = jnp.maximum(h + b1_ref[...], 0.0)

    # fc2: bf16 operands, f32 accumulation. Padded lanes pick up the -1e30 baked
    # bias (their w2 columns are zero), so they vanish from the max / exp-sum below.
    logits = jnp.dot(h.astype(jnp.bfloat16), w2_ref[...],
                     preferred_element_type=jnp.float32)
    logits = logits + b2_ref[...]

    # Log-softmax over the valid classes (no explicit mask needed).
    m = jnp.max(logits, axis=-1, keepdims=True)
    lse = jnp.log(jnp.sum(jnp.exp(logits - m), axis=-1, keepdims=True)) + m

    # Store only the real classes: 18 f32 lanes/row instead of 128.
    o_ref[...] = logits[:, :NUM_CLASSES] - lse


def prepare_params(w1, b1, w2, b2):
    """One-time parameter prep (outside the hot path): bf16 cast + lane pad."""
    w1_bf = w1.astype(jnp.bfloat16)                                   # (D, 2048)
    b1_2d = b1.astype(jnp.float32).reshape(1, HIDDEN)                 # (1, 2048)
    w2_p = jnp.zeros((HIDDEN, PADDED_CLASSES), jnp.bfloat16)
    w2_p = w2_p.at[:, :NUM_CLASSES].set(w2.astype(jnp.bfloat16))      # (2048, 128)
    # Padded lanes carry -1e30 so the in-kernel log-softmax needs no iota mask.
    b2_p = jnp.full((1, PADDED_CLASSES), NEG_INF, jnp.float32)
    b2_p = b2_p.at[0, :NUM_CLASSES].set(b2.astype(jnp.float32))       # (1, 128)
    return w1_bf, b1_2d, w2_p, b2_p


def _pick_tiling(B):
    """Adaptive batch tile: big tiles, even #steps (v7x megacore), small padding."""
    if B <= 16:
        return B, 1                       # single un-padded tile (block == array dim)
    steps = max(2, pl.cdiv(B, 512))       # <= 512 rows per tile
    steps += steps % 2                    # even step count -> both v7x TCs get work
    tb = _round_up(pl.cdiv(B, steps), 16)
    steps = pl.cdiv(B, tb)
    return tb, steps


def _build_call(TB, steps, B_pad, D, vmem_limit, cost, single_buffer_weights):
    if single_buffer_weights:
        def resident(shape):
            # Constant index_map -> no pipelining needed; ask for a single buffer.
            return pl.BlockSpec(shape, lambda i: (0, 0),
                                pipeline_mode=pl.Buffered(1))
    else:
        def resident(shape):
            return pl.BlockSpec(shape, lambda i: (0, 0))

    return pl.pallas_call(
        domain_classifier_kernel,
        out_shape=jax.ShapeDtypeStruct((B_pad, NUM_CLASSES), jnp.float32),
        grid_spec=pltpu.PrefetchScalarGridSpec(
            num_scalar_prefetch=0,
            grid=(steps,),
            in_specs=[
                pl.BlockSpec((TB, D), lambda i: (i, 0)),      # x tile (f32)
                resident((D, HIDDEN)),                        # w1 (VMEM-resident)
                resident((1, HIDDEN)),                        # b1
                resident((HIDDEN, PADDED_CLASSES)),           # w2
                resident((1, PADDED_CLASSES)),                # b2 (mask baked in)
            ],
            out_specs=pl.BlockSpec((TB, NUM_CLASSES), lambda i: (i, 0)),
        ),
        compiler_params=pltpu.CompilerParams(
            dimension_semantics=("parallel",),
            vmem_limit_bytes=vmem_limit,
        ),
        cost_estimate=cost,
    )


def domain_classifier(x, w1_bf, b1_2d, w2_p, b2_p):
    """x: (B, D) f32. Returns (B, NUM_CLASSES) f32 log-probabilities."""
    B, D = x.shape
    TB, steps = _pick_tiling(B)
    B_pad = TB * steps
    if B_pad != B:
        x = jnp.pad(x, ((0, B_pad - B), (0, 0)))

    # VMEM budget: worst-case double-buffered weights + pipelined x/out tiles +
    # f32 activations; capped hardware-aware (v7x: 64 MiB physical per TC).
    weight_bytes = (w1_bf.size * 2 + w2_p.size * 2
                    + b1_2d.size * 4 + b2_p.size * 4)
    vmem_est = (2 * weight_bytes                       # weights (double-buffered worst case)
                + 2 * TB * D * 4                       # x tiles (f32, double-buffered)
                + 2 * TB * PADDED_CLASSES * 4          # out tiles (lane-padded in VMEM)
                + TB * HIDDEN * 4                      # f32 hidden activations
                + TB * PADDED_CLASSES * 4              # f32 logits
                + (8 << 20))                           # headroom
    try:
        vmem_phys = pltpu.get_tpu_info().vmem_capacity_bytes
    except Exception:
        vmem_phys = 64 << 20                           # conservative (v7x per-TC)
    vmem_limit = int(min(vmem_est, int(0.85 * vmem_phys)))

    cost = pl.CostEstimate(
        flops=2 * B_pad * D * HIDDEN + 2 * B_pad * HIDDEN * PADDED_CLASSES,
        transcendentals=B_pad * PADDED_CLASSES,
        bytes_accessed=weight_bytes + B_pad * D * 4 + B_pad * NUM_CLASSES * 4,
    )

    args = (x, w1_bf, b1_2d, w2_p, b2_p)
    try:
        out = _build_call(TB, steps, B_pad, D, vmem_limit, cost, True)(*args)
    except Exception:
        # Older JAX/Mosaic may reject single-buffered (Buffered(1)) operands;
        # fall back to the default double-buffered resident weights.
        out = _build_call(TB, steps, B_pad, D, vmem_limit, cost, False)(*args)

    # TODO(synk): for per-request serving (B~1-2), hide the one-shot weight HBM fetch
    # behind the previous layer via a cross-call prefetch (P10: semaphore + VMEM-ref outs).
    return out if B_pad == B else out[:B]


def reference(x, w1, b1, w2, b2):
    """bf16-matmul / f32-accumulate reference matching the kernel's numerics."""
    h = jnp.dot(x.astype(jnp.bfloat16), w1.astype(jnp.bfloat16),
                preferred_element_type=jnp.float32) + b1
    h = jnp.maximum(h, 0.0)
    logits = jnp.dot(h.astype(jnp.bfloat16), w2.astype(jnp.bfloat16),
                     preferred_element_type=jnp.float32) + b2
    return jax.nn.log_softmax(logits, axis=-1)


if __name__ == "__main__":
    key = jax.random.PRNGKey(0)
    k_x, k_w1, k_b1, k_w2, k_b2 = jax.random.split(key, 5)

    batch = 2
    embedding_dim = 32

    # Deterministic synthetic parameters (nn.Linear-style uniform init scale).
    bound1 = 1.0 / jnp.sqrt(jnp.float32(embedding_dim))
    bound2 = 1.0 / jnp.sqrt(jnp.float32(HIDDEN))
    x = jax.random.normal(k_x, (batch, embedding_dim), jnp.float32)
    w1 = jax.random.uniform(k_w1, (embedding_dim, HIDDEN), jnp.float32, -bound1, bound1)
    b1 = jax.random.uniform(k_b1, (HIDDEN,), jnp.float32, -bound1, bound1)
    w2 = jax.random.uniform(k_w2, (HIDDEN, NUM_CLASSES), jnp.float32, -bound2, bound2)
    b2 = jax.random.uniform(k_b2, (NUM_CLASSES,), jnp.float32, -bound2, bound2)

    params = prepare_params(w1, b1, w2, b2)   # one-time (outside the hot path)

    out = domain_classifier(x, *params)
    jax.block_until_ready(out)

    ref = reference(x, w1, b1, w2, b2)
    assert out.shape == (batch, NUM_CLASSES)
    err = float(jnp.max(jnp.abs(out - ref)))
    assert jnp.allclose(out, ref, atol=1e-4, rtol=1e-4), err

    print("KERNEL_OK")
</pallas_src>

<mosaic_0001>
module attributes {stable_mosaic.version = 11 : i64} {
  func.func @domain_classifier_kernel(%arg0: i32, %arg1: memref<2x32xf32, #tpu.memory_space<vmem>>, %arg2: memref<32x2048xbf16, #tpu.memory_space<vmem>>, %arg3: memref<1x2048xf32, #tpu.memory_space<vmem>>, %arg4: memref<2048x128xbf16, #tpu.memory_space<vmem>>, %arg5: memref<1x128xf32, #tpu.memory_space<vmem>>, %arg6: memref<2x18xf32, #tpu.memory_space<vmem>>) attributes {dimension_semantics = [#tpu.dimension_semantics<parallel>], iteration_bounds = array<i64: 1>, scalar_prefetch = 0 : i64, scratch_operands = 0 : i64, tpu.core_type = #tpu.core_type<tc>, window_params = [{transform_indices = @transform_0, window_bounds = array<i64: 2, 32>}, {pipeline_mode = #tpu.pipeline_mode<synchronous>, transform_indices = @transform_1, window_bounds = array<i64: 32, 2048>}, {pipeline_mode = #tpu.pipeline_mode<synchronous>, transform_indices = @transform_2, window_bounds = array<i64: 1, 2048>}, {pipeline_mode = #tpu.pipeline_mode<synchronous>, transform_indices = @transform_3, window_bounds = array<i64: 2048, 128>}, {pipeline_mode = #tpu.pipeline_mode<synchronous>, transform_indices = @transform_4, window_bounds = array<i64: 1, 128>}, {transform_indices = @transform_5, window_bounds = array<i64: 2, 18>}]} {
    %c0 = arith.constant 0 : index
    %c0_0 = arith.constant 0 : index
    %0 = vector.load %arg1[%c0, %c0_0] : memref<2x32xf32, #tpu.memory_space<vmem>>, vector<2x32xf32>
    %1 = arith.truncf %0 : vector<2x32xf32> to vector<2x32xbf16>
    %c0_1 = arith.constant 0 : index
    %c0_2 = arith.constant 0 : index
    %2 = vector.load %arg2[%c0_1, %c0_2] : memref<32x2048xbf16, #tpu.memory_space<vmem>>, vector<32x2048xbf16>
    %cst = arith.constant dense<0.000000e+00> : vector<2x2048xf32>
    %3 = tpu.matmul %1, %2, %cst {dimension_numbers = #tpu.dot_dimension_numbers<[1], [0], [0], [1], [0, 0, 1, 1], [], []>} : vector<2x32xbf16>, vector<32x2048xbf16>, vector<2x2048xf32> -> vector<2x2048xf32>
    %c0_3 = arith.constant 0 : index
    %c0_4 = arith.constant 0 : index
    %4 = vector.load %arg3[%c0_3, %c0_4] : memref<1x2048xf32, #tpu.memory_space<vmem>>, vector<1x2048xf32>
    %5 = vector.broadcast %4 : vector<1x2048xf32> to vector<2x2048xf32>
    %6 = arith.addf %3, %5 : vector<2x2048xf32>
    %cst_5 = arith.constant 0.000000e+00 : f32
    %7 = vector.broadcast %cst_5 : f32 to vector<2x2048xf32>
    %8 = arith.maximumf %6, %7 : vector<2x2048xf32>
    %9 = arith.truncf %8 : vector<2x2048xf32> to vector<2x2048xbf16>
    %c0_6 = arith.constant 0 : index
    %c0_7 = arith.constant 0 : index
    %10 = vector.load %arg4[%c0_6, %c0_7] : memref<2048x128xbf16, #tpu.memory_space<vmem>>, vector<2048x128xbf16>
    %cst_8 = arith.constant dense<0.000000e+00> : vector<2x128xf32>
    %11 = tpu.matmul %9, %10, %cst_8 {dimension_numbers = #tpu.dot_dimension_numbers<[1], [0], [0], [1], [0, 0, 1, 1], [], []>} : vector<2x2048xbf16>, vector<2048x128xbf16>, vector<2x128xf32> -> vector<2x128xf32>
    %c0_9 = arith.constant 0 : index
    %c0_10 = arith.constant 0 : index
    %12 = vector.load %arg5[%c0_9, %c0_10] : memref<1x128xf32, #tpu.memory_space<vmem>>, vector<1x128xf32>
    %13 = vector.broadcast %12 : vector<1x128xf32> to vector<2x128xf32>
    %14 = arith.addf %11, %13 : vector<2x128xf32>
    %cst_11 = arith.constant dense<0xFF800000> : vector<2xf32>
    %15 = vector.multi_reduction <maximumf>, %14, %cst_11 [1] : vector<2x128xf32> to vector<2xf32>
    %16 = vector.shape_cast %15 : vector<2xf32> to vector<2x1xf32>
    %17 = vector.broadcast %16 : vector<2x1xf32> to vector<2x128xf32>
    %18 = arith.subf %14, %17 : vector<2x128xf32>
    %19 = math.exp %18 : vector<2x128xf32>
    %cst_12 = arith.constant dense<0.000000e+00> : vector<2xf32>
    %20 = vector.multi_reduction <add>, %19, %cst_12 [1] : vector<2x128xf32> to vector<2xf32>
    %21 = vector.shape_cast %20 : vector<2xf32> to vector<2x1xf32>
    %22 = math.log %21 : vector<2x1xf32>
    %23 = arith.addf %22, %16 : vector<2x1xf32>
    %24 = vector.extract_strided_slice %14 {offsets = [0, 0], sizes = [2, 18], strides = [1, 1]} : vector<2x128xf32> to vector<2x18xf32>
    %25 = vector.broadcast %23 : vector<2x1xf32> to vector<2x18xf32>
    %26 = arith.subf %24, %25 : vector<2x18xf32>
    %c0_13 = arith.constant 0 : index
    %c0_14 = arith.constant 0 : index
    %27 = vector.load %arg6[%c0_13, %c0_14] : memref<2x18xf32, #tpu.memory_space<vmem>>, vector<2x18xf32>
    tpu.vector_store %arg6[%c0_13, %c0_14], %26 {strides = array<i32>} : memref<2x18xf32, #tpu.memory_space<vmem>>, vector<2x18xf32>,
    return
  }
  func.func @transform_0(%arg0: i32) -> (i32, i32) {
    %c0_i32 = arith.constant 0 : i32
    %c0_i32_0 = arith.constant 0 : i32
    return %arg0, %c0_i32 : i32, i32
  }
  func.func @transform_1(%arg0: i32) -> (i32, i32) {
    %c0_i32 = arith.constant 0 : i32
    %c0_i32_0 = arith.constant 0 : i32
    %c0_i32_1 = arith.constant 0 : i32
    return %c0_i32, %c0_i32_0 : i32, i32
  }
  func.func @transform_2(%arg0: i32) -> (i32, i32) {
    %c0_i32 = arith.constant 0 : i32
    %c0_i32_0 = arith.constant 0 : i32
    %c0_i32_1 = arith.constant 0 : i32
    return %c0_i32, %c0_i32_0 : i32, i32
  }
  func.func @transform_3(%arg0: i32) -> (i32, i32) {
    %c0_i32 = arith.constant 0 : i32
    %c0_i32_0 = arith.constant 0 : i32
    %c0_i32_1 = arith.constant 0 : i32
    return %c0_i32, %c0_i32_0 : i32, i32
  }
  func.func @transform_4(%arg0: i32) -> (i32, i32) {
    %c0_i32 = arith.constant 0 : i32
    %c0_i32_0 = arith.constant 0 : i32
    %c0_i32_1 = arith.constant 0 : i32
    return %c0_i32, %c0_i32_0 : i32, i32
  }
  func.func @transform_5(%arg0: i32) -> (i32, i32) {
    %c0_i32 = arith.constant 0 : i32
    %c0_i32_0 = arith.constant 0 : i32
    return %arg0, %c0_i32 : i32, i32
  }
}

module attributes {stable_mosaic.version = 11 : i64} {
  func.func @domain_classifier_kernel(%arg0: i32, %arg1: memref<2x32xf32, #tpu.memory_space<vmem>>, %arg2: memref<32x2048xbf16, #tpu.memory_space<vmem>>, %arg3: memref<1x2048xf32, #tpu.memory_space<vmem>>, %arg4: memref<2048x128xbf16, #tpu.memory_space<vmem>>, %arg5: memref<1x128xf32, #tpu.memory_space<vmem>>, %arg6: memref<2x18xf32, #tpu.memory_space<vmem>>) attributes {dimension_semantics = [#tpu.dimension_semantics<parallel>], iteration_bounds = array<i64: 1>, scalar_prefetch = 0 : i64, scratch_operands = 0 : i64, tpu.core_type = #tpu.core_type<tc>, window_params = [{transform_indices = @transform_0, window_bounds = array<i64: 2, 32>}, {pipeline_mode = #tpu.pipeline_mode<synchronous>, transform_indices = @transform_1, window_bounds = array<i64: 32, 2048>}, {pipeline_mode = #tpu.pipeline_mode<synchronous>, transform_indices = @transform_2, window_bounds = array<i64: 1, 2048>}, {pipeline_mode = #tpu.pipeline_mode<synchronous>, transform_indices = @transform_3, window_bounds = array<i64: 2048, 128>}, {pipeline_mode = #tpu.pipeline_mode<synchronous>, transform_indices = @transform_4, window_bounds = array<i64: 1, 128>}, {transform_indices = @transform_5, window_bounds = array<i64: 2, 18>}]} {
    %c0 = arith.constant 0 : index
    %c0_0 = arith.constant 0 : index
    %0 = vector.load %arg1[%c0, %c0_0] : memref<2x32xf32, #tpu.memory_space<vmem>>, vector<2x32xf32>
    %1 = arith.truncf %0 : vector<2x32xf32> to vector<2x32xbf16>
    %c0_1 = arith.constant 0 : index
    %c0_2 = arith.constant 0 : index
    %2 = vector.load %arg2[%c0_1, %c0_2] : memref<32x2048xbf16, #tpu.memory_space<vmem>>, vector<32x2048xbf16>
    %cst = arith.constant dense<0.000000e+00> : vector<2x2048xf32>
    %3 = tpu.matmul %1, %2, %cst {dimension_numbers = #tpu.dot_dimension_numbers<[1], [0], [0], [1], [0, 0, 1, 1], [], []>} : vector<2x32xbf16>, vector<32x2048xbf16>, vector<2x2048xf32> -> vector<2x2048xf32>
    %c0_3 = arith.constant 0 : index
    %c0_4 = arith.constant 0 : index
    %4 = vector.load %arg3[%c0_3, %c0_4] : memref<1x2048xf32, #tpu.memory_space<vmem>>, vector<1x2048xf32>
    %5 = vector.broadcast %4 : vector<1x2048xf32> to vector<2x2048xf32>
    %6 = arith.addf %3, %5 : vector<2x2048xf32>
    %cst_5 = arith.constant 0.000000e+00 : f32
    %7 = vector.broadcast %cst_5 : f32 to vector<2x2048xf32>
    %8 = arith.maximumf %6, %7 : vector<2x2048xf32>
    %9 = arith.truncf %8 : vector<2x2048xf32> to vector<2x2048xbf16>
    %c0_6 = arith.constant 0 : index
    %c0_7 = arith.constant 0 : index
    %10 = vector.load %arg4[%c0_6, %c0_7] : memref<2048x128xbf16, #tpu.memory_space<vmem>>, vector<2048x128xbf16>
    %cst_8 = arith.constant dense<0.000000e+00> : vector<2x128xf32>
    %11 = tpu.matmul %9, %10, %cst_8 {dimension_numbers = #tpu.dot_dimension_numbers<[1], [0], [0], [1], [0, 0, 1, 1], [], []>} : vector<2x2048xbf16>, vector<2048x128xbf16>, vector<2x128xf32> -> vector<2x128xf32>
    %c0_9 = arith.constant 0 : index
    %c0_10 = arith.constant 0 : index
    %12 = vector.load %arg5[%c0_9, %c0_10] : memref<1x128xf32, #tpu.memory_space<vmem>>, vector<1x128xf32>
    %13 = vector.broadcast %12 : vector<1x128xf32> to vector<2x128xf32>
    %14 = arith.addf %11, %13 : vector<2x128xf32>
    %cst_11 = arith.constant dense<0xFF800000> : vector<2xf32>
    %15 = vector.multi_reduction <maximumf>, %14, %cst_11 [1] : vector<2x128xf32> to vector<2xf32>
    %16 = vector.shape_cast %15 : vector<2xf32> to vector<2x1xf32>
    %17 = vector.broadcast %16 : vector<2x1xf32> to vector<2x128xf32>
    %18 = arith.subf %14, %17 : vector<2x128xf32>
    %19 = math.exp %18 : vector<2x128xf32>
    %cst_12 = arith.constant dense<0.000000e+00> : vector<2xf32>
    %20 = vector.multi_reduction <add>, %19, %cst_12 [1] : vector<2x128xf32> to vector<2xf32>
    %21 = vector.shape_cast %20 : vector<2xf32> to vector<2x1xf32>
    %22 = math.log %21 : vector<2x1xf32>
    %23 = arith.addf %22, %16 : vector<2x1xf32>
    %24 = vector.extract_strided_slice %14 {offsets = [0, 0], sizes = [2, 18], strides = [1, 1]} : vector<2x128xf32> to vector<2x18xf32>
    %25 = vector.broadcast %23 : vector<2x1xf32> to vector<2x18xf32>
    %26 = arith.subf %24, %25 : vector<2x18xf32>
    %c0_13 = arith.constant 0 : index
    %c0_14 = arith.constant 0 : index
    %27 = vector.load %arg6[%c0_13, %c0_14] : memref<2x18xf32, #tpu.memory_space<vmem>>, vector<2x18xf32>
    tpu.vector_store %arg6[%c0_13, %c0_14], %26 {strides = array<i32>} : memref<2x18xf32, #tpu.memory_space<vmem>>, vector<2x18xf32>,
    return
  }
  func.func @transform_0(%arg0: i32) -> (i32, i32) {
    %c0_i32 = arith.constant 0 : i32
    %c0_i32_0 = arith.constant 0 : i32
    return %arg0, %c0_i32 : i32, i32
  }
  func.func @transform_1(%arg0: i32) -> (i32, i32) {
    %c0_i32 = arith.constant 0 : i32
    %c0_i32_0 = arith.constant 0 : i32
    %c0_i32_1 = arith.constant 0 : i32
    return %c0_i32, %c0_i32_0 : i32, i32
  }
  func.func @transform_2(%arg0: i32) -> (i32, i32) {
    %c0_i32 = arith.constant 0 : i32
    %c0_i32_0 = arith.constant 0 : i32
    %c0_i32_1 = arith.constant 0 : i32
    return %c0_i32, %c0_i32_0 : i32, i32
  }
  func.func @transform_3(%arg0: i32) -> (i32, i32) {
    %c0_i32 = arith.constant 0 : i32
    %c0_i32_0 = arith.constant 0 : i32
    %c0_i32_1 = arith.constant 0 : i32
    return %c0_i32, %c0_i32_0 : i32, i32
  }
  func.func @transform_4(%arg0: i32) -> (i32, i32) {
    %c0_i32 = arith.constant 0 : i32
    %c0_i32_0 = arith.constant 0 : i32
    %c0_i32_1 = arith.constant 0 : i32
    return %c0_i32, %c0_i32_0 : i32, i32
  }
  func.func @transform_5(%arg0: i32) -> (i32, i32) {
    %c0_i32 = arith.constant 0 : i32
    %c0_i32_0 = arith.constant 0 : i32
    return %arg0, %c0_i32 : i32, i32
  }
}

</mosaic_0001>

<llo_original>
// kernel: tpu_custom_call.1
$region0: #{tpu_custom_call.1}
  #allocation0 [shape = 'u32[]', space=smem, size = 0x4, offset = 0x4, fixed_abs, tag = 'smem constant byte address 0x4 - core index']
  #allocation1 [shape = 'u32[144,128]{1,0:T(1,128)}', space=vmem, size = 0x12000, scoped, tag = 'internal scratch']
  %s0 = inlined_call_operand.hbm [shape: f32[2,32], index: 0, kind: input, shape index: {}]
  %s1 = inlined_call_operand.hbm [shape: bf16[32,2048], index: 1, kind: input, shape index: {}]
  %s2 = inlined_call_operand.hbm [shape: f32[1,2048], index: 2, kind: input, shape index: {}]
  %s3 = inlined_call_operand.hbm [shape: bf16[2048,128], index: 3, kind: input, shape index: {}]
  %s4 = inlined_call_operand.vmem [shape: f32[1,128], index: 4, kind: input, shape index: {}]
  %s5 = inlined_call_operand.hbm [shape: f32[2,18], index: 5, kind: output, shape index: {}]
  %s6 = sld [smem:[#allocation0]]
  $region46: #{tpu_custom_call.1} parent=0
    _
  %s8 = ssub.s32 1, %s6
  %s9 = scalar_select 0, %s8, %s6
  $region1: #{tpu_custom_call.1} parent=0
    #allocation2 [shape = 'u8[1024]{0}', space=vmem, size = 0x400, scoped, tag = 'input window, operand 0, single buffered']
    #allocation3 [shape = 's32[1]{0}', space=sflag, size = 0x4, scoped, tag = 'scoped memory for tpu_custom_call.1']
    #allocation4 [shape = 's32[1]{0}', space=sflag, size = 0x4, scoped, tag = 'scoped memory for tpu_custom_call.1']
    #allocation5 [shape = 'u8[131072]{0}', space=vmem, size = 0x20000, scoped, tag = 'input window, operand 1, single buffered']
    #allocation6 [shape = 's32[1]{0}', space=sflag, size = 0x4, scoped, tag = 'scoped memory for tpu_custom_call.1']
    #allocation7 [shape = 'u8[8192]{0}', space=vmem, size = 0x2000, scoped, tag = 'input window, operand 2, single buffered']
    #allocation8 [shape = 'u8[524288]{0}', space=vmem, size = 0x80000, scoped, tag = 'input window, operand 3, single buffered']
    #allocation9 [shape = 's32[1]{0}', space=sflag, size = 0x4, scoped, tag = 'scoped memory for tpu_custom_call.1']
    #allocation10 [shape = 'u8[1024]{0}', space=vmem, size = 0x400, scoped, tag = 'output window, operand 0, single buffered']
    %10 = vsyncpa [#allocation3], 0
    %11 = vsyncpa [#allocation6], 0
    %12 = vsyncpa [#allocation9], 0
    %13 = vsyncpa [#allocation4], 0
    // Predicated region
    $region2: #{tpu_custom_call.1} parent=1 // pred_check
      _
    $region3: #{tpu_custom_call.1} parent=1 // pred_check_branch
      %15 = sbr.rel (0) target = $region5
    $region4: #{tpu_custom_call.1} parent=1 // pred_region
      %s17 = ssub.s32 32, 32
      %18 = vsyncadd [#allocation3], %s17
      %s20 = sshll.u32 [#allocation2], 4
      %s21 = int_to_ptr.vmem [resolvable:$true] %s20
      %23 = dma.hbm_to_vmem [thread:$0]  %s0, 32, %s21, [#allocation3]
    $region5: #{tpu_custom_call.1} parent=1 // pred_fallthru
      _
    // Predicated region
    $region6: #{tpu_custom_call.1} parent=1 // pred_check
      _
    $region7: #{tpu_custom_call.1} parent=1 // pred_check_branch
      %25 = sbr.rel (0) target = $region9
    $region8: #{tpu_custom_call.1} parent=1 // pred_region
      %s27 = ssub.s32 4096, 4096
      %28 = vsyncadd [#allocation6], %s27
      %s29 = sshll.u32 [#allocation5], 4
      %s30 = int_to_ptr.vmem [resolvable:$true] %s29
      %35 = dma.hbm_to_vmem [thread:$0]  %s1, 4096, %s30, [#allocation6], 1024, 1024, 64
    $region9: #{tpu_custom_call.1} parent=1 // pred_fallthru
      _
    // Predicated region
    $region10: #{tpu_custom_call.1} parent=1 // pred_check
      _
    $region11: #{tpu_custom_call.1} parent=1 // pred_check_branch
      %37 = sbr.rel (0) target = $region13
    $region12: #{tpu_custom_call.1} parent=1 // pred_region
      %s39 = ssub.s32 256, 256
      %40 = vsyncadd [#allocation6], %s39
      %s42 = sshll.u32 [#allocation7], 4
      %s43 = int_to_ptr.vmem [resolvable:$true] %s42
      %45 = dma.hbm_to_vmem [thread:$0]  %s2, 256, %s43, [#allocation6]
    $region13: #{tpu_custom_call.1} parent=1 // pred_fallthru
      _
    // Predicated region
    $region14: #{tpu_custom_call.1} parent=1 // pred_check
      _
    $region15: #{tpu_custom_call.1} parent=1 // pred_check_branch
      %47 = sbr.rel (0) target = $region17
    $region16: #{tpu_custom_call.1} parent=1 // pred_region
      %s49 = ssub.s32 16384, 16384
      %50 = vsyncadd [#allocation9], %s49
      %s51 = sshll.u32 [#allocation8], 4
      %s52 = int_to_ptr.vmem [resolvable:$true] %s51
      %57 = dma.hbm_to_vmem [thread:$0]  %s3, 16384, %s52, [#allocation9], 64, 64, 4
    $region17: #{tpu_custom_call.1} parent=1 // pred_fallthru
      _
    // Predicated region
    $region18: #{tpu_custom_call.1} parent=1 // pred_check
      _
    $region19: #{tpu_custom_call.1} parent=1 // pred_check_branch
      %59 = sbr.rel (0) target = $region21
    $region20: #{tpu_custom_call.1} parent=1 // pred_region
      _
    $region21: #{tpu_custom_call.1} parent=1 // pred_fallthru
      _
    // Predicated region
    $region22: #{tpu_custom_call.1} parent=1 // pred_check
      _
    $region23: #{tpu_custom_call.1} parent=1 // pred_check_branch
      %61 = sbr.rel (0) target = $region25
    $region24: #{tpu_custom_call.1} parent=1 // pred_region
      %62 = dma.done [#allocation3], 32
    $region25: #{tpu_custom_call.1} parent=1 // pred_fallthru
      _
    // Predicated region
    $region26: #{tpu_custom_call.1} parent=1 // pred_check
      _
    $region27: #{tpu_custom_call.1} parent=1 // pred_check_branch
      %64 = sbr.rel (0) target = $region29
    $region28: #{tpu_custom_call.1} parent=1 // pred_region
      %65 = dma.done [#allocation6], 4096
    $region29: #{tpu_custom_call.1} parent=1 // pred_fallthru
      _
    // Predicated region
    $region30: #{tpu_custom_call.1} parent=1 // pred_check
      _
    $region31: #{tpu_custom_call.1} parent=1 // pred_check_branch
      %67 = sbr.rel (0) target = $region33
    $region32: #{tpu_custom_call.1} parent=1 // pred_region
      %68 = dma.done [#allocation6], 256
    $region33: #{tpu_custom_call.1} parent=1 // pred_fallthru
      _
    // Predicated region
    $region34: #{tpu_custom_call.1} parent=1 // pred_check
      _
    $region35: #{tpu_custom_call.1} parent=1 // pred_check_branch
      %70 = sbr.rel (0) target = $region37
    $region36: #{tpu_custom_call.1} parent=1 // pred_region
      %71 = dma.done [#allocation9], 16384
    $region37: #{tpu_custom_call.1} parent=1 // pred_fallthru
      _
    %v73 = vld [vmem:[#allocation2] sm:$0x3]
    %v74 = vpack.c.bf16 %v73, %v73
    %v75 = vld [vmem:[#allocation5] sm:$0xff]
    %v76 = vld [vmem:[#allocation5 + $0x8] sm:$0xff]
    %v77 = vld [vmem:[#allocation5 + $0x10] sm:$0xff]
    %v78 = vld [vmem:[#allocation5 + $0x18] sm:$0xff]
    %v79 = vld [vmem:[#allocation5 + $0x20] sm:$0xff]
    %v80 = vld [vmem:[#allocation5 + $0x28] sm:$0xff]
    %v81 = vld [vmem:[#allocation5 + $0x30] sm:$0xff]
    %v82 = vld [vmem:[#allocation5 + $0x38] sm:$0xff]
    %v83 = vld [vmem:[#allocation5 + $0x40] sm:$0xff]
    %v84 = vld [vmem:[#allocation5 + $0x48] sm:$0xff]
    %v85 = vld [vmem:[#allocation5 + $0x50] sm:$0xff]
    %v86 = vld [vmem:[#allocation5 + $0x58] sm:$0xff]
    %v87 = vld [vmem:[#allocation5 + $0x60] sm:$0xff]
    %v88 = vld [vmem:[#allocation5 + $0x68] sm:$0xff]
    %v89 = vld [vmem:[#allocation5 + $0x70] sm:$0xff]
    %v90 = vld [vmem:[#allocation5 + $0x78] sm:$0xff]
    %v91 = vld [vmem:[#allocation5 + $0x80] sm:$0xff]
    %v92 = vld [vmem:[#allocation5 + $0x88] sm:$0xff]
    %v93 = vld [vmem:[#allocation5 + $0x90] sm:$0xff]
    %v94 = vld [vmem:[#allocation5 + $0x98] sm:$0xff]
    %v95 = vld [vmem:[#allocation5 + $0xa0] sm:$0xff]
    %v96 = vld [vmem:[#allocation5 + $0xa8] sm:$0xff]
    %v97 = vld [vmem:[#allocation5 + $0xb0] sm:$0xff]
    %v98 = vld [vmem:[#allocation5 + $0xb8] sm:$0xff]
    %v99 = vld [vmem:[#allocation5 + $0xc0] sm:$0xff]
    %v100 = vld [vmem:[#allocation5 + $0xc8] sm:$0xff]
    %v101 = vld [vmem:[#allocation5 + $0xd0] sm:$0xff]
    %v102 = vld [vmem:[#allocation5 + $0xd8] sm:$0xff]
    %v103 = vld [vmem:[#allocation5 + $0xe0] sm:$0xff]
    %v104 = vld [vmem:[#allocation5 + $0xe8] sm:$0xff]
    %v105 = vld [vmem:[#allocation5 + $0xf0] sm:$0xff]
    %v106 = vld [vmem:[#allocation5 + $0xf8] sm:$0xff]
    %v107 = vld [vmem:[#allocation7] sm:$0xff]
    %v108 = vld [vmem:[#allocation7 + $0x8] sm:$0xff]
    %v111 = vlaneseq
    %v112 = vshrl.u32 %v111, 7
    %v113 = vsub.s32 0, %v112
    %v114 = vrot.slane %v107, %v113
    %v115 = vlaneseq
    %v116 = vshrl.u32 %v115, 7
    %v117 = vsub.s32 1, %v116
    %v118 = vrot.slane %v107, %v117
    %v119 = vlaneseq
    %v120 = vshrl.u32 %v119, 7
    %v121 = vsub.s32 2, %v120
    %v122 = vrot.slane %v107, %v121
    %v123 = vlaneseq
    %v124 = vshrl.u32 %v123, 7
    %v125 = vsub.s32 3, %v124
    %v126 = vrot.slane %v107, %v125
    %v127 = vlaneseq
    %v128 = vshrl.u32 %v127, 7
    %v129 = vsub.s32 4, %v128
    %v130 = vrot.slane %v107, %v129
    %v131 = vlaneseq
    %v132 = vshrl.u32 %v131, 7
    %v133 = vsub.s32 5, %v132
    %v134 = vrot.slane %v107, %v133
    %v135 = vlaneseq
    %v136 = vshrl.u32 %v135, 7
    %v137 = vsub.s32 6, %v136
    %v138 = vrot.slane %v107, %v137
    %v139 = vlaneseq
    %v140 = vshrl.u32 %v139, 7
    %v141 = vsub.s32 7, %v140
    %v142 = vrot.slane %v107, %v141
    %v143 = vlaneseq
    %v144 = vshrl.u32 %v143, 7
    %v145 = vsub.s32 0, %v144
    %v146 = vrot.slane %v108, %v145
    %v147 = vlaneseq
    %v148 = vshrl.u32 %v147, 7
    %v149 = vsub.s32 1, %v148
    %v150 = vrot.slane %v108, %v149
    %v151 = vlaneseq
    %v152 = vshrl.u32 %v151, 7
    %v153 = vsub.s32 2, %v152
    %v154 = vrot.slane %v108, %v153
    %v155 = vlaneseq
    %v156 = vshrl.u32 %v155, 7
    %v157 = vsub.s32 3, %v156
    %v158 = vrot.slane %v108, %v157
    %v159 = vlaneseq
    %v160 = vshrl.u32 %v159, 7
    %v161 = vsub.s32 4, %v160
    %v162 = vrot.slane %v108, %v161
    %v163 = vlaneseq
    %v164 = vshrl.u32 %v163, 7
    %v165 = vsub.s32 5, %v164
    %v166 = vrot.slane %v108, %v165
    %v167 = vlaneseq
    %v168 = vshrl.u32 %v167, 7
    %v169 = vsub.s32 6, %v168
    %v170 = vrot.slane %v108, %v169
    %v171 = vlaneseq
    %v172 = vshrl.u32 %v171, 7
    %v173 = vsub.s32 7, %v172
    %v174 = vrot.slane %v108, %v173
    %v223 = vunpack.c.l.b16 %v75
    %v224 = vunpack.c.h.b16 %v75
    %v225 = vunpack.c.l.b16 %v76
    %v226 = vunpack.c.h.b16 %v76
    %v227 = vunpack.c.l.b16 %v77
    %v228 = vunpack.c.h.b16 %v77
    %v229 = vunpack.c.l.b16 %v78
    %v230 = vunpack.c.h.b16 %v78
    %v231 = vunpack.c.l.b16 %v79
    %v232 = vunpack.c.h.b16 %v79
    %v233 = vunpack.c.l.b16 %v80
    %v234 = vunpack.c.h.b16 %v80
    %v235 = vunpack.c.l.b16 %v81
    %v236 = vunpack.c.h.b16 %v81
    %v237 = vunpack.c.l.b16 %v82
    %v238 = vunpack.c.h.b16 %v82
    %v239 = vunpack.c.l.b16 %v83
    %v240 = vunpack.c.h.b16 %v83
    %v241 = vunpack.c.l.b16 %v84
    %v242 = vunpack.c.h.b16 %v84
    %v243 = vunpack.c.l.b16 %v85
    %v244 = vunpack.c.h.b16 %v85
    %v245 = vunpack.c.l.b16 %v86
    %v246 = vunpack.c.h.b16 %v86
    %v247 = vunpack.c.l.b16 %v87
    %v248 = vunpack.c.h.b16 %v87
    %v249 = vunpack.c.l.b16 %v88
    %v250 = vunpack.c.h.b16 %v88
    %v251 = vunpack.c.l.b16 %v89
    %v252 = vunpack.c.h.b16 %v89
    %v253 = vunpack.c.l.b16 %v90
    %v254 = vunpack.c.h.b16 %v90
    %v255 = vunpack.c.l.b16 %v91
    %v256 = vunpack.c.h.b16 %v91
    %v257 = vunpack.c.l.b16 %v92
    %v258 = vunpack.c.h.b16 %v92
    %v259 = vunpack.c.l.b16 %v93
    %v260 = vunpack.c.h.b16 %v93
    %v261 = vunpack.c.l.b16 %v94
    %v262 = vunpack.c.h.b16 %v94
    %v263 = vunpack.c.l.b16 %v95
    %v264 = vunpack.c.h.b16 %v95
    %v265 = vunpack.c.l.b16 %v96
    %v266 = vunpack.c.h.b16 %v96
    %v267 = vunpack.c.l.b16 %v97
    %v268 = vunpack.c.h.b16 %v97
    %v269 = vunpack.c.l.b16 %v98
    %v270 = vunpack.c.h.b16 %v98
    %v271 = vunpack.c.l.b16 %v99
    %v272 = vunpack.c.h.b16 %v99
    %v273 = vunpack.c.l.b16 %v100
    %v274 = vunpack.c.h.b16 %v100
    %v275 = vunpack.c.l.b16 %v101
    %v276 = vunpack.c.h.b16 %v101
    %v277 = vunpack.c.l.b16 %v102
    %v278 = vunpack.c.h.b16 %v102
    %v279 = vunpack.c.l.b16 %v103
    %v280 = vunpack.c.h.b16 %v103
    %v281 = vunpack.c.l.b16 %v104
    %v282 = vunpack.c.h.b16 %v104
    %v283 = vunpack.c.l.b16 %v105
    %v284 = vunpack.c.h.b16 %v105
    %v285 = vunpack.c.l.b16 %v106
    %v286 = vunpack.c.h.b16 %v106
    %v287 = vpack.c.b16 %v239, %v223
    %v288 = vpack.c.b16 %v240, %v224
    %v289 = vpack.c.b16 %v241, %v225
    %v290 = vpack.c.b16 %v242, %v226
    %v291 = vpack.c.b16 %v243, %v227
    %v292 = vpack.c.b16 %v244, %v228
    %v293 = vpack.c.b16 %v245, %v229
    %v294 = vpack.c.b16 %v246, %v230
    %v295 = vpack.c.b16 %v247, %v231
    %v296 = vpack.c.b16 %v248, %v232
    %v297 = vpack.c.b16 %v249, %v233
    %v298 = vpack.c.b16 %v250, %v234
    %v299 = vpack.c.b16 %v251, %v235
    %v300 = vpack.c.b16 %v252, %v236
    %v301 = vpack.c.b16 %v253, %v237
    %v302 = vpack.c.b16 %v254, %v238
    %v303 = vpack.c.b16 %v271, %v255
    %v304 = vpack.c.b16 %v272, %v256
    %v305 = vpack.c.b16 %v273, %v257
    %v306 = vpack.c.b16 %v274, %v258
    %v307 = vpack.c.b16 %v275, %v259
    %v308 = vpack.c.b16 %v276, %v260
    %v309 = vpack.c.b16 %v277, %v261
    %v310 = vpack.c.b16 %v278, %v262
    %v311 = vpack.c.b16 %v279, %v263
    %v312 = vpack.c.b16 %v280, %v264
    %v313 = vpack.c.b16 %v281, %v265
    %v314 = vpack.c.b16 %v282, %v266
    %v315 = vpack.c.b16 %v283, %v267
    %v316 = vpack.c.b16 %v284, %v268
    %v317 = vpack.c.b16 %v285, %v269
    %v318 = vpack.c.b16 %v286, %v270
    %vm351 = vcmask 261120
    %v353 = vsel %vm351, %v74, 0
    %355 = vmatprep.subr.bf16.mxu0 %v288
    %356 = vmatpush1.bf16.msra.mxu0 %v287
    %357 = vmatprep.subr.bf16.mxu0 %v304
    %358 = vmatpush1.bf16.msra.mxu0 %v303
    %359 = vmatprep.subr.bf16.mxu0 0
    %360 = vmatpush1.bf16.msra.mxu0 0
    %361 = vmatprep.subr.bf16.mxu0 0
    %362 = vmatpush1.bf16.msra.mxu0 0
    %363 = vmatprep.subr.bf16.mxu0 0
    %364 = vmatpush1.bf16.msra.mxu0 0
    %365 = vmatprep.subr.bf16.mxu0 0
    %366 = vmatpush1.bf16.msra.mxu0 0
    %367 = vmatprep.subr.bf16.mxu0 0
    %368 = vmatpush1.bf16.msra.mxu0 0
    %369 = vmatprep.subr.bf16.mxu0 0
    %370 = vmatpush1.bf16.msra.mxu0 0
    %371 = vmatprep.subr.bf16.mxu0 0
    %372 = vmatpush1.bf16.msra.mxu0 0
    %373 = vmatprep.subr.bf16.mxu0 0
    %374 = vmatpush1.bf16.msra.mxu0 0
    %375 = vmatprep.subr.bf16.mxu0 0
    %376 = vmatpush1.bf16.msra.mxu0 0
    %377 = vmatprep.subr.bf16.mxu0 0
    %378 = vmatpush1.bf16.msra.mxu0 0
    %379 = vmatprep.subr.bf16.mxu0 0
    %380 = vmatpush1.bf16.msra.mxu0 0
    %381 = vmatprep.subr.bf16.mxu0 0
    %382 = vmatpush1.bf16.msra.mxu0 0
    %383 = vmatprep.subr.bf16.mxu0 0
    %384 = vmatpush1.bf16.msra.mxu0 0
    %385 = vmatprep.subr.bf16.mxu0 0
    %386 = vmatpush1.bf16.msra.mxu0 0
    %387 = vmatprep.mubr.bf16.mxu0 0
    %388 = vmatmul.mubr.bf16.gmra.mrb[0].mxu0 %v353
    %v389 = vpop.f32.mrb[0].mxu0
    %v390 = vadd.f32 %v114, %v389
    %v391 = vpop.f32.mrb[0].mxu0
    %v392 = vadd.f32 %v118, %v391
    %v393 = vpop.f32.mrb[0].mxu0
    %v394 = vpop.f32.mrb[0].mxu0
    %395 = vdwg.mxu0
    %396 = vmatprep.subr.bf16.mxu0 %v290
    %397 = vmatpush1.bf16.msra.mxu0 %v289
    %398 = vmatprep.subr.bf16.mxu0 %v306
    %399 = vmatpush1.bf16.msra.mxu0 %v305
    %400 = vmatprep.subr.bf16.mxu0 0
    %401 = vmatpush1.bf16.msra.mxu0 0
    %402 = vmatprep.subr.bf16.mxu0 0
    %403 = vmatpush1.bf16.msra.mxu0 0
    %404 = vmatprep.subr.bf16.mxu0 0
    %405 = vmatpush1.bf16.msra.mxu0 0
    %406 = vmatprep.subr.bf16.mxu0 0
    %407 = vmatpush1.bf16.msra.mxu0 0
    %408 = vmatprep.subr.bf16.mxu0 0
    %409 = vmatpush1.bf16.msra.mxu0 0
    %410 = vmatprep.subr.bf16.mxu0 0
    %411 = vmatpush1.bf16.msra.mxu0 0
    %412 = vmatprep.subr.bf16.mxu0 0
    %413 = vmatpush1.bf16.msra.mxu0 0
    %414 = vmatprep.subr.bf16.mxu0 0
    %415 = vmatpush1.bf16.msra.mxu0 0
    %416 = vmatprep.subr.bf16.mxu0 0
    %417 = vmatpush1.bf16.msra.mxu0 0
    %418 = vmatprep.subr.bf16.mxu0 0
    %419 = vmatpush1.bf16.msra.mxu0 0
    %420 = vmatprep.subr.bf16.mxu0 0
    %421 = vmatpush1.bf16.msra.mxu0 0
    %422 = vmatprep.subr.bf16.mxu0 0
    %423 = vmatpush1.bf16.msra.mxu0 0
    %424 = vmatprep.subr.bf16.mxu0 0
    %425 = vmatpush1.bf16.msra.mxu0 0
    %426 = vmatprep.subr.bf16.mxu0 0
    %427 = vmatpush1.bf16.msra.mxu0 0
    %428 = vmatprep.mubr.bf16.mxu0 0
    %429 = vmatmul.mubr.bf16.gmra.mrb[0].mxu0 %v353
    %v430 = vpop.f32.mrb[0].mxu0
    %v431 = vadd.f32 %v122, %v430
    %v432 = vpop.f32.mrb[0].mxu0
    %v433 = vadd.f32 %v126, %v432
    %v434 = vpop.f32.mrb[0].mxu0
    %v435 = vpop.f32.mrb[0].mxu0
    %436 = vdwg.mxu0
    %437 = vmatprep.subr.bf16.mxu0 %v292
    %438 = vmatpush1.bf16.msra.mxu0 %v291
    %439 = vmatprep.subr.bf16.mxu0 %v308
    %440 = vmatpush1.bf16.msra.mxu0 %v307
    %441 = vmatprep.subr.bf16.mxu0 0
    %442 = vmatpush1.bf16.msra.mxu0 0
    %443 = vmatprep.subr.bf16.mxu0 0
    %444 = vmatpush1.bf16.msra.mxu0 0
    %445 = vmatprep.subr.bf16.mxu0 0
    %446 = vmatpush1.bf16.msra.mxu0 0
    %447 = vmatprep.subr.bf16.mxu0 0
    %448 = vmatpush1.bf16.msra.mxu0 0
    %449 = vmatprep.subr.bf16.mxu0 0
    %450 = vmatpush1.bf16.msra.mxu0 0
    %451 = vmatprep.subr.bf16.mxu0 0
    %452 = vmatpush1.bf16.msra.mxu0 0
    %453 = vmatprep.subr.bf16.mxu0 0
    %454 = vmatpush1.bf16.msra.mxu0 0
    %455 = vmatprep.subr.bf16.mxu0 0
    %456 = vmatpush1.bf16.msra.mxu0 0
    %457 = vmatprep.subr.bf16.mxu0 0
    %458 = vmatpush1.bf16.msra.mxu0 0
    %459 = vmatprep.subr.bf16.mxu0 0
    %460 = vmatpush1.bf16.msra.mxu0 0
    %461 = vmatprep.subr.bf16.mxu0 0
    %462 = vmatpush1.bf16.msra.mxu0 0
    %463 = vmatprep.subr.bf16.mxu0 0
    %464 = vmatpush1.bf16.msra.mxu0 0
    %465 = vmatprep.subr.bf16.mxu0 0
    %466 = vmatpush1.bf16.msra.mxu0 0
    %467 = vmatprep.subr.bf16.mxu0 0
    %468 = vmatpush1.bf16.msra.mxu0 0
    %469 = vmatprep.mubr.bf16.mxu0 0
    %470 = vmatmul.mubr.bf16.gmra.mrb[0].mxu0 %v353
    %v471 = vpop.f32.mrb[0].mxu0
    %v472 = vadd.f32 %v130, %v471
    %v473 = vpop.f32.mrb[0].mxu0
    %v474 = vadd.f32 %v134, %v473
    %v475 = vpop.f32.mrb[0].mxu0
    %v476 = vpop.f32.mrb[0].mxu0
    %477 = vdwg.mxu0
    %478 = vmatprep.subr.bf16.mxu0 %v294
    %479 = vmatpush1.bf16.msra.mxu0 %v293
    %480 = vmatprep.subr.bf16.mxu0 %v310
    %481 = vmatpush1.bf16.msra.mxu0 %v309
    %482 = vmatprep.subr.bf16.mxu0 0
    %483 = vmatpush1.bf16.msra.mxu0 0
    %484 = vmatprep.subr.bf16.mxu0 0
    %485 = vmatpush1.bf16.msra.mxu0 0
    %486 = vmatprep.subr.bf16.mxu0 0
    %487 = vmatpush1.bf16.msra.mxu0 0
    %488 = vmatprep.subr.bf16.mxu0 0
    %489 = vmatpush1.bf16.msra.mxu0 0
    %490 = vmatprep.subr.bf16.mxu0 0
    %491 = vmatpush1.bf16.msra.mxu0 0
    %492 = vmatprep.subr.bf16.mxu0 0
    %493 = vmatpush1.bf16.msra.mxu0 0
    %494 = vmatprep.subr.bf16.mxu0 0
    %495 = vmatpush1.bf16.msra.mxu0 0
    %496 = vmatprep.subr.bf16.mxu0 0
    %497 = vmatpush1.bf16.msra.mxu0 0
    %498 = vmatprep.subr.bf16.mxu0 0
    %499 = vmatpush1.bf16.msra.mxu0 0
    %500 = vmatprep.subr.bf16.mxu0 0
    %501 = vmatpush1.bf16.msra.mxu0 0
    %502 = vmatprep.subr.bf16.mxu0 0
    %503 = vmatpush1.bf16.msra.mxu0 0
    %504 = vmatprep.subr.bf16.mxu0 0
    %505 = vmatpush1.bf16.msra.mxu0 0
    %506 = vmatprep.subr.bf16.mxu0 0
    %507 = vmatpush1.bf16.msra.mxu0 0
    %508 = vmatprep.subr.bf16.mxu0 0
    %509 = vmatpush1.bf16.msra.mxu0 0
    %510 = vmatprep.mubr.bf16.mxu0 0
    %511 = vmatmul.mubr.bf16.gmra.mrb[0].mxu0 %v353
    %v512 = vpop.f32.mrb[0].mxu0
    %v513 = vadd.f32 %v138, %v512
    %v514 = vpop.f32.mrb[0].mxu0
    %v515 = vadd.f32 %v142, %v514
    %v516 = vpop.f32.mrb[0].mxu0
    %v517 = vpop.f32.mrb[0].mxu0
    %518 = vdwg.mxu0
    %519 = vmatprep.subr.bf16.mxu0 %v296
    %520 = vmatpush1.bf16.msra.mxu0 %v295
    %521 = vmatprep.subr.bf16.mxu0 %v312
    %522 = vmatpush1.bf16.msra.mxu0 %v311
    %523 = vmatprep.subr.bf16.mxu0 0
    %524 = vmatpush1.bf16.msra.mxu0 0
    %525 = vmatprep.subr.bf16.mxu0 0
    %526 = vmatpush1.bf16.msra.mxu0 0
    %527 = vmatprep.subr.bf16.mxu0 0
    %528 = vmatpush1.bf16.msra.mxu0 0
    %529 = vmatprep.subr.bf16.mxu0 0
    %530 = vmatpush1.bf16.msra.mxu0 0
    %531 = vmatprep.subr.bf16.mxu0 0
    %532 = vmatpush1.bf16.msra.mxu0 0
    %533 = vmatprep.subr.bf16.mxu0 0
    %534 = vmatpush1.bf16.msra.mxu0 0
    %535 = vmatprep.subr.bf16.mxu0 0
    %536 = vmatpush1.bf16.msra.mxu0 0
    %537 = vmatprep.subr.bf16.mxu0 0
    %538 = vmatpush1.bf16.msra.mxu0 0
    %539 = vmatprep.subr.bf16.mxu0 0
    %540 = vmatpush1.bf16.msra.mxu0 0
    %541 = vmatprep.subr.bf16.mxu0 0
    %542 = vmatpush1.bf16.msra.mxu0 0
    %543 = vmatprep.subr.bf16.mxu0 0
    %544 = vmatpush1.bf16.msra.mxu0 0
    %545 = vmatprep.subr.bf16.mxu0 0
    %546 = vmatpush1.bf16.msra.mxu0 0
    %547 = vmatprep.subr.bf16.mxu0 0
    %548 = vmatpush1.bf16.msra.mxu0 0
    %549 = vmatprep.subr.bf16.mxu0 0
    %550 = vmatpush1.bf16.msra.mxu0 0
    %551 = vmatprep.mubr.bf16.mxu0 0
    %552 = vmatmul.mubr.bf16.gmra.mrb[0].mxu0 %v353
    %v553 = vpop.f32.mrb[0].mxu0
    %v554 = vadd.f32 %v146, %v553
    %v555 = vpop.f32.mrb[0].mxu0
    %v556 = vadd.f32 %v150, %v555
    %v557 = vpop.f32.mrb[0].mxu0
    %v558 = vpop.f32.mrb[0].mxu0
    %559 = vdwg.mxu0
    %560 = vmatprep.subr.bf16.mxu0 %v298
    %561 = vmatpush1.bf16.msra.mxu0 %v297
    %562 = vmatprep.subr.bf16.mxu0 %v314
    %563 = vmatpush1.bf16.msra.mxu0 %v313
    %564 = vmatprep.subr.bf16.mxu0 0
    %565 = vmatpush1.bf16.msra.mxu0 0
    %566 = vmatprep.subr.bf16.mxu0 0
    %567 = vmatpush1.bf16.msra.mxu0 0
    %568 = vmatprep.subr.bf16.mxu0 0
    %569 = vmatpush1.bf16.msra.mxu0 0
    %570 = vmatprep.subr.bf16.mxu0 0
    %571 = vmatpush1.bf16.msra.mxu0 0
    %572 = vmatprep.subr.bf16.mxu0 0
    %573 = vmatpush1.bf16.msra.mxu0 0
    %574 = vmatprep.subr.bf16.mxu0 0
    %575 = vmatpush1.bf16.msra.mxu0 0
    %576 = vmatprep.subr.bf16.mxu0 0
    %577 = vmatpush1.bf16.msra.mxu0 0
    %578 = vmatprep.subr.bf16.mxu0 0
    %579 = vmatpush1.bf16.msra.mxu0 0
    %580 = vmatprep.subr.bf16.mxu0 0
    %581 = vmatpush1.bf16.msra.mxu0 0
    %582 = vmatprep.subr.bf16.mxu0 0
    %583 = vmatpush1.bf16.msra.mxu0 0
    %584 = vmatprep.subr.bf16.mxu0 0
    %585 = vmatpush1.bf16.msra.mxu0 0
    %586 = vmatprep.subr.bf16.mxu0 0
    %587 = vmatpush1.bf16.msra.mxu0 0
    %588 = vmatprep.subr.bf16.mxu0 0
    %589 = vmatpush1.bf16.msra.mxu0 0
    %590 = vmatprep.subr.bf16.mxu0 0
    %591 = vmatpush1.bf16.msra.mxu0 0
    %592 = vmatprep.mubr.bf16.mxu0 0
    %593 = vmatmul.mubr.bf16.gmra.mrb[0].mxu0 %v353
    %v594 = vpop.f32.mrb[0].mxu0
    %v595 = vadd.f32 %v154, %v594
    %v596 = vpop.f32.mrb[0].mxu0
    %v597 = vadd.f32 %v158, %v596
    %v598 = vpop.f32.mrb[0].mxu0
    %v599 = vpop.f32.mrb[0].mxu0
    %600 = vdwg.mxu0
    %601 = vmatprep.subr.bf16.mxu0 %v300
    %602 = vmatpush1.bf16.msra.mxu0 %v299
    %603 = vmatprep.subr.bf16.mxu0 %v316
    %604 = vmatpush1.bf16.msra.mxu0 %v315
    %605 = vmatprep.subr.bf16.mxu0 0
    %606 = vmatpush1.bf16.msra.mxu0 0
    %607 = vmatprep.subr.bf16.mxu0 0
    %608 = vmatpush1.bf16.msra.mxu0 0
    %609 = vmatprep.subr.bf16.mxu0 0
    %610 = vmatpush1.bf16.msra.mxu0 0
    %611 = vmatprep.subr.bf16.mxu0 0
    %612 = vmatpush1.bf16.msra.mxu0 0
    %613 = vmatprep.subr.bf16.mxu0 0
    %614 = vmatpush1.bf16.msra.mxu0 0
    %615 = vmatprep.subr.bf16.mxu0 0
    %616 = vmatpush1.bf16.msra.mxu0 0
    %617 = vmatprep.subr.bf16.mxu0 0
    %618 = vmatpush1.bf16.msra.mxu0 0
    %619 = vmatprep.subr.bf16.mxu0 0
    %620 = vmatpush1.bf16.msra.mxu0 0
    %621 = vmatprep.subr.bf16.mxu0 0
    %622 = vmatpush1.bf16.msra.mxu0 0
    %623 = vmatprep.subr.bf16.mxu0 0
    %624 = vmatpush1.bf16.msra.mxu0 0
    %625 = vmatprep.subr.bf16.mxu0 0
    %626 = vmatpush1.bf16.msra.mxu0 0
    %627 = vmatprep.subr.bf16.mxu0 0
    %628 = vmatpush1.bf16.msra.mxu0 0
    %629 = vmatprep.subr.bf16.mxu0 0
    %630 = vmatpush1.bf16.msra.mxu0 0
    %631 = vmatprep.subr.bf16.mxu0 0
    %632 = vmatpush1.bf16.msra.mxu0 0
    %633 = vmatprep.mubr.bf16.mxu0 0
    %634 = vmatmul.mubr.bf16.gmra.mrb[0].mxu0 %v353
    %v635 = vpop.f32.mrb[0].mxu0
    %v636 = vadd.f32 %v162, %v635
    %v637 = vpop.f32.mrb[0].mxu0
    %v638 = vadd.f32 %v166, %v637
    %v639 = vpop.f32.mrb[0].mxu0
    %v640 = vpop.f32.mrb[0].mxu0
    %641 = vdwg.mxu0
    %642 = vmatprep.subr.bf16.mxu0 %v302
    %643 = vmatpush1.bf16.msra.mxu0 %v301
    %644 = vmatprep.subr.bf16.mxu0 %v318
    %645 = vmatpush1.bf16.msra.mxu0 %v317
    %646 = vmatprep.subr.bf16.mxu0 0
    %647 = vmatpush1.bf16.msra.mxu0 0
    %648 = vmatprep.subr.bf16.mxu0 0
    %649 = vmatpush1.bf16.msra.mxu0 0
    %650 = vmatprep.subr.bf16.mxu0 0
    %651 = vmatpush1.bf16.msra.mxu0 0
    %652 = vmatprep.subr.bf16.mxu0 0
    %653 = vmatpush1.bf16.msra.mxu0 0
    %654 = vmatprep.subr.bf16.mxu0 0
    %655 = vmatpush1.bf16.msra.mxu0 0
    %656 = vmatprep.subr.bf16.mxu0 0
    %657 = vmatpush1.bf16.msra.mxu0 0
    %658 = vmatprep.subr.bf16.mxu0 0
    %659 = vmatpush1.bf16.msra.mxu0 0
    %660 = vmatprep.subr.bf16.mxu0 0
    %661 = vmatpush1.bf16.msra.mxu0 0
    %662 = vmatprep.subr.bf16.mxu0 0
    %663 = vmatpush1.bf16.msra.mxu0 0
    %664 = vmatprep.subr.bf16.mxu0 0
    %665 = vmatpush1.bf16.msra.mxu0 0
    %666 = vmatprep.subr.bf16.mxu0 0
    %667 = vmatpush1.bf16.msra.mxu0 0
    %668 = vmatprep.subr.bf16.mxu0 0
    %669 = vmatpush1.bf16.msra.mxu0 0
    %670 = vmatprep.subr.bf16.mxu0 0
    %671 = vmatpush1.bf16.msra.mxu0 0
    %672 = vmatprep.subr.bf16.mxu0 0
    %673 = vmatpush1.bf16.msra.mxu0 0
    %674 = vmatprep.mubr.bf16.mxu0 0
    %675 = vmatmul.mubr.bf16.gmra.mrb[0].mxu0 %v353
    %v676 = vpop.f32.mrb[0].mxu0
    %v677 = vadd.f32 %v170, %v676
    %v678 = vpop.f32.mrb[0].mxu0
    %v679 = vadd.f32 %v174, %v678
    %v680 = vpop.f32.mrb[0].mxu0
    %v681 = vpop.f32.mrb[0].mxu0
    %682 = vdwg.mxu0
    %v683 = vmax.f32 %v390, 0.0
    %v684 = vmax.f32 %v392, 0.0
    %v685 = vmax.f32 %v431, 0.0
    %v686 = vmax.f32 %v433, 0.0
    %v687 = vmax.f32 %v472, 0.0
    %v688 = vmax.f32 %v474, 0.0
    %v689 = vmax.f32 %v513, 0.0
    %v690 = vmax.f32 %v515, 0.0
    %v691 = vmax.f32 %v554, 0.0
    %v692 = vmax.f32 %v556, 0.0
    %v693 = vmax.f32 %v595, 0.0
    %v694 = vmax.f32 %v597, 0.0
    %v695 = vmax.f32 %v636, 0.0
    %v696 = vmax.f32 %v638, 0.0
    %v697 = vmax.f32 %v677, 0.0
    %v698 = vmax.f32 %v679, 0.0
    %v699 = vpack.c.bf16 %v683, %v683
    %v700 = vpack.c.bf16 %v684, %v684
    %v701 = vpack.c.bf16 %v685, %v685
    %v702 = vpack.c.bf16 %v686, %v686
    %v703 = vpack.c.bf16 %v687, %v687
    %v704 = vpack.c.bf16 %v688, %v688
    %v705 = vpack.c.bf16 %v689, %v689
    %v706 = vpack.c.bf16 %v690, %v690
    %v707 = vpack.c.bf16 %v691, %v691
    %v708 = vpack.c.bf16 %v692, %v692
    %v709 = vpack.c.bf16 %v693, %v693
    %v710 = vpack.c.bf16 %v694, %v694
    %v711 = vpack.c.bf16 %v695, %v695
    %v712 = vpack.c.bf16 %v696, %v696
    %v713 = vpack.c.bf16 %v697, %v697
    %v714 = vpack.c.bf16 %v698, %v698
    %v715 = vld [vmem:[#allocation8] sm:$0xf]
    %v716 = vld [vmem:[#allocation8 + $0x4] sm:$0xf]
    %v717 = vld [vmem:[#allocation8 + $0x8] sm:$0xf]
    %v718 = vld [vmem:[#allocation8 + $0xc] sm:$0xf]
    %v719 = vld [vmem:[#allocation8 + $0x10] sm:$0xf]
    %v720 = vld [vmem:[#allocation8 + $0x14] sm:$0xf]
    %v721 = vld [vmem:[#allocation8 + $0x18] sm:$0xf]
    %v722 = vld [vmem:[#allocation8 + $0x1c] sm:$0xf]
    %v723 = vld [vmem:[#allocation8 + $0x20] sm:$0xf]
    %v724 = vld [vmem:[#allocation8 + $0x24] sm:$0xf]
    %v725 = vld [vmem:[#allocation8 + $0x28] sm:$0xf]
    %v726 = vld [vmem:[#allocation8 + $0x2c] sm:$0xf]
    %v727 = vld [vmem:[#allocation8 + $0x30] sm:$0xf]
    %v728 = vld [vmem:[#allocation8 + $0x34] sm:$0xf]
    %v729 = vld [vmem:[#allocation8 + $0x38] sm:$0xf]
    %v730 = vld [vmem:[#allocation8 + $0x3c] sm:$0xf]
    %v731 = vld [vmem:[#allocation8 + $0x40] sm:$0xf]
    %v732 = vld [vmem:[#allocation8 + $0x44] sm:$0xf]
    %v733 = vld [vmem:[#allocation8 + $0x48] sm:$0xf]
    %v734 = vld [vmem:[#allocation8 + $0x4c] sm:$0xf]
    %v735 = vld [vmem:[#allocation8 + $0x50] sm:$0xf]
    %v736 = vld [vmem:[#allocation8 + $0x54] sm:$0xf]
    %v737 = vld [vmem:[#allocation8 + $0x58] sm:$0xf]
    %v738 = vld [vmem:[#allocation8 + $0x5c] sm:$0xf]
    %v739 = vld [vmem:[#allocation8 + $0x60] sm:$0xf]
    %v740 = vld [vmem:[#allocation8 + $0x64] sm:$0xf]
    %v741 = vld [vmem:[#allocation8 + $0x68] sm:$0xf]
    %v742 = vld [vmem:[#allocation8 + $0x6c] sm:$0xf]
    %v743 = vld [vmem:[#allocation8 + $0x70] sm:$0xf]
    %v744 = vld [vmem:[#allocation8 + $0x74] sm:$0xf]
    %v745 = vld [vmem:[#allocation8 + $0x78] sm:$0xf]
    %v746 = vld [vmem:[#allocation8 + $0x7c] sm:$0xf]
    %v747 = vld [vmem:[#allocation8 + $0x80] sm:$0xf]
    %v748 = vld [vmem:[#allocation8 + $0x84] sm:$0xf]
    %v749 = vld [vmem:[#allocation8 + $0x88] sm:$0xf]
    %v750 = vld [vmem:[#allocation8 + $0x8c] sm:$0xf]
    %v751 = vld [vmem:[#allocation8 + $0x90] sm:$0xf]
    %v752 = vld [vmem:[#allocation8 + $0x94] sm:$0xf]
    %v753 = vld [vmem:[#allocation8 + $0x98] sm:$0xf]
    %v754 = vld [vmem:[#allocation8 + $0x9c] sm:$0xf]
    %v755 = vld [vmem:[#allocation8 + $0xa0] sm:$0xf]
    %v756 = vld [vmem:[#allocation8 + $0xa4] sm:$0xf]
    %v757 = vld [vmem:[#allocation8 + $0xa8] sm:$0xf]
    %v758 = vld [vmem:[#allocation8 + $0xac] sm:$0xf]
    %v759 = vld [vmem:[#allocation8 + $0xb0] sm:$0xf]
    %v760 = vld [vmem:[#allocation8 + $0xb4] sm:$0xf]
    %v761 = vld [vmem:[#allocation8 + $0xb8] sm:$0xf]
    %v762 = vld [vmem:[#allocation8 + $0xbc] sm:$0xf]
    %v763 = vld [vmem:[#allocation8 + $0xc0] sm:$0xf]
    %v764 = vld [vmem:[#allocation8 + $0xc4] sm:$0xf]
    %v765 = vld [vmem:[#allocation8 + $0xc8] sm:$0xf]
    %v766 = vld [vmem:[#allocation8 + $0xcc] sm:$0xf]
    %v767 = vld [vmem:[#allocation8 + $0xd0] sm:$0xf]
    %v768 = vld [vmem:[#allocation8 + $0xd4] sm:$0xf]
    %v769 = vld [vmem:[#allocation8 + $0xd8] sm:$0xf]
    %v770 = vld [vmem:[#allocation8 + $0xdc] sm:$0xf]
    %v771 = vld [vmem:[#allocation8 + $0xe0] sm:$0xf]
    %v772 = vld [vmem:[#allocation8 + $0xe4] sm:$0xf]
    %v773 = vld [vmem:[#allocation8 + $0xe8] sm:$0xf]
    %v774 = vld [vmem:[#allocation8 + $0xec] sm:$0xf]
    %v775 = vld [vmem:[#allocation8 + $0xf0] sm:$0xf]
    %v776 = vld [vmem:[#allocation8 + $0xf4] sm:$0xf]
    %v777 = vld [vmem:[#allocation8 + $0xf8] sm:$0xf]
    %v778 = vld [vmem:[#allocation8 + $0xfc] sm:$0xf]
    %v779 = vld [vmem:[#allocation8 + $0x100] sm:$0xf]
    %v780 = vld [vmem:[#allocation8 + $0x104] sm:$0xf]
    %v781 = vld [vmem:[#allocation8 + $0x108] sm:$0xf]
    %v782 = vld [vmem:[#allocation8 + $0x10c] sm:$0xf]
    %v783 = vld [vmem:[#allocation8 + $0x110] sm:$0xf]
    %v784 = vld [vmem:[#allocation8 + $0x114] sm:$0xf]
    %v785 = vld [vmem:[#allocation8 + $0x118] sm:$0xf]
    %v786 = vld [vmem:[#allocation8 + $0x11c] sm:$0xf]
    %v787 = vld [vmem:[#allocation8 + $0x120] sm:$0xf]
    %v788 = vld [vmem:[#allocation8 + $0x124] sm:$0xf]
    %v789 = vld [vmem:[#allocation8 + $0x128] sm:$0xf]
    %v790 = vld [vmem:[#allocation8 + $0x12c] sm:$0xf]
    %v791 = vld [vmem:[#allocation8 + $0x130] sm:$0xf]
    %v792 = vld [vmem:[#allocation8 + $0x134] sm:$0xf]
    %v793 = vld [vmem:[#allocation8 + $0x138] sm:$0xf]
    %v794 = vld [vmem:[#allocation8 + $0x13c] sm:$0xf]
    %v795 = vld [vmem:[#allocation8 + $0x140] sm:$0xf]
    %v796 = vld [vmem:[#allocation8 + $0x144] sm:$0xf]
    %v797 = vld [vmem:[#allocation8 + $0x148] sm:$0xf]
    %v798 = vld [vmem:[#allocation8 + $0x14c] sm:$0xf]
    %v799 = vld [vmem:[#allocation8 + $0x150] sm:$0xf]
    %v800 = vld [vmem:[#allocation8 + $0x154] sm:$0xf]
    %v801 = vld [vmem:[#allocation8 + $0x158] sm:$0xf]
    %v802 = vld [vmem:[#allocation8 + $0x15c] sm:$0xf]
    %v803 = vld [vmem:[#allocation8 + $0x160] sm:$0xf]
    %v804 = vld [vmem:[#allocation8 + $0x164] sm:$0xf]
    %v805 = vld [vmem:[#allocation8 + $0x168] sm:$0xf]
    %v806 = vld [vmem:[#allocation8 + $0x16c] sm:$0xf]
    %v807 = vld [vmem:[#allocation8 + $0x170] sm:$0xf]
    %v808 = vld [vmem:[#allocation8 + $0x174] sm:$0xf]
    %v809 = vld [vmem:[#allocation8 + $0x178] sm:$0xf]
    %v810 = vld [vmem:[#allocation8 + $0x17c] sm:$0xf]
    %v811 = vld [vmem:[#allocation8 + $0x180] sm:$0xf]
    %v812 = vld [vmem:[#allocation8 + $0x184] sm:$0xf]
    %v813 = vld [vmem:[#allocation8 + $0x188] sm:$0xf]
    %v814 = vld [vmem:[#allocation8 + $0x18c] sm:$0xf]
    %v815 = vld [vmem:[#allocation8 + $0x190] sm:$0xf]
    %v816 = vld [vmem:[#allocation8 + $0x194] sm:$0xf]
    %v817 = vld [vmem:[#allocation8 + $0x198] sm:$0xf]
    %v818 = vld [vmem:[#allocation8 + $0x19c] sm:$0xf]
    %v819 = vld [vmem:[#allocation8 + $0x1a0] sm:$0xf]
    %v820 = vld [vmem:[#allocation8 + $0x1a4] sm:$0xf]
    %v821 = vld [vmem:[#allocation8 + $0x1a8] sm:$0xf]
    %v822 = vld [vmem:[#allocation8 + $0x1ac] sm:$0xf]
    %v823 = vld [vmem:[#allocation8 + $0x1b0] sm:$0xf]
    %v824 = vld [vmem:[#allocation8 + $0x1b4] sm:$0xf]
    %v825 = vld [vmem:[#allocation8 + $0x1b8] sm:$0xf]
    %v826 = vld [vmem:[#allocation8 + $0x1bc] sm:$0xf]
    %v827 = vld [vmem:[#allocation8 + $0x1c0] sm:$0xf]
    %v828 = vld [vmem:[#allocation8 + $0x1c4] sm:$0xf]
    %v829 = vld [vmem:[#allocation8 + $0x1c8] sm:$0xf]
    %v830 = vld [vmem:[#allocation8 + $0x1cc] sm:$0xf]
    %v831 = vld [vmem:[#allocation8 + $0x1d0] sm:$0xf]
    %v832 = vld [vmem:[#allocation8 + $0x1d4] sm:$0xf]
    %v833 = vld [vmem:[#allocation8 + $0x1d8] sm:$0xf]
    %v834 = vld [vmem:[#allocation8 + $0x1dc] sm:$0xf]
    %v835 = vld [vmem:[#allocation8 + $0x1e0] sm:$0xf]
    %v836 = vld [vmem:[#allocation8 + $0x1e4] sm:$0xf]
    %v837 = vld [vmem:[#allocation8 + $0x1e8] sm:$0xf]
    %v838 = vld [vmem:[#allocation8 + $0x1ec] sm:$0xf]
    %v839 = vld [vmem:[#allocation8 + $0x1f0] sm:$0xf]
    %v840 = vld [vmem:[#allocation8 + $0x1f4] sm:$0xf]
    %v841 = vld [vmem:[#allocation8 + $0x1f8] sm:$0xf]
    %v842 = vld [vmem:[#allocation8 + $0x1fc] sm:$0xf]
    %v843 = vld [vmem:[#allocation8 + $0x200] sm:$0xf]
    %v844 = vld [vmem:[#allocation8 + $0x204] sm:$0xf]
    %v845 = vld [vmem:[#allocation8 + $0x208] sm:$0xf]
    %v846 = vld [vmem:[#allocation8 + $0x20c] sm:$0xf]
    %v847 = vld [vmem:[#allocation8 + $0x210] sm:$0xf]
    %v848 = vld [vmem:[#allocation8 + $0x214] sm:$0xf]
    %v849 = vld [vmem:[#allocation8 + $0x218] sm:$0xf]
    %v850 = vld [vmem:[#allocation8 + $0x21c] sm:$0xf]
    %v851 = vld [vmem:[#allocation8 + $0x220] sm:$0xf]
    %v852 = vld [vmem:[#allocation8 + $0x224] sm:$0xf]
    %v853 = vld [vmem:[#allocation8 + $0x228] sm:$0xf]
    %v854 = vld [vmem:[#allocation8 + $0x22c] sm:$0xf]
    %v855 = vld [vmem:[#allocation8 + $0x230] sm:$0xf]
    %v856 = vld [vmem:[#allocation8 + $0x234] sm:$0xf]
    %v857 = vld [vmem:[#allocation8 + $0x238] sm:$0xf]
    %v858 = vld [vmem:[#allocation8 + $0x23c] sm:$0xf]
    %v859 = vld [vmem:[#allocation8 + $0x240] sm:$0xf]
    %v860 = vld [vmem:[#allocation8 + $0x244] sm:$0xf]
    %v861 = vld [vmem:[#allocation8 + $0x248] sm:$0xf]
    %v862 = vld [vmem:[#allocation8 + $0x24c] sm:$0xf]
    %v863 = vld [vmem:[#allocation8 + $0x250] sm:$0xf]
    %v864 = vld [vmem:[#allocation8 + $0x254] sm:$0xf]
    %v865 = vld [vmem:[#allocation8 + $0x258] sm:$0xf]
    %v866 = vld [vmem:[#allocation8 + $0x25c] sm:$0xf]
    %v867 = vld [vmem:[#allocation8 + $0x260] sm:$0xf]
    %v868 = vld [vmem:[#allocation8 + $0x264] sm:$0xf]
    %v869 = vld [vmem:[#allocation8 + $0x268] sm:$0xf]
    %v870 = vld [vmem:[#allocation8 + $0x26c] sm:$0xf]
    %v871 = vld [vmem:[#allocation8 + $0x270] sm:$0xf]
    %v872 = vld [vmem:[#allocation8 + $0x274] sm:$0xf]
    %v873 = vld [vmem:[#allocation8 + $0x278] sm:$0xf]
    %v874 = vld [vmem:[#allocation8 + $0x27c] sm:$0xf]
    %v875 = vld [vmem:[#allocation8 + $0x280] sm:$0xf]
    %v876 = vld [vmem:[#allocation8 + $0x284] sm:$0xf]
    %v877 = vld [vmem:[#allocation8 + $0x288] sm:$0xf]
    %v878 = vld [vmem:[#allocation8 + $0x28c] sm:$0xf]
    %v879 = vld [vmem:[#allocation8 + $0x290] sm:$0xf]
    %v880 = vld [vmem:[#allocation8 + $0x294] sm:$0xf]
    %v881 = vld [vmem:[#allocation8 + $0x298] sm:$0xf]
    %v882 = vld [vmem:[#allocation8 + $0x29c] sm:$0xf]
    %v883 = vld [vmem:[#allocation8 + $0x2a0] sm:$0xf]
    %v884 = vld [vmem:[#allocation8 + $0x2a4] sm:$0xf]
    %v885 = vld [vmem:[#allocation8 + $0x2a8] sm:$0xf]
    %v886 = vld [vmem:[#allocation8 + $0x2ac] sm:$0xf]
    %v887 = vld [vmem:[#allocation8 + $0x2b0] sm:$0xf]
    %v888 = vld [vmem:[#allocation8 + $0x2b4] sm:$0xf]
    %v889 = vld [vmem:[#allocation8 + $0x2b8] sm:$0xf]
    %v890 = vld [vmem:[#allocation8 + $0x2bc] sm:$0xf]
    %v891 = vld [vmem:[#allocation8 + $0x2c0] sm:$0xf]
    %v892 = vld [vmem:[#allocation8 + $0x2c4] sm:$0xf]
    %v893 = vld [vmem:[#allocation8 + $0x2c8] sm:$0xf]
    %v894 = vld [vmem:[#allocation8 + $0x2cc] sm:$0xf]
    %v895 = vld [vmem:[#allocation8 + $0x2d0] sm:$0xf]
    %v896 = vld [vmem:[#allocation8 + $0x2d4] sm:$0xf]
    %v897 = vld [vmem:[#allocation8 + $0x2d8] sm:$0xf]
    %v898 = vld [vmem:[#allocation8 + $0x2dc] sm:$0xf]
    %v899 = vld [vmem:[#allocation8 + $0x2e0] sm:$0xf]
    %v900 = vld [vmem:[#allocation8 + $0x2e4] sm:$0xf]
    %v901 = vld [vmem:[#allocation8 + $0x2e8] sm:$0xf]
    %v902 = vld [vmem:[#allocation8 + $0x2ec] sm:$0xf]
    %v903 = vld [vmem:[#allocation8 + $0x2f0] sm:$0xf]
    %v904 = vld [vmem:[#allocation8 + $0x2f4] sm:$0xf]
    %v905 = vld [vmem:[#allocation8 + $0x2f8] sm:$0xf]
    %v906 = vld [vmem:[#allocation8 + $0x2fc] sm:$0xf]
    %v907 = vld [vmem:[#allocation8 + $0x300] sm:$0xf]
    %v908 = vld [vmem:[#allocation8 + $0x304] sm:$0xf]
    %v909 = vld [vmem:[#allocation8 + $0x308] sm:$0xf]
    %v910 = vld [vmem:[#allocation8 + $0x30c] sm:$0xf]
    %v911 = vld [vmem:[#allocation8 + $0x310] sm:$0xf]
    %v912 = vld [vmem:[#allocation8 + $0x314] sm:$0xf]
    %v913 = vld [vmem:[#allocation8 + $0x318] sm:$0xf]
    %v914 = vld [vmem:[#allocation8 + $0x31c] sm:$0xf]
    %v915 = vld [vmem:[#allocation8 + $0x320] sm:$0xf]
    %v916 = vld [vmem:[#allocation8 + $0x324] sm:$0xf]
    %v917 = vld [vmem:[#allocation8 + $0x328] sm:$0xf]
    %v918 = vld [vmem:[#allocation8 + $0x32c] sm:$0xf]
    %v919 = vld [vmem:[#allocation8 + $0x330] sm:$0xf]
    %v920 = vld [vmem:[#allocation8 + $0x334] sm:$0xf]
    %v921 = vld [vmem:[#allocation8 + $0x338] sm:$0xf]
    %v922 = vld [vmem:[#allocation8 + $0x33c] sm:$0xf]
    %v923 = vld [vmem:[#allocation8 + $0x340] sm:$0xf]
    %v924 = vld [vmem:[#allocation8 + $0x344] sm:$0xf]
    %v925 = vld [vmem:[#allocation8 + $0x348] sm:$0xf]
    %v926 = vld [vmem:[#allocation8 + $0x34c] sm:$0xf]
    %v927 = vld [vmem:[#allocation8 + $0x350] sm:$0xf]
    %v928 = vld [vmem:[#allocation8 + $0x354] sm:$0xf]
    %v929 = vld [vmem:[#allocation8 + $0x358] sm:$0xf]
    %v930 = vld [vmem:[#allocation8 + $0x35c] sm:$0xf]
    %v931 = vld [vmem:[#allocation8 + $0x360] sm:$0xf]
    %v932 = vld [vmem:[#allocation8 + $0x364] sm:$0xf]
    %v933 = vld [vmem:[#allocation8 + $0x368] sm:$0xf]
    %v934 = vld [vmem:[#allocation8 + $0x36c] sm:$0xf]
    %v935 = vld [vmem:[#allocation8 + $0x370] sm:$0xf]
    %v936 = vld [vmem:[#allocation8 + $0x374] sm:$0xf]
    %v937 = vld [vmem:[#allocation8 + $0x378] sm:$0xf]
    %v938 = vld [vmem:[#allocation8 + $0x37c] sm:$0xf]
    %v939 = vld [vmem:[#allocation8 + $0x380] sm:$0xf]
    %v940 = vld [vmem:[#allocation8 + $0x384] sm:$0xf]
    %v941 = vld [vmem:[#allocation8 + $0x388] sm:$0xf]
    %v942 = vld [vmem:[#allocation8 + $0x38c] sm:$0xf]
    %v943 = vld [vmem:[#allocation8 + $0x390] sm:$0xf]
    %v944 = vld [vmem:[#allocation8 + $0x394] sm:$0xf]
    %v945 = vld [vmem:[#allocation8 + $0x398] sm:$0xf]
    %v946 = vld [vmem:[#allocation8 + $0x39c] sm:$0xf]
    %v947 = vld [vmem:[#allocation8 + $0x3a0] sm:$0xf]
    %v948 = vld [vmem:[#allocation8 + $0x3a4] sm:$0xf]
    %v949 = vld [vmem:[#allocation8 + $0x3a8] sm:$0xf]
    %v950 = vld [vmem:[#allocation8 + $0x3ac] sm:$0xf]
    %v951 = vld [vmem:[#allocation8 + $0x3b0] sm:$0xf]
    %v952 = vld [vmem:[#allocation8 + $0x3b4] sm:$0xf]
    %v953 = vld [vmem:[#allocation8 + $0x3b8] sm:$0xf]
    %v954 = vld [vmem:[#allocation8 + $0x3bc] sm:$0xf]
    %v955 = vld [vmem:[#allocation8 + $0x3c0] sm:$0xf]
    %v956 = vld [vmem:[#allocation8 + $0x3c4] sm:$0xf]
    %v957 = vld [vmem:[#allocation8 + $0x3c8] sm:$0xf]
    %v958 = vld [vmem:[#allocation8 + $0x3cc] sm:$0xf]
    %v959 = vld [vmem:[#allocation8 + $0x3d0] sm:$0xf]
    %v960 = vld [vmem:[#allocation8 + $0x3d4] sm:$0xf]
    %v961 = vld [vmem:[#allocation8 + $0x3d8] sm:$0xf]
    %v962 = vld [vmem:[#allocation8 + $0x3dc] sm:$0xf]
    %v963 = vld [vmem:[#allocation8 + $0x3e0] sm:$0xf]
    %v964 = vld [vmem:[#allocation8 + $0x3e4] sm:$0xf]
    %v965 = vld [vmem:[#allocation8 + $0x3e8] sm:$0xf]
    %v966 = vld [vmem:[#allocation8 + $0x3ec] sm:$0xf]
    %v967 = vld [vmem:[#allocation8 + $0x3f0] sm:$0xf]
    %v968 = vld [vmem:[#allocation8 + $0x3f4] sm:$0xf]
    %v969 = vld [vmem:[#allocation8 + $0x3f8] sm:$0xf]
    %v970 = vld [vmem:[#allocation8 + $0x3fc] sm:$0xf]
    %v971 = vld [vmem:[%s4] sm:$0x1]
    %v973 = vlaneseq
    %v974 = vshrl.u32 %v973, 7
    %v975 = vsub.s32 0, %v974
    %v976 = vrot.slane %v971, %v975
    %v1234 = vunpack.c.l.b16 %v715
    %v1235 = vunpack.c.l.b16 %v716
    %v1236 = vunpack.c.l.b16 %v717
    %v1237 = vunpack.c.l.b16 %v718
    %v1238 = vunpack.c.l.b16 %v719
    %v1239 = vunpack.c.l.b16 %v720
    %v1240 = vunpack.c.l.b16 %v721
    %v1241 = vunpack.c.l.b16 %v722
    %v1242 = vunpack.c.l.b16 %v723
    %v1243 = vunpack.c.l.b16 %v724
    %v1244 = vunpack.c.l.b16 %v725
    %v1245 = vunpack.c.l.b16 %v726
    %v1246 = vunpack.c.l.b16 %v727
    %v1247 = vunpack.c.l.b16 %v728
    %v1248 = vunpack.c.l.b16 %v729
    %v1249 = vunpack.c.l.b16 %v730
    %v1250 = vunpack.c.l.b16 %v731
    %v1251 = vunpack.c.l.b16 %v732
    %v1252 = vunpack.c.l.b16 %v733
    %v1253 = vunpack.c.l.b16 %v734
    %v1254 = vunpack.c.l.b16 %v735
    %v1255 = vunpack.c.l.b16 %v736
    %v1256 = vunpack.c.l.b16 %v737
    %v1257 = vunpack.c.l.b16 %v738
    %v1258 = vunpack.c.l.b16 %v739
    %v1259 = vunpack.c.l.b16 %v740
    %v1260 = vunpack.c.l.b16 %v741
    %v1261 = vunpack.c.l.b16 %v742
    %v1262 = vunpack.c.l.b16 %v743
    %v1263 = vunpack.c.l.b16 %v744
    %v1264 = vunpack.c.l.b16 %v745
    %v1265 = vunpack.c.l.b16 %v746
    %v1266 = vunpack.c.l.b16 %v747
    %v1267 = vunpack.c.l.b16 %v748
    %v1268 = vunpack.c.l.b16 %v749
    %v1269 = vunpack.c.l.b16 %v750
    %v1270 = vunpack.c.l.b16 %v751
    %v1271 = vunpack.c.l.b16 %v752
    %v1272 = vunpack.c.l.b16 %v753
    %v1273 = vunpack.c.l.b16 %v754
    %v1274 = vunpack.c.l.b16 %v755
    %v1275 = vunpack.c.l.b16 %v756
    %v1276 = vunpack.c.l.b16 %v757
    %v1277 = vunpack.c.l.b16 %v758
    %v1278 = vunpack.c.l.b16 %v759
    %v1279 = vunpack.c.l.b16 %v760
    %v1280 = vunpack.c.l.b16 %v761
    %v1281 = vunpack.c.l.b16 %v762
    %v1282 = vunpack.c.l.b16 %v763
    %v1283 = vunpack.c.l.b16 %v764
    %v1284 = vunpack.c.l.b16 %v765
    %v1285 = vunpack.c.l.b16 %v766
    %v1286 = vunpack.c.l.b16 %v767
    %v1287 = vunpack.c.l.b16 %v768
    %v1288 = vunpack.c.l.b16 %v769
    %v1289 = vunpack.c.l.b16 %v770
    %v1290 = vunpack.c.l.b16 %v771
    %v1291 = vunpack.c.l.b16 %v772
    %v1292 = vunpack.c.l.b16 %v773
    %v1293 = vunpack.c.l.b16 %v774
    %v1294 = vunpack.c.l.b16 %v775
    %v1295 = vunpack.c.l.b16 %v776
    %v1296 = vunpack.c.l.b16 %v777
    %v1297 = vunpack.c.l.b16 %v778
    %v1298 = vunpack.c.l.b16 %v779
    %v1299 = vunpack.c.l.b16 %v780
    %v1300 = vunpack.c.l.b16 %v781
    %v1301 = vunpack.c.l.b16 %v782
    %v1302 = vunpack.c.l.b16 %v783
    %v1303 = vunpack.c.l.b16 %v784
    %v1304 = vunpack.c.l.b16 %v785
    %v1305 = vunpack.c.l.b16 %v786
    %v1306 = vunpack.c.l.b16 %v787
    %v1307 = vunpack.c.l.b16 %v788
    %v1308 = vunpack.c.l.b16 %v789
    %v1309 = vunpack.c.l.b16 %v790
    %v1310 = vunpack.c.l.b16 %v791
    %v1311 = vunpack.c.l.b16 %v792
    %v1312 = vunpack.c.l.b16 %v793
    %v1313 = vunpack.c.l.b16 %v794
    %v1314 = vunpack.c.l.b16 %v795
    %v1315 = vunpack.c.l.b16 %v796
    %v1316 = vunpack.c.l.b16 %v797
    %v1317 = vunpack.c.l.b16 %v798
    %v1318 = vunpack.c.l.b16 %v799
    %v1319 = vunpack.c.l.b16 %v800
    %v1320 = vunpack.c.l.b16 %v801
    %v1321 = vunpack.c.l.b16 %v802
    %v1322 = vunpack.c.l.b16 %v803
    %v1323 = vunpack.c.l.b16 %v804
    %v1324 = vunpack.c.l.b16 %v805
    %v1325 = vunpack.c.l.b16 %v806
    %v1326 = vunpack.c.l.b16 %v807
    %v1327 = vunpack.c.l.b16 %v808
    %v1328 = vunpack.c.l.b16 %v809
    %v1329 = vunpack.c.l.b16 %v810
    %v1330 = vunpack.c.l.b16 %v811
    %v1331 = vunpack.c.l.b16 %v812
    %v1332 = vunpack.c.l.b16 %v813
    %v1333 = vunpack.c.l.b16 %v814
    %v1334 = vunpack.c.l.b16 %v815
    %v1335 = vunpack.c.l.b16 %v816
    %v1336 = vunpack.c.l.b16 %v817
    %v1337 = vunpack.c.l.b16 %v818
    %v1338 = vunpack.c.l.b16 %v819
    %v1339 = vunpack.c.l.b16 %v820
    %v1340 = vunpack.c.l.b16 %v821
    %v1341 = vunpack.c.l.b16 %v822
    %v1342 = vunpack.c.l.b16 %v823
    %v1343 = vunpack.c.l.b16 %v824
    %v1344 = vunpack.c.l.b16 %v825
    %v1345 = vunpack.c.l.b16 %v826
    %v1346 = vunpack.c.l.b16 %v827
    %v1347 = vunpack.c.l.b16 %v828
    %v1348 = vunpack.c.l.b16 %v829
    %v1349 = vunpack.c.l.b16 %v830
    %v1350 = vunpack.c.l.b16 %v831
    %v1351 = vunpack.c.l.b16 %v832
    %v1352 = vunpack.c.l.b16 %v833
    %v1353 = vunpack.c.l.b16 %v834
    %v1354 = vunpack.c.l.b16 %v835
    %v1355 = vunpack.c.l.b16 %v836
    %v1356 = vunpack.c.l.b16 %v837
    %v1357 = vunpack.c.l.b16 %v838
    %v1358 = vunpack.c.l.b16 %v839
    %v1359 = vunpack.c.l.b16 %v840
    %v1360 = vunpack.c.l.b16 %v841
    %v1361 = vunpack.c.l.b16 %v842
    %v1362 = vunpack.c.l.b16 %v843
    %v1363 = vunpack.c.l.b16 %v844
    %v1364 = vunpack.c.l.b16 %v845
    %v1365 = vunpack.c.l.b16 %v846
    %v1366 = vunpack.c.l.b16 %v847
    %v1367 = vunpack.c.l.b16 %v848
    %v1368 = vunpack.c.l.b16 %v849
    %v1369 = vunpack.c.l.b16 %v850
    %v1370 = vunpack.c.l.b16 %v851
    %v1371 = vunpack.c.l.b16 %v852
    %v1372 = vunpack.c.l.b16 %v853
    %v1373 = vunpack.c.l.b16 %v854
    %v1374 = vunpack.c.l.b16 %v855
    %v1375 = vunpack.c.l.b16 %v856
    %v1376 = vunpack.c.l.b16 %v857
    %v1377 = vunpack.c.l.b16 %v858
    %v1378 = vunpack.c.l.b16 %v859
    %v1379 = vunpack.c.l.b16 %v860
    %v1380 = vunpack.c.l.b16 %v861
    %v1381 = vunpack.c.l.b16 %v862
    %v1382 = vunpack.c.l.b16 %v863
    %v1383 = vunpack.c.l.b16 %v864
    %v1384 = vunpack.c.l.b16 %v865
    %v1385 = vunpack.c.l.b16 %v866
    %v1386 = vunpack.c.l.b16 %v867
    %v1387 = vunpack.c.l.b16 %v868
    %v1388 = vunpack.c.l.b16 %v869
    %v1389 = vunpack.c.l.b16 %v870
    %v1390 = vunpack.c.l.b16 %v871
    %v1391 = vunpack.c.l.b16 %v872
    %v1392 = vunpack.c.l.b16 %v873
    %v1393 = vunpack.c.l.b16 %v874
    %v1394 = vunpack.c.l.b16 %v875
    %v1395 = vunpack.c.l.b16 %v876
    %v1396 = vunpack.c.l.b16 %v877
    %v1397 = vunpack.c.l.b16 %v878
    %v1398 = vunpack.c.l.b16 %v879
    %v1399 = vunpack.c.l.b16 %v880
    %v1400 = vunpack.c.l.b16 %v881
    %v1401 = vunpack.c.l.b16 %v882
    %v1402 = vunpack.c.l.b16 %v883
    %v1403 = vunpack.c.l.b16 %v884
    %v1404 = vunpack.c.l.b16 %v885
    %v1405 = vunpack.c.l.b16 %v886
    %v1406 = vunpack.c.l.b16 %v887
    %v1407 = vunpack.c.l.b16 %v888
    %v1408 = vunpack.c.l.b16 %v889
    %v1409 = vunpack.c.l.b16 %v890
    %v1410 = vunpack.c.l.b16 %v891
    %v1411 = vunpack.c.l.b16 %v892
    %v1412 = vunpack.c.l.b16 %v893
    %v1413 = vunpack.c.l.b16 %v894
    %v1414 = vunpack.c.l.b16 %v895
    %v1415 = vunpack.c.l.b16 %v896
    %v1416 = vunpack.c.l.b16 %v897
    %v1417 = vunpack.c.l.b16 %v898
    %v1418 = vunpack.c.l.b16 %v899
    %v1419 = vunpack.c.l.b16 %v900
    %v1420 = vunpack.c.l.b16 %v901
    %v1421 = vunpack.c.l.b16 %v902
    %v1422 = vunpack.c.l.b16 %v903
    %v1423 = vunpack.c.l.b16 %v904
    %v1424 = vunpack.c.l.b16 %v905
    %v1425 = vunpack.c.l.b16 %v906
    %v1426 = vunpack.c.l.b16 %v907
    %v1427 = vunpack.c.l.b16 %v908
    %v1428 = vunpack.c.l.b16 %v909
    %v1429 = vunpack.c.l.b16 %v910
    %v1430 = vunpack.c.l.b16 %v911
    %v1431 = vunpack.c.l.b16 %v912
    %v1432 = vunpack.c.l.b16 %v913
    %v1433 = vunpack.c.l.b16 %v914
    %v1434 = vunpack.c.l.b16 %v915
    %v1435 = vunpack.c.l.b16 %v916
    %v1436 = vunpack.c.l.b16 %v917
    %v1437 = vunpack.c.l.b16 %v918
    %v1438 = vunpack.c.l.b16 %v919
    %v1439 = vunpack.c.l.b16 %v920
    %v1440 = vunpack.c.l.b16 %v921
    %v1441 = vunpack.c.l.b16 %v922
    %v1442 = vunpack.c.l.b16 %v923
    %v1443 = vunpack.c.l.b16 %v924
    %v1444 = vunpack.c.l.b16 %v925
    %v1445 = vunpack.c.l.b16 %v926
    %v1446 = vunpack.c.l.b16 %v927
    %v1447 = vunpack.c.l.b16 %v928
    %v1448 = vunpack.c.l.b16 %v929
    %v1449 = vunpack.c.l.b16 %v930
    %v1450 = vunpack.c.l.b16 %v931
    %v1451 = vunpack.c.l.b16 %v932
    %v1452 = vunpack.c.l.b16 %v933
    %v1453 = vunpack.c.l.b16 %v934
    %v1454 = vunpack.c.l.b16 %v935
    %v1455 = vunpack.c.l.b16 %v936
    %v1456 = vunpack.c.l.b16 %v937
    %v1457 = vunpack.c.l.b16 %v938
    %v1458 = vunpack.c.l.b16 %v939
    %v1459 = vunpack.c.l.b16 %v940
    %v1460 = vunpack.c.l.b16 %v941
    %v1461 = vunpack.c.l.b16 %v942
    %v1462 = vunpack.c.l.b16 %v943
    %v1463 = vunpack.c.l.b16 %v944
    %v1464 = vunpack.c.l.b16 %v945
    %v1465 = vunpack.c.l.b16 %v946
    %v1466 = vunpack.c.l.b16 %v947
    %v1467 = vunpack.c.l.b16 %v948
    %v1468 = vunpack.c.l.b16 %v949
    %v1469 = vunpack.c.l.b16 %v950
    %v1470 = vunpack.c.l.b16 %v951
    %v1471 = vunpack.c.l.b16 %v952
    %v1472 = vunpack.c.l.b16 %v953
    %v1473 = vunpack.c.l.b16 %v954
    %v1474 = vunpack.c.l.b16 %v955
    %v1475 = vunpack.c.l.b16 %v956
    %v1476 = vunpack.c.l.b16 %v957
    %v1477 = vunpack.c.l.b16 %v958
    %v1478 = vunpack.c.l.b16 %v959
    %v1479 = vunpack.c.l.b16 %v960
    %v1480 = vunpack.c.l.b16 %v961
    %v1481 = vunpack.c.l.b16 %v962
    %v1482 = vunpack.c.l.b16 %v963
    %v1483 = vunpack.c.l.b16 %v964
    %v1484 = vunpack.c.l.b16 %v965
    %v1485 = vunpack.c.l.b16 %v966
    %v1486 = vunpack.c.l.b16 %v967
    %v1487 = vunpack.c.l.b16 %v968
    %v1488 = vunpack.c.l.b16 %v969
    %v1489 = vunpack.c.l.b16 %v970
    %v1490 = vpack.c.b16 %v1235, %v1234
    %v1491 = vpack.c.b16 %v1237, %v1236
    %v1492 = vpack.c.b16 %v1239, %v1238
    %v1493 = vpack.c.b16 %v1241, %v1240
    %v1494 = vpack.c.b16 %v1243, %v1242
    %v1495 = vpack.c.b16 %v1245, %v1244
    %v1496 = vpack.c.b16 %v1247, %v1246
    %v1497 = vpack.c.b16 %v1249, %v1248
    %v1498 = vpack.c.b16 %v1251, %v1250
    %v1499 = vpack.c.b16 %v1253, %v1252
    %v1500 = vpack.c.b16 %v1255, %v1254
    %v1501 = vpack.c.b16 %v1257, %v1256
    %v1502 = vpack.c.b16 %v1259, %v1258
    %v1503 = vpack.c.b16 %v1261, %v1260
    %v1504 = vpack.c.b16 %v1263, %v1262
    %v1505 = vpack.c.b16 %v1265, %v1264
    %v1506 = vpack.c.b16 %v1267, %v1266
    %v1507 = vpack.c.b16 %v1269, %v1268
    %v1508 = vpack.c.b16 %v1271, %v1270
    %v1509 = vpack.c.b16 %v1273, %v1272
    %v1510 = vpack.c.b16 %v1275, %v1274
    %v1511 = vpack.c.b16 %v1277, %v1276
    %v1512 = vpack.c.b16 %v1279, %v1278
    %v1513 = vpack.c.b16 %v1281, %v1280
    %v1514 = vpack.c.b16 %v1283, %v1282
    %v1515 = vpack.c.b16 %v1285, %v1284
    %v1516 = vpack.c.b16 %v1287, %v1286
    %v1517 = vpack.c.b16 %v1289, %v1288
    %v1518 = vpack.c.b16 %v1291, %v1290
    %v1519 = vpack.c.b16 %v1293, %v1292
    %v1520 = vpack.c.b16 %v1295, %v1294
    %v1521 = vpack.c.b16 %v1297, %v1296
    %v1522 = vpack.c.b16 %v1299, %v1298
    %v1523 = vpack.c.b16 %v1301, %v1300
    %v1524 = vpack.c.b16 %v1303, %v1302
    %v1525 = vpack.c.b16 %v1305, %v1304
    %v1526 = vpack.c.b16 %v1307, %v1306
    %v1527 = vpack.c.b16 %v1309, %v1308
    %v1528 = vpack.c.b16 %v1311, %v1310
    %v1529 = vpack.c.b16 %v1313, %v1312
    %v1530 = vpack.c.b16 %v1315, %v1314
    %v1531 = vpack.c.b16 %v1317, %v1316
    %v1532 = vpack.c.b16 %v1319, %v1318
    %v1533 = vpack.c.b16 %v1321, %v1320
    %v1534 = vpack.c.b16 %v1323, %v1322
    %v1535 = vpack.c.b16 %v1325, %v1324
    %v1536 = vpack.c.b16 %v1327, %v1326
    %v1537 = vpack.c.b16 %v1329, %v1328
    %v1538 = vpack.c.b16 %v1331, %v1330
    %v1539 = vpack.c.b16 %v1333, %v1332
    %v1540 = vpack.c.b16 %v1335, %v1334
    %v1541 = vpack.c.b16 %v1337, %v1336
    %v1542 = vpack.c.b16 %v1339, %v1338
    %v1543 = vpack.c.b16 %v1341, %v1340
    %v1544 = vpack.c.b16 %v1343, %v1342
    %v1545 = vpack.c.b16 %v1345, %v1344
    %v1546 = vpack.c.b16 %v1347, %v1346
    %v1547 = vpack.c.b16 %v1349, %v1348
    %v1548 = vpack.c.b16 %v1351, %v1350
    %v1549 = vpack.c.b16 %v1353, %v1352
    %v1550 = vpack.c.b16 %v1355, %v1354
    %v1551 = vpack.c.b16 %v1357, %v1356
    %v1552 = vpack.c.b16 %v1359, %v1358
    %v1553 = vpack.c.b16 %v1361, %v1360
    %v1554 = vpack.c.b16 %v1363, %v1362
    %v1555 = vpack.c.b16 %v1365, %v1364
    %v1556 = vpack.c.b16 %v1367, %v1366
    %v1557 = vpack.c.b16 %v1369, %v1368
    %v1558 = vpack.c.b16 %v1371, %v1370
    %v1559 = vpack.c.b16 %v1373, %v1372
    %v1560 = vpack.c.b16 %v1375, %v1374
    %v1561 = vpack.c.b16 %v1377, %v1376
    %v1562 = vpack.c.b16 %v1379, %v1378
    %v1563 = vpack.c.b16 %v1381, %v1380
    %v1564 = vpack.c.b16 %v1383, %v1382
    %v1565 = vpack.c.b16 %v1385, %v1384
    %v1566 = vpack.c.b16 %v1387, %v1386
    %v1567 = vpack.c.b16 %v1389, %v1388
    %v1568 = vpack.c.b16 %v1391, %v1390
    %v1569 = vpack.c.b16 %v1393, %v1392
    %v1570 = vpack.c.b16 %v1395, %v1394
    %v1571 = vpack.c.b16 %v1397, %v1396
    %v1572 = vpack.c.b16 %v1399, %v1398
    %v1573 = vpack.c.b16 %v1401, %v1400
    %v1574 = vpack.c.b16 %v1403, %v1402
    %v1575 = vpack.c.b16 %v1405, %v1404
    %v1576 = vpack.c.b16 %v1407, %v1406
    %v1577 = vpack.c.b16 %v1409, %v1408
    %v1578 = vpack.c.b16 %v1411, %v1410
    %v1579 = vpack.c.b16 %v1413, %v1412
    %v1580 = vpack.c.b16 %v1415, %v1414
    %v1581 = vpack.c.b16 %v1417, %v1416
    %v1582 = vpack.c.b16 %v1419, %v1418
    %v1583 = vpack.c.b16 %v1421, %v1420
    %v1584 = vpack.c.b16 %v1423, %v1422
    %v1585 = vpack.c.b16 %v1425, %v1424
    %v1586 = vpack.c.b16 %v1427, %v1426
    %v1587 = vpack.c.b16 %v1429, %v1428
    %v1588 = vpack.c.b16 %v1431, %v1430
    %v1589 = vpack.c.b16 %v1433, %v1432
    %v1590 = vpack.c.b16 %v1435, %v1434
    %v1591 = vpack.c.b16 %v1437, %v1436
    %v1592 = vpack.c.b16 %v1439, %v1438
    %v1593 = vpack.c.b16 %v1441, %v1440
    %v1594 = vpack.c.b16 %v1443, %v1442
    %v1595 = vpack.c.b16 %v1445, %v1444
    %v1596 = vpack.c.b16 %v1447, %v1446
    %v1597 = vpack.c.b16 %v1449, %v1448
    %v1598 = vpack.c.b16 %v1451, %v1450
    %v1599 = vpack.c.b16 %v1453, %v1452
    %v1600 = vpack.c.b16 %v1455, %v1454
    %v1601 = vpack.c.b16 %v1457, %v1456
    %v1602 = vpack.c.b16 %v1459, %v1458
    %v1603 = vpack.c.b16 %v1461, %v1460
    %v1604 = vpack.c.b16 %v1463, %v1462
    %v1605 = vpack.c.b16 %v1465, %v1464
    %v1606 = vpack.c.b16 %v1467, %v1466
    %v1607 = vpack.c.b16 %v1469, %v1468
    %v1608 = vpack.c.b16 %v1471, %v1470
    %v1609 = vpack.c.b16 %v1473, %v1472
    %v1610 = vpack.c.b16 %v1475, %v1474
    %v1611 = vpack.c.b16 %v1477, %v1476
    %v1612 = vpack.c.b16 %v1479, %v1478
    %v1613 = vpack.c.b16 %v1481, %v1480
    %v1614 = vpack.c.b16 %v1483, %v1482
    %v1615 = vpack.c.b16 %v1485, %v1484
    %v1616 = vpack.c.b16 %v1487, %v1486
    %v1617 = vpack.c.b16 %v1489, %v1488
    %1746 = vmatprep.subr.bf16.mxu0 0
    %1747 = vmatpush1.bf16.msra.mxu0 %v1490
    %1748 = vmatprep.subr.bf16.mxu0 0
    %1749 = vmatpush1.bf16.msra.mxu0 %v1491
    %1750 = vmatprep.subr.bf16.mxu0 0
    %1751 = vmatpush1.bf16.msra.mxu0 %v1492
    %1752 = vmatprep.subr.bf16.mxu0 0
    %1753 = vmatpush1.bf16.msra.mxu0 %v1493
    %1754 = vmatprep.subr.bf16.mxu0 0
    %1755 = vmatpush1.bf16.msra.mxu0 %v1494
    %1756 = vmatprep.subr.bf16.mxu0 0
    %1757 = vmatpush1.bf16.msra.mxu0 %v1495
    %1758 = vmatprep.subr.bf16.mxu0 0
    %1759 = vmatpush1.bf16.msra.mxu0 %v1496
    %1760 = vmatprep.subr.bf16.mxu0 0
    %1761 = vmatpush1.bf16.msra.mxu0 %v1497
    %1762 = vmatprep.subr.bf16.mxu0 0
    %1763 = vmatpush1.bf16.msra.mxu0 %v1498
    %1764 = vmatprep.subr.bf16.mxu0 0
    %1765 = vmatpush1.bf16.msra.mxu0 %v1499
    %1766 = vmatprep.subr.bf16.mxu0 0
    %1767 = vmatpush1.bf16.msra.mxu0 %v1500
    %1768 = vmatprep.subr.bf16.mxu0 0
    %1769 = vmatpush1.bf16.msra.mxu0 %v1501
    %1770 = vmatprep.subr.bf16.mxu0 0
    %1771 = vmatpush1.bf16.msra.mxu0 %v1502
    %1772 = vmatprep.subr.bf16.mxu0 0
    %1773 = vmatpush1.bf16.msra.mxu0 %v1503
    %1774 = vmatprep.subr.bf16.mxu0 0
    %1775 = vmatpush1.bf16.msra.mxu0 %v1504
    %1776 = vmatprep.subr.bf16.mxu0 0
    %1777 = vmatpush1.bf16.msra.mxu0 %v1505
    %1778 = vmatprep.mubr.bf16.mxu0 %v700
    %1779 = vmatmul.mubr.bf16.gmra.mrb[0].mxu0 %v699
    %v1780 = vpop.f32.mrb[0].mxu0
    %v1781 = vadd.f32 %v976, %v1780
    %v1782 = vpop.f32.mrb[0].mxu0
    %v1783 = vpop.f32.mrb[0].mxu0
    %v1784 = vpop.f32.mrb[0].mxu0
    %1785 = vdwg.mxu0
    %1786 = vmatprep.subr.bf16.mxu0 0
    %1787 = vmatpush1.bf16.msra.mxu0 %v1506
    %1788 = vmatprep.subr.bf16.mxu0 0
    %1789 = vmatpush1.bf16.msra.mxu0 %v1507
    %1790 = vmatprep.subr.bf16.mxu0 0
    %1791 = vmatpush1.bf16.msra.mxu0 %v1508
    %1792 = vmatprep.subr.bf16.mxu0 0
    %1793 = vmatpush1.bf16.msra.mxu0 %v1509
    %1794 = vmatprep.subr.bf16.mxu0 0
    %1795 = vmatpush1.bf16.msra.mxu0 %v1510
    %1796 = vmatprep.subr.bf16.mxu0 0
    %1797 = vmatpush1.bf16.msra.mxu0 %v1511
    %1798 = vmatprep.subr.bf16.mxu0 0
    %1799 = vmatpush1.bf16.msra.mxu0 %v1512
    %1800 = vmatprep.subr.bf16.mxu0 0
    %1801 = vmatpush1.bf16.msra.mxu0 %v1513
    %1802 = vmatprep.subr.bf16.mxu0 0
    %1803 = vmatpush1.bf16.msra.mxu0 %v1514
    %1804 = vmatprep.subr.bf16.mxu0 0
    %1805 = vmatpush1.bf16.msra.mxu0 %v1515
    %1806 = vmatprep.subr.bf16.mxu0 0
    %1807 = vmatpush1.bf16.msra.mxu0 %v1516
    %1808 = vmatprep.subr.bf16.mxu0 0
    %1809 = vmatpush1.bf16.msra.mxu0 %v1517
    %1810 = vmatprep.subr.bf16.mxu0 0
    %1811 = vmatpush1.bf16.msra.mxu0 %v1518
    %1812 = vmatprep.subr.bf16.mxu0 0
    %1813 = vmatpush1.bf16.msra.mxu0 %v1519
    %1814 = vmatprep.subr.bf16.mxu0 0
    %1815 = vmatpush1.bf16.msra.mxu0 %v1520
    %1816 = vmatprep.subr.bf16.mxu0 0
    %1817 = vmatpush1.bf16.msra.mxu0 %v1521
    %1818 = vmatprep.mubr.bf16.mxu0 %v702
    %1819 = vmatmul.mubr.bf16.gmra.mrb[0].mxu0 %v701
    %v1820 = vpop.f32.mrb[0].mxu0
    %v1821 = vadd.f32 %v1781, %v1820
    %v1822 = vpop.f32.mrb[0].mxu0
    %v1823 = vpop.f32.mrb[0].mxu0
    %v1824 = vpop.f32.mrb[0].mxu0
    %1825 = vdwg.mxu0
    %1826 = vmatprep.subr.bf16.mxu0 0
    %1827 = vmatpush1.bf16.msra.mxu0 %v1522
    %1828 = vmatprep.subr.bf16.mxu0 0
    %1829 = vmatpush1.bf16.msra.mxu0 %v1523
    %1830 = vmatprep.subr.bf16.mxu0 0
    %1831 = vmatpush1.bf16.msra.mxu0 %v1524
    %1832 = vmatprep.subr.bf16.mxu0 0
    %1833 = vmatpush1.bf16.msra.mxu0 %v1525
    %1834 = vmatprep.subr.bf16.mxu0 0
    %1835 = vmatpush1.bf16.msra.mxu0 %v1526
    %1836 = vmatprep.subr.bf16.mxu0 0
    %1837 = vmatpush1.bf16.msra.mxu0 %v1527
    %1838 = vmatprep.subr.bf16.mxu0 0
    %1839 = vmatpush1.bf16.msra.mxu0 %v1528
    %1840 = vmatprep.subr.bf16.mxu0 0
    %1841 = vmatpush1.bf16.msra.mxu0 %v1529
    %1842 = vmatprep.subr.bf16.mxu0 0
    %1843 = vmatpush1.bf16.msra.mxu0 %v1530
    %1844 = vmatprep.subr.bf16.mxu0 0
    %1845 = vmatpush1.bf16.msra.mxu0 %v1531
    %1846 = vmatprep.subr.bf16.mxu0 0
    %1847 = vmatpush1.bf16.msra.mxu0 %v1532
    %1848 = vmatprep.subr.bf16.mxu0 0
    %1849 = vmatpush1.bf16.msra.mxu0 %v1533
    %1850 = vmatprep.subr.bf16.mxu0 0
    %1851 = vmatpush1.bf16.msra.mxu0 %v1534
    %1852 = vmatprep.subr.bf16.mxu0 0
    %1853 = vmatpush1.bf16.msra.mxu0 %v1535
    %1854 = vmatprep.subr.bf16.mxu0 0
    %1855 = vmatpush1.bf16.msra.mxu0 %v1536
    %1856 = vmatprep.subr.bf16.mxu0 0
    %1857 = vmatpush1.bf16.msra.mxu0 %v1537
    %1858 = vmatprep.mubr.bf16.mxu0 %v704
    %1859 = vmatmul.mubr.bf16.gmra.mrb[0].mxu0 %v703
    %v1860 = vpop.f32.mrb[0].mxu0
    %v1861 = vadd.f32 %v1821, %v1860
    %v1862 = vpop.f32.mrb[0].mxu0
    %v1863 = vpop.f32.mrb[0].mxu0
    %v1864 = vpop.f32.mrb[0].mxu0
    %1865 = vdwg.mxu0
    %1866 = vmatprep.subr.bf16.mxu0 0
    %1867 = vmatpush1.bf16.msra.mxu0 %v1538
    %1868 = vmatprep.subr.bf16.mxu0 0
    %1869 = vmatpush1.bf16.msra.mxu0 %v1539
    %1870 = vmatprep.subr.bf16.mxu0 0
    %1871 = vmatpush1.bf16.msra.mxu0 %v1540
    %1872 = vmatprep.subr.bf16.mxu0 0
    %1873 = vmatpush1.bf16.msra.mxu0 %v1541
    %1874 = vmatprep.subr.bf16.mxu0 0
    %1875 = vmatpush1.bf16.msra.mxu0 %v1542
    %1876 = vmatprep.subr.bf16.mxu0 0
    %1877 = vmatpush1.bf16.msra.mxu0 %v1543
    %1878 = vmatprep.subr.bf16.mxu0 0
    %1879 = vmatpush1.bf16.msra.mxu0 %v1544
    %1880 = vmatprep.subr.bf16.mxu0 0
    %1881 = vmatpush1.bf16.msra.mxu0 %v1545
    %1882 = vmatprep.subr.bf16.mxu0 0
    %1883 = vmatpush1.bf16.msra.mxu0 %v1546
    %1884 = vmatprep.subr.bf16.mxu0 0
    %1885 = vmatpush1.bf16.msra.mxu0 %v1547
    %1886 = vmatprep.subr.bf16.mxu0 0
    %1887 = vmatpush1.bf16.msra.mxu0 %v1548
    %1888 = vmatprep.subr.bf16.mxu0 0
    %1889 = vmatpush1.bf16.msra.mxu0 %v1549
    %1890 = vmatprep.subr.bf16.mxu0 0
    %1891 = vmatpush1.bf16.msra.mxu0 %v1550
    %1892 = vmatprep.subr.bf16.mxu0 0
    %1893 = vmatpush1.bf16.msra.mxu0 %v1551
    %1894 = vmatprep.subr.bf16.mxu0 0
    %1895 = vmatpush1.bf16.msra.mxu0 %v1552
    %1896 = vmatprep.subr.bf16.mxu0 0
    %1897 = vmatpush1.bf16.msra.mxu0 %v1553
    %1898 = vmatprep.mubr.bf16.mxu0 %v706
    %1899 = vmatmul.mubr.bf16.gmra.mrb[0].mxu0 %v705
    %v1900 = vpop.f32.mrb[0].mxu0
    %v1901 = vadd.f32 %v1861, %v1900
    %v1902 = vpop.f32.mrb[0].mxu0
    %v1903 = vpop.f32.mrb[0].mxu0
    %v1904 = vpop.f32.mrb[0].mxu0
    %1905 = vdwg.mxu0
    %1906 = vmatprep.subr.bf16.mxu0 0
    %1907 = vmatpush1.bf16.msra.mxu0 %v1554
    %1908 = vmatprep.subr.bf16.mxu0 0
    %1909 = vmatpush1.bf16.msra.mxu0 %v1555
    %1910 = vmatprep.subr.bf16.mxu0 0
    %1911 = vmatpush1.bf16.msra.mxu0 %v1556
    %1912 = vmatprep.subr.bf16.mxu0 0
    %1913 = vmatpush1.bf16.msra.mxu0 %v1557
    %1914 = vmatprep.subr.bf16.mxu0 0
    %1915 = vmatpush1.bf16.msra.mxu0 %v1558
    %1916 = vmatprep.subr.bf16.mxu0 0
    %1917 = vmatpush1.bf16.msra.mxu0 %v1559
    %1918 = vmatprep.subr.bf16.mxu0 0
    %1919 = vmatpush1.bf16.msra.mxu0 %v1560
    %1920 = vmatprep.subr.bf16.mxu0 0
    %1921 = vmatpush1.bf16.msra.mxu0 %v1561
    %1922 = vmatprep.subr.bf16.mxu0 0
    %1923 = vmatpush1.bf16.msra.mxu0 %v1562
    %1924 = vmatprep.subr.bf16.mxu0 0
    %1925 = vmatpush1.bf16.msra.mxu0 %v1563
    %1926 = vmatprep.subr.bf16.mxu0 0
    %1927 = vmatpush1.bf16.msra.mxu0 %v1564
    %1928 = vmatprep.subr.bf16.mxu0 0
    %1929 = vmatpush1.bf16.msra.mxu0 %v1565
    %1930 = vmatprep.subr.bf16.mxu0 0
    %1931 = vmatpush1.bf16.msra.mxu0 %v1566
    %1932 = vmatprep.subr.bf16.mxu0 0
    %1933 = vmatpush1.bf16.msra.mxu0 %v1567
    %1934 = vmatprep.subr.bf16.mxu0 0
    %1935 = vmatpush1.bf16.msra.mxu0 %v1568
    %1936 = vmatprep.subr.bf16.mxu0 0
    %1937 = vmatpush1.bf16.msra.mxu0 %v1569
    %1938 = vmatprep.mubr.bf16.mxu0 %v708
    %1939 = vmatmul.mubr.bf16.gmra.mrb[0].mxu0 %v707
    %v1940 = vpop.f32.mrb[0].mxu0
    %v1941 = vadd.f32 %v1901, %v1940
    %v1942 = vpop.f32.mrb[0].mxu0
    %v1943 = vpop.f32.mrb[0].mxu0
    %v1944 = vpop.f32.mrb[0].mxu0
    %1945 = vdwg.mxu0
    %1946 = vmatprep.subr.bf16.mxu0 0
    %1947 = vmatpush1.bf16.msra.mxu0 %v1570
    %1948 = vmatprep.subr.bf16.mxu0 0
    %1949 = vmatpush1.bf16.msra.mxu0 %v1571
    %1950 = vmatprep.subr.bf16.mxu0 0
    %1951 = vmatpush1.bf16.msra.mxu0 %v1572
    %1952 = vmatprep.subr.bf16.mxu0 0
    %1953 = vmatpush1.bf16.msra.mxu0 %v1573
    %1954 = vmatprep.subr.bf16.mxu0 0
    %1955 = vmatpush1.bf16.msra.mxu0 %v1574
    %1956 = vmatprep.subr.bf16.mxu0 0
    %1957 = vmatpush1.bf16.msra.mxu0 %v1575
    %1958 = vmatprep.subr.bf16.mxu0 0
    %1959 = vmatpush1.bf16.msra.mxu0 %v1576
    %1960 = vmatprep.subr.bf16.mxu0 0
    %1961 = vmatpush1.bf16.msra.mxu0 %v1577
    %1962 = vmatprep.subr.bf16.mxu0 0
    %1963 = vmatpush1.bf16.msra.mxu0 %v1578
    %1964 = vmatprep.subr.bf16.mxu0 0
    %1965 = vmatpush1.bf16.msra.mxu0 %v1579
    %1966 = vmatprep.subr.bf16.mxu0 0
    %1967 = vmatpush1.bf16.msra.mxu0 %v1580
    %1968 = vmatprep.subr.bf16.mxu0 0
    %1969 = vmatpush1.bf16.msra.mxu0 %v1581
    %1970 = vmatprep.subr.bf16.mxu0 0
    %1971 = vmatpush1.bf16.msra.mxu0 %v1582
    %1972 = vmatprep.subr.bf16.mxu0 0
    %1973 = vmatpush1.bf16.msra.mxu0 %v1583
    %1974 = vmatprep.subr.bf16.mxu0 0
    %1975 = vmatpush1.bf16.msra.mxu0 %v1584
    %1976 = vmatprep.subr.bf16.mxu0 0
    %1977 = vmatpush1.bf16.msra.mxu0 %v1585
    %1978 = vmatprep.mubr.bf16.mxu0 %v710
    %1979 = vmatmul.mubr.bf16.gmra.mrb[0].mxu0 %v709
    %v1980 = vpop.f32.mrb[0].mxu0
    %v1981 = vadd.f32 %v1941, %v1980
    %v1982 = vpop.f32.mrb[0].mxu0
    %v1983 = vpop.f32.mrb[0].mxu0
    %v1984 = vpop.f32.mrb[0].mxu0
    %1985 = vdwg.mxu0
    %1986 = vmatprep.subr.bf16.mxu0 0
    %1987 = vmatpush1.bf16.msra.mxu0 %v1586
    %1988 = vmatprep.subr.bf16.mxu0 0
    %1989 = vmatpush1.bf16.msra.mxu0 %v1587
    %1990 = vmatprep.subr.bf16.mxu0 0
    %1991 = vmatpush1.bf16.msra.mxu0 %v1588
    %1992 = vmatprep.subr.bf16.mxu0 0
    %1993 = vmatpush1.bf16.msra.mxu0 %v1589
    %1994 = vmatprep.subr.bf16.mxu0 0
    %1995 = vmatpush1.bf16.msra.mxu0 %v1590
    %1996 = vmatprep.subr.bf16.mxu0 0
    %1997 = vmatpush1.bf16.msra.mxu0 %v1591
    %1998 = vmatprep.subr.bf16.mxu0 0
    %1999 = vmatpush1.bf16.msra.mxu0 %v1592
    %2000 = vmatprep.subr.bf16.mxu0 0
    %2001 = vmatpush1.bf16.msra.mxu0 %v1593
    %2002 = vmatprep.subr.bf16.mxu0 0
    %2003 = vmatpush1.bf16.msra.mxu0 %v1594
    %2004 = vmatprep.subr.bf16.mxu0 0
    %2005 = vmatpush1.bf16.msra.mxu0 %v1595
    %2006 = vmatprep.subr.bf16.mxu0 0
    %2007 = vmatpush1.bf16.msra.mxu0 %v1596
    %2008 = vmatprep.subr.bf16.mxu0 0
    %2009 = vmatpush1.bf16.msra.mxu0 %v1597
    %2010 = vmatprep.subr.bf16.mxu0 0
    %2011 = vmatpush1.bf16.msra.mxu0 %v1598
    %2012 = vmatprep.subr.bf16.mxu0 0
    %2013 = vmatpush1.bf16.msra.mxu0 %v1599
    %2014 = vmatprep.subr.bf16.mxu0 0
    %2015 = vmatpush1.bf16.msra.mxu0 %v1600
    %2016 = vmatprep.subr.bf16.mxu0 0
    %2017 = vmatpush1.bf16.msra.mxu0 %v1601
    %2018 = vmatprep.mubr.bf16.mxu0 %v712
    %2019 = vmatmul.mubr.bf16.gmra.mrb[0].mxu0 %v711
    %v2020 = vpop.f32.mrb[0].mxu0
    %v2021 = vadd.f32 %v1981, %v2020
    %v2022 = vpop.f32.mrb[0].mxu0
    %v2023 = vpop.f32.mrb[0].mxu0
    %v2024 = vpop.f32.mrb[0].mxu0
    %2025 = vdwg.mxu0
    %2026 = vmatprep.subr.bf16.mxu0 0
    %2027 = vmatpush1.bf16.msra.mxu0 %v1602
    %2028 = vmatprep.subr.bf16.mxu0 0
    %2029 = vmatpush1.bf16.msra.mxu0 %v1603
    %2030 = vmatprep.subr.bf16.mxu0 0
    %2031 = vmatpush1.bf16.msra.mxu0 %v1604
    %2032 = vmatprep.subr.bf16.mxu0 0
    %2033 = vmatpush1.bf16.msra.mxu0 %v1605
    %2034 = vmatprep.subr.bf16.mxu0 0
    %2035 = vmatpush1.bf16.msra.mxu0 %v1606
    %2036 = vmatprep.subr.bf16.mxu0 0
    %2037 = vmatpush1.bf16.msra.mxu0 %v1607
    %2038 = vmatprep.subr.bf16.mxu0 0
    %2039 = vmatpush1.bf16.msra.mxu0 %v1608
    %2040 = vmatprep.subr.bf16.mxu0 0
    %2041 = vmatpush1.bf16.msra.mxu0 %v1609
    %2042 = vmatprep.subr.bf16.mxu0 0
    %2043 = vmatpush1.bf16.msra.mxu0 %v1610
    %2044 = vmatprep.subr.bf16.mxu0 0
    %2045 = vmatpush1.bf16.msra.mxu0 %v1611
    %2046 = vmatprep.subr.bf16.mxu0 0
    %2047 = vmatpush1.bf16.msra.mxu0 %v1612
    %2048 = vmatprep.subr.bf16.mxu0 0
    %2049 = vmatpush1.bf16.msra.mxu0 %v1613
    %2050 = vmatprep.subr.bf16.mxu0 0
    %2051 = vmatpush1.bf16.msra.mxu0 %v1614
    %2052 = vmatprep.subr.bf16.mxu0 0
    %2053 = vmatpush1.bf16.msra.mxu0 %v1615
    %2054 = vmatprep.subr.bf16.mxu0 0
    %2055 = vmatpush1.bf16.msra.mxu0 %v1616
    %2056 = vmatprep.subr.bf16.mxu0 0
    %2057 = vmatpush1.bf16.msra.mxu0 %v1617
    %2058 = vmatprep.mubr.bf16.mxu0 %v714
    %2059 = vmatmul.mubr.bf16.gmra.mrb[0].mxu0 %v713
    %v2060 = vpop.f32.mrb[0].mxu0
    %v2061 = vadd.f32 %v2021, %v2060
    %v2062 = vpop.f32.mrb[0].mxu0
    %v2063 = vpop.f32.mrb[0].mxu0
    %v2064 = vpop.f32.mrb[0].mxu0
    %2065 = vdwg.mxu0
    %vm2066 = vcmask 1041408
    %v2067 = vsel %vm2066, %v2061, -inf
    %2068 = vmax.xlane.f32.xlu0 %v2067
    %v2069 = vpop.xlane.xlu0 %2068
    %v2070 = vsub.f32 %v2061, %v2069
    %v2071 = vmul.f32 %v2070, 1.442695
    %v2072 = vpow.pop %v2071
    %v2073 = vsel %vm2066, %v2072, 0.0
    %2074 = vadd.xlane.f32.xlu0 %v2073
    %v2075 = vpop.xlane.xlu0 %2074
    %v2076 = vlog2.pop %v2075
    %v2077 = vmul.f32 %v2076, 0.6931472
    %v2078 = vadd.f32 %v2077, %v2069
    %v2079 = vsub.f32 %v2061, %v2078
    %vm2080 = vcmask 140288
    %2081 = vst.msk [vmem:[#allocation10] sm:$0x3] %vm2080, %v2079
    // Predicated region
    $region38: #{tpu_custom_call.1} parent=1 // pred_check
      _
    $region39: #{tpu_custom_call.1} parent=1 // pred_check_branch
      %2083 = sbr.rel (0) target = $region41
    $region40: #{tpu_custom_call.1} parent=1 // pred_region
      %s2085 = ssub.s32 32, 32
      %2086 = vsyncadd [#allocation4], %s2085
      %s2088 = sshll.u32 [#allocation10], 4
      %s2089 = int_to_ptr.vmem [resolvable:$true] %s2088
      %2091 = dma.vmem_to_hbm [thread:$0]  %s2089, 32, %s5, [#allocation4]
    $region41: #{tpu_custom_call.1} parent=1 // pred_fallthru
      _
    // Predicated region
    $region42: #{tpu_custom_call.1} parent=1 // pred_check
      _
    $region43: #{tpu_custom_call.1} parent=1 // pred_check_branch
      %2093 = sbr.rel (0) target = $region45
    $region44: #{tpu_custom_call.1} parent=1 // pred_region
      %2094 = dma.done [#allocation4], 32
    $region45: #{tpu_custom_call.1} parent=1 // pred_fallthru
      _
    %2095 = vsyncpa [#allocation3], 1
    %2096 = vsyncpa [#allocation6], 1
    %2097 = vsyncpa [#allocation9], 1
    %2098 = vsyncpa [#allocation4], 1

// kernel: tpu_custom_call.1
$region0: #{tpu_custom_call.1}
  #allocation0 [shape = 'u32[]', space=smem, size = 0x4, offset = 0x4, fixed_abs, tag = 'smem constant byte address 0x4 - core index']
  #allocation1 [shape = 'u32[144,128]{1,0:T(1,128)}', space=vmem, size = 0x12000, scoped, tag = 'internal scratch']
  %s0 = inlined_call_operand.hbm [shape: f32[2,32], index: 0, kind: input, shape index: {}]
  %s1 = inlined_call_operand.hbm [shape: bf16[32,2048], index: 1, kind: input, shape index: {}]
  %s2 = inlined_call_operand.hbm [shape: f32[1,2048], index: 2, kind: input, shape index: {}]
  %s3 = inlined_call_operand.hbm [shape: bf16[2048,128], index: 3, kind: input, shape index: {}]
  %s4 = inlined_call_operand.vmem [shape: f32[1,128], index: 4, kind: input, shape index: {}]
  %s5 = inlined_call_operand.hbm [shape: f32[2,18], index: 5, kind: output, shape index: {}]
  %s6 = sld [smem:[#allocation0]]
  $region46: #{tpu_custom_call.1} parent=0
    _
  %s8 = ssub.s32 1, %s6
  %s9 = scalar_select 0, %s8, %s6
  $region1: #{tpu_custom_call.1} parent=0
    #allocation2 [shape = 'u8[1024]{0}', space=vmem, size = 0x400, scoped, tag = 'input window, operand 0, single buffered']
    #allocation3 [shape = 's32[1]{0}', space=sflag, size = 0x4, scoped, tag = 'scoped memory for tpu_custom_call.1']
    #allocation4 [shape = 's32[1]{0}', space=sflag, size = 0x4, scoped, tag = 'scoped memory for tpu_custom_call.1']
    #allocation5 [shape = 'u8[131072]{0}', space=vmem, size = 0x20000, scoped, tag = 'input window, operand 1, single buffered']
    #allocation6 [shape = 's32[1]{0}', space=sflag, size = 0x4, scoped, tag = 'scoped memory for tpu_custom_call.1']
    #allocation7 [shape = 'u8[8192]{0}', space=vmem, size = 0x2000, scoped, tag = 'input window, operand 2, single buffered']
    #allocation8 [shape = 'u8[524288]{0}', space=vmem, size = 0x80000, scoped, tag = 'input window, operand 3, single buffered']
    #allocation9 [shape = 's32[1]{0}', space=sflag, size = 0x4, scoped, tag = 'scoped memory for tpu_custom_call.1']
    #allocation10 [shape = 'u8[1024]{0}', space=vmem, size = 0x400, scoped, tag = 'output window, operand 0, single buffered']
    %10 = vsyncpa [#allocation3], 0
    %11 = vsyncpa [#allocation6], 0
    %12 = vsyncpa [#allocation9], 0
    %13 = vsyncpa [#allocation4], 0
    // Predicated region
    $region2: #{tpu_custom_call.1} parent=1 // pred_check
      _
    $region3: #{tpu_custom_call.1} parent=1 // pred_check_branch
      %15 = sbr.rel (0) target = $region5
    $region4: #{tpu_custom_call.1} parent=1 // pred_region
      %s17 = ssub.s32 32, 32
      %18 = vsyncadd [#allocation3], %s17
      %s20 = sshll.u32 [#allocation2], 4
      %s21 = int_to_ptr.vmem [resolvable:$true] %s20
      %23 = dma.hbm_to_vmem [thread:$0]  %s0, 32, %s21, [#allocation3]
    $region5: #{tpu_custom_call.1} parent=1 // pred_fallthru
      _
    // Predicated region
    $region6: #{tpu_custom_call.1} parent=1 // pred_check
      _
    $region7: #{tpu_custom_call.1} parent=1 // pred_check_branch
      %25 = sbr.rel (0) target = $region9
    $region8: #{tpu_custom_call.1} parent=1 // pred_region
      %s27 = ssub.s32 4096, 4096
      %28 = vsyncadd [#allocation6], %s27
      %s29 = sshll.u32 [#allocation5], 4
      %s30 = int_to_ptr.vmem [resolvable:$true] %s29
      %35 = dma.hbm_to_vmem [thread:$0]  %s1, 4096, %s30, [#allocation6], 1024, 1024, 64
    $region9: #{tpu_custom_call.1} parent=1 // pred_fallthru
      _
    // Predicated region
    $region10: #{tpu_custom_call.1} parent=1 // pred_check
      _
    $region11: #{tpu_custom_call.1} parent=1 // pred_check_branch
      %37 = sbr.rel (0) target = $region13
    $region12: #{tpu_custom_call.1} parent=1 // pred_region
      %s39 = ssub.s32 256, 256
      %40 = vsyncadd [#allocation6], %s39
      %s42 = sshll.u32 [#allocation7], 4
      %s43 = int_to_ptr.vmem [resolvable:$true] %s42
      %45 = dma.hbm_to_vmem [thread:$0]  %s2, 256, %s43, [#allocation6]
    $region13: #{tpu_custom_call.1} parent=1 // pred_fallthru
      _
    // Predicated region
    $region14: #{tpu_custom_call.1} parent=1 // pred_check
      _
    $region15: #{tpu_custom_call.1} parent=1 // pred_check_branch
      %47 = sbr.rel (0) target = $region17
    $region16: #{tpu_custom_call.1} parent=1 // pred_region
      %s49 = ssub.s32 16384, 16384
      %50 = vsyncadd [#allocation9], %s49
      %s51 = sshll.u32 [#allocation8], 4
      %s52 = int_to_ptr.vmem [resolvable:$true] %s51
      %57 = dma.hbm_to_vmem [thread:$0]  %s3, 16384, %s52, [#allocation9], 64, 64, 4
    $region17: #{tpu_custom_call.1} parent=1 // pred_fallthru
      _
    // Predicated region
    $region18: #{tpu_custom_call.1} parent=1 // pred_check
      _
    $region19: #{tpu_custom_call.1} parent=1 // pred_check_branch
      %59 = sbr.rel (0) target = $region21
    $region20: #{tpu_custom_call.1} parent=1 // pred_region
      _
    $region21: #{tpu_custom_call.1} parent=1 // pred_fallthru
      _
    // Predicated region
    $region22: #{tpu_custom_call.1} parent=1 // pred_check
      _
    $region23: #{tpu_custom_call.1} parent=1 // pred_check_branch
      %61 = sbr.rel (0) target = $region25
    $region24: #{tpu_custom_call.1} parent=1 // pred_region
      %62 = dma.done [#allocation3], 32
    $region25: #{tpu_custom_call.1} parent=1 // pred_fallthru
      _
    // Predicated region
    $region26: #{tpu_custom_call.1} parent=1 // pred_check
      _
    $region27: #{tpu_custom_call.1} parent=1 // pred_check_branch
      %64 = sbr.rel (0) target = $region29
    $region28: #{tpu_custom_call.1} parent=1 // pred_region
      %65 = dma.done [#allocation6], 4096
    $region29: #{tpu_custom_call.1} parent=1 // pred_fallthru
      _
    // Predicated region
    $region30: #{tpu_custom_call.1} parent=1 // pred_check
      _
    $region31: #{tpu_custom_call.1} parent=1 // pred_check_branch
      %67 = sbr.rel (0) target = $region33
    $region32: #{tpu_custom_call.1} parent=1 // pred_region
      %68 = dma.done [#allocation6], 256
    $region33: #{tpu_custom_call.1} parent=1 // pred_fallthru
      _
    // Predicated region
    $region34: #{tpu_custom_call.1} parent=1 // pred_check
      _
    $region35: #{tpu_custom_call.1} parent=1 // pred_check_branch
      %70 = sbr.rel (0) target = $region37
    $region36: #{tpu_custom_call.1} parent=1 // pred_region
      %71 = dma.done [#allocation9], 16384
    $region37: #{tpu_custom_call.1} parent=1 // pred_fallthru
      _
    %v73 = vld [vmem:[#allocation2] sm:$0x3]
    %v74 = vpack.c.bf16 %v73, %v73
    %v75 = vld [vmem:[#allocation5] sm:$0xff]
    %v76 = vld [vmem:[#allocation5 + $0x8] sm:$0xff]
    %v77 = vld [vmem:[#allocation5 + $0x10] sm:$0xff]
    %v78 = vld [vmem:[#allocation5 + $0x18] sm:$0xff]
    %v79 = vld [vmem:[#allocation5 + $0x20] sm:$0xff]
    %v80 = vld [vmem:[#allocation5 + $0x28] sm:$0xff]
    %v81 = vld [vmem:[#allocation5 + $0x30] sm:$0xff]
    %v82 = vld [vmem:[#allocation5 + $0x38] sm:$0xff]
    %v83 = vld [vmem:[#allocation5 + $0x40] sm:$0xff]
    %v84 = vld [vmem:[#allocation5 + $0x48] sm:$0xff]
    %v85 = vld [vmem:[#allocation5 + $0x50] sm:$0xff]
    %v86 = vld [vmem:[#allocation5 + $0x58] sm:$0xff]
    %v87 = vld [vmem:[#allocation5 + $0x60] sm:$0xff]
    %v88 = vld [vmem:[#allocation5 + $0x68] sm:$0xff]
    %v89 = vld [vmem:[#allocation5 + $0x70] sm:$0xff]
    %v90 = vld [vmem:[#allocation5 + $0x78] sm:$0xff]
    %v91 = vld [vmem:[#allocation5 + $0x80] sm:$0xff]
    %v92 = vld [vmem:[#allocation5 + $0x88] sm:$0xff]
    %v93 = vld [vmem:[#allocation5 + $0x90] sm:$0xff]
    %v94 = vld [vmem:[#allocation5 + $0x98] sm:$0xff]
    %v95 = vld [vmem:[#allocation5 + $0xa0] sm:$0xff]
    %v96 = vld [vmem:[#allocation5 + $0xa8] sm:$0xff]
    %v97 = vld [vmem:[#allocation5 + $0xb0] sm:$0xff]
    %v98 = vld [vmem:[#allocation5 + $0xb8] sm:$0xff]
    %v99 = vld [vmem:[#allocation5 + $0xc0] sm:$0xff]
    %v100 = vld [vmem:[#allocation5 + $0xc8] sm:$0xff]
    %v101 = vld [vmem:[#allocation5 + $0xd0] sm:$0xff]
    %v102 = vld [vmem:[#allocation5 + $0xd8] sm:$0xff]
    %v103 = vld [vmem:[#allocation5 + $0xe0] sm:$0xff]
    %v104 = vld [vmem:[#allocation5 + $0xe8] sm:$0xff]
    %v105 = vld [vmem:[#allocation5 + $0xf0] sm:$0xff]
    %v106 = vld [vmem:[#allocation5 + $0xf8] sm:$0xff]
    %v107 = vld [vmem:[#allocation7] sm:$0xff]
    %v108 = vld [vmem:[#allocation7 + $0x8] sm:$0xff]
    %v111 = vlaneseq
    %v112 = vshrl.u32 %v111, 7
    %v113 = vsub.s32 0, %v112
    %v114 = vrot.slane %v107, %v113
    %v115 = vlaneseq
    %v116 = vshrl.u32 %v115, 7
    %v117 = vsub.s32 1, %v116
    %v118 = vrot.slane %v107, %v117
    %v119 = vlaneseq
    %v120 = vshrl.u32 %v119, 7
    %v121 = vsub.s32 2, %v120
    %v122 = vrot.slane %v107, %v121
    %v123 = vlaneseq
    %v124 = vshrl.u32 %v123, 7
    %v125 = vsub.s32 3, %v124
    %v126 = vrot.slane %v107, %v125
    %v127 = vlaneseq
    %v128 = vshrl.u32 %v127, 7
    %v129 = vsub.s32 4, %v128
    %v130 = vrot.slane %v107, %v129
    %v131 = vlaneseq
    %v132 = vshrl.u32 %v131, 7
    %v133 = vsub.s32 5, %v132
    %v134 = vrot.slane %v107, %v133
    %v135 = vlaneseq
    %v136 = vshrl.u32 %v135, 7
    %v137 = vsub.s32 6, %v136
    %v138 = vrot.slane %v107, %v137
    %v139 = vlaneseq
    %v140 = vshrl.u32 %v139, 7
    %v141 = vsub.s32 7, %v140
    %v142 = vrot.slane %v107, %v141
    %v143 = vlaneseq
    %v144 = vshrl.u32 %v143, 7
    %v145 = vsub.s32 0, %v144
    %v146 = vrot.slane %v108, %v145
    %v147 = vlaneseq
    %v148 = vshrl.u32 %v147, 7
    %v149 = vsub.s32 1, %v148
    %v150 = vrot.slane %v108, %v149
    %v151 = vlaneseq
    %v152 = vshrl.u32 %v151, 7
    %v153 = vsub.s32 2, %v152
    %v154 = vrot.slane %v108, %v153
    %v155 = vlaneseq
    %v156 = vshrl.u32 %v155, 7
    %v157 = vsub.s32 3, %v156
    %v158 = vrot.slane %v108, %v157
    %v159 = vlaneseq
    %v160 = vshrl.u32 %v159, 7
    %v161 = vsub.s32 4, %v160
    %v162 = vrot.slane %v108, %v161
    %v163 = vlaneseq
    %v164 = vshrl.u32 %v163, 7
    %v165 = vsub.s32 5, %v164
    %v166 = vrot.slane %v108, %v165
    %v167 = vlaneseq
    %v168 = vshrl.u32 %v167, 7
    %v169 = vsub.s32 6, %v168
    %v170 = vrot.slane %v108, %v169
    %v171 = vlaneseq
    %v172 = vshrl.u32 %v171, 7
    %v173 = vsub.s32 7, %v172
    %v174 = vrot.slane %v108, %v173
    %v223 = vunpack.c.l.b16 %v75
    %v224 = vunpack.c.h.b16 %v75
    %v225 = vunpack.c.l.b16 %v76
    %v226 = vunpack.c.h.b16 %v76
    %v227 = vunpack.c.l.b16 %v77
    %v228 = vunpack.c.h.b16 %v77
    %v229 = vunpack.c.l.b16 %v78
    %v230 = vunpack.c.h.b16 %v78
    %v231 = vunpack.c.l.b16 %v79
    %v232 = vunpack.c.h.b16 %v79
    %v233 = vunpack.c.l.b16 %v80
    %v234 = vunpack.c.h.b16 %v80
    %v235 = vunpack.c.l.b16 %v81
    %v236 = vunpack.c.h.b16 %v81
    %v237 = vunpack.c.l.b16 %v82
    %v238 = vunpack.c.h.b16 %v82
    %v239 = vunpack.c.l.b16 %v83
    %v240 = vunpack.c.h.b16 %v83
    %v241 = vunpack.c.l.b16 %v84
    %v242 = vunpack.c.h.b16 %v84
    %v243 = vunpack.c.l.b16 %v85
    %v244 = vunpack.c.h.b16 %v85
    %v245 = vunpack.c.l.b16 %v86
    %v246 = vunpack.c.h.b16 %v86
    %v247 = vunpack.c.l.b16 %v87
    %v248 = vunpack.c.h.b16 %v87
    %v249 = vunpack.c.l.b16 %v88
    %v250 = vunpack.c.h.b16 %v88
    %v251 = vunpack.c.l.b16 %v89
    %v252 = vunpack.c.h.b16 %v89
    %v253 = vunpack.c.l.b16 %v90
    %v254 = vunpack.c.h.b16 %v90
    %v255 = vunpack.c.l.b16 %v91
    %v256 = vunpack.c.h.b16 %v91
    %v257 = vunpack.c.l.b16 %v92
    %v258 = vunpack.c.h.b16 %v92
    %v259 = vunpack.c.l.b16 %v93
    %v260 = vunpack.c.h.b16 %v93
    %v261 = vunpack.c.l.b16 %v94
    %v262 = vunpack.c.h.b16 %v94
    %v263 = vunpack.c.l.b16 %v95
    %v264 = vunpack.c.h.b16 %v95
    %v265 = vunpack.c.l.b16 %v96
    %v266 = vunpack.c.h.b16 %v96
    %v267 = vunpack.c.l.b16 %v97
    %v268 = vunpack.c.h.b16 %v97
    %v269 = vunpack.c.l.b16 %v98
    %v270 = vunpack.c.h.b16 %v98
    %v271 = vunpack.c.l.b16 %v99
    %v272 = vunpack.c.h.b16 %v99
    %v273 = vunpack.c.l.b16 %v100
    %v274 = vunpack.c.h.b16 %v100
    %v275 = vunpack.c.l.b16 %v101
    %v276 = vunpack.c.h.b16 %v101
    %v277 = vunpack.c.l.b16 %v102
    %v278 = vunpack.c.h.b16 %v102
    %v279 = vunpack.c.l.b16 %v103
    %v280 = vunpack.c.h.b16 %v103
    %v281 = vunpack.c.l.b16 %v104
    %v282 = vunpack.c.h.b16 %v104
    %v283 = vunpack.c.l.b16 %v105
    %v284 = vunpack.c.h.b16 %v105
    %v285 = vunpack.c.l.b16 %v106
    %v286 = vunpack.c.h.b16 %v106
    %v287 = vpack.c.b16 %v239, %v223
    %v288 = vpack.c.b16 %v240, %v224
    %v289 = vpack.c.b16 %v241, %v225
    %v290 = vpack.c.b16 %v242, %v226
    %v291 = vpack.c.b16 %v243, %v227
    %v292 = vpack.c.b16 %v244, %v228
    %v293 = vpack.c.b16 %v245, %v229
    %v294 = vpack.c.b16 %v246, %v230
    %v295 = vpack.c.b16 %v247, %v231
    %v296 = vpack.c.b16 %v248, %v232
    %v297 = vpack.c.b16 %v249, %v233
    %v298 = vpack.c.b16 %v250, %v234
    %v299 = vpack.c.b16 %v251, %v235
    %v300 = vpack.c.b16 %v252, %v236
    %v301 = vpack.c.b16 %v253, %v237
    %v302 = vpack.c.b16 %v254, %v238
    %v303 = vpack.c.b16 %v271, %v255
    %v304 = vpack.c.b16 %v272, %v256
    %v305 = vpack.c.b16 %v273, %v257
    %v306 = vpack.c.b16 %v274, %v258
    %v307 = vpack.c.b16 %v275, %v259
    %v308 = vpack.c.b16 %v276, %v260
    %v309 = vpack.c.b16 %v277, %v261
    %v310 = vpack.c.b16 %v278, %v262
    %v311 = vpack.c.b16 %v279, %v263
    %v312 = vpack.c.b16 %v280, %v264
    %v313 = vpack.c.b16 %v281, %v265
    %v314 = vpack.c.b16 %v282, %v266
    %v315 = vpack.c.b16 %v283, %v267
    %v316 = vpack.c.b16 %v284, %v268
    %v317 = vpack.c.b16 %v285, %v269
    %v318 = vpack.c.b16 %v286, %v270
    %vm351 = vcmask 261120
    %v353 = vsel %vm351, %v74, 0
    %355 = vmatprep.subr.bf16.mxu0 %v288
    %356 = vmatpush1.bf16.msra.mxu0 %v287
    %357 = vmatprep.subr.bf16.mxu0 %v304
    %358 = vmatpush1.bf16.msra.mxu0 %v303
    %359 = vmatprep.subr.bf16.mxu0 0
    %360 = vmatpush1.bf16.msra.mxu0 0
    %361 = vmatprep.subr.bf16.mxu0 0
    %362 = vmatpush1.bf16.msra.mxu0 0
    %363 = vmatprep.subr.bf16.mxu0 0
    %364 = vmatpush1.bf16.msra.mxu0 0
    %365 = vmatprep.subr.bf16.mxu0 0
    %366 = vmatpush1.bf16.msra.mxu0 0
    %367 = vmatprep.subr.bf16.mxu0 0
    %368 = vmatpush1.bf16.msra.mxu0 0
    %369 = vmatprep.subr.bf16.mxu0 0
    %370 = vmatpush1.bf16.msra.mxu0 0
    %371 = vmatprep.subr.bf16.mxu0 0
    %372 = vmatpush1.bf16.msra.mxu0 0
    %373 = vmatprep.subr.bf16.mxu0 0
    %374 = vmatpush1.bf16.msra.mxu0 0
    %375 = vmatprep.subr.bf16.mxu0 0
    %376 = vmatpush1.bf16.msra.mxu0 0
    %377 = vmatprep.subr.bf16.mxu0 0
    %378 = vmatpush1.bf16.msra.mxu0 0
    %379 = vmatprep.subr.bf16.mxu0 0
    %380 = vmatpush1.bf16.msra.mxu0 0
    %381 = vmatprep.subr.bf16.mxu0 0
    %382 = vmatpush1.bf16.msra.mxu0 0
    %383 = vmatprep.subr.bf16.mxu0 0
    %384 = vmatpush1.bf16.msra.mxu0 0
    %385 = vmatprep.subr.bf16.mxu0 0
    %386 = vmatpush1.bf16.msra.mxu0 0
    %387 = vmatprep.mubr.bf16.mxu0 0
    %388 = vmatmul.mubr.bf16.gmra.mrb[0].mxu0 %v353
    %v389 = vpop.f32.mrb[0].mxu0
    %v390 = vadd.f32 %v114, %v389
    %v391 = vpop.f32.mrb[0].mxu0
    %v392 = vadd.f32 %v118, %v391
    %v393 = vpop.f32.mrb[0].mxu0
    %v394 = vpop.f32.mrb[0].mxu0
    %395 = vdwg.mxu0
    %396 = vmatprep.subr.bf16.mxu0 %v290
    %397 = vmatpush1.bf16.msra.mxu0 %v289
    %398 = vmatprep.subr.bf16.mxu0 %v306
    %399 = vmatpush1.bf16.msra.mxu0 %v305
    %400 = vmatprep.subr.bf16.mxu0 0
    %401 = vmatpush1.bf16.msra.mxu0 0
    %402 = vmatprep.subr.bf16.mxu0 0
    %403 = vmatpush1.bf16.msra.mxu0 0
    %404 = vmatprep.subr.bf16.mxu0 0
    %405 = vmatpush1.bf16.msra.mxu0 0
    %406 = vmatprep.subr.bf16.mxu0 0
    %407 = vmatpush1.bf16.msra.mxu0 0
    %408 = vmatprep.subr.bf16.mxu0 0
    %409 = vmatpush1.bf16.msra.mxu0 0
    %410 = vmatprep.subr.bf16.mxu0 0
    %411 = vmatpush1.bf16.msra.mxu0 0
    %412 = vmatprep.subr.bf16.mxu0 0
    %413 = vmatpush1.bf16.msra.mxu0 0
    %414 = vmatprep.subr.bf16.mxu0 0
    %415 = vmatpush1.bf16.msra.mxu0 0
    %416 = vmatprep.subr.bf16.mxu0 0
    %417 = vmatpush1.bf16.msra.mxu0 0
    %418 = vmatprep.subr.bf16.mxu0 0
    %419 = vmatpush1.bf16.msra.mxu0 0
    %420 = vmatprep.subr.bf16.mxu0 0
    %421 = vmatpush1.bf16.msra.mxu0 0
    %422 = vmatprep.subr.bf16.mxu0 0
    %423 = vmatpush1.bf16.msra.mxu0 0
    %424 = vmatprep.subr.bf16.mxu0 0
    %425 = vmatpush1.bf16.msra.mxu0 0
    %426 = vmatprep.subr.bf16.mxu0 0
    %427 = vmatpush1.bf16.msra.mxu0 0
    %428 = vmatprep.mubr.bf16.mxu0 0
    %429 = vmatmul.mubr.bf16.gmra.mrb[0].mxu0 %v353
    %v430 = vpop.f32.mrb[0].mxu0
    %v431 = vadd.f32 %v122, %v430
    %v432 = vpop.f32.mrb[0].mxu0
    %v433 = vadd.f32 %v126, %v432
    %v434 = vpop.f32.mrb[0].mxu0
    %v435 = vpop.f32.mrb[0].mxu0
    %436 = vdwg.mxu0
    %437 = vmatprep.subr.bf16.mxu0 %v292
    %438 = vmatpush1.bf16.msra.mxu0 %v291
    %439 = vmatprep.subr.bf16.mxu0 %v308
    %440 = vmatpush1.bf16.msra.mxu0 %v307
    %441 = vmatprep.subr.bf16.mxu0 0
    %442 = vmatpush1.bf16.msra.mxu0 0
    %443 = vmatprep.subr.bf16.mxu0 0
    %444 = vmatpush1.bf16.msra.mxu0 0
    %445 = vmatprep.subr.bf16.mxu0 0
    %446 = vmatpush1.bf16.msra.mxu0 0
    %447 = vmatprep.subr.bf16.mxu0 0
    %448 = vmatpush1.bf16.msra.mxu0 0
    %449 = vmatprep.subr.bf16.mxu0 0
    %450 = vmatpush1.bf16.msra.mxu0 0
    %451 = vmatprep.subr.bf16.mxu0 0
    %452 = vmatpush1.bf16.msra.mxu0 0
    %453 = vmatprep.subr.bf16.mxu0 0
    %454 = vmatpush1.bf16.msra.mxu0 0
    %455 = vmatprep.subr.bf16.mxu0 0
    %456 = vmatpush1.bf16.msra.mxu0 0
    %457 = vmatprep.subr.bf16.mxu0 0
    %458 = vmatpush1.bf16.msra.mxu0 0
    %459 = vmatprep.subr.bf16.mxu0 0
    %460 = vmatpush1.bf16.msra.mxu0 0
    %461 = vmatprep.subr.bf16.mxu0 0
    %462 = vmatpush1.bf16.msra.mxu0 0
    %463 = vmatprep.subr.bf16.mxu0 0
    %464 = vmatpush1.bf16.msra.mxu0 0
    %465 = vmatprep.subr.bf16.mxu0 0
    %466 = vmatpush1.bf16.msra.mxu0 0
    %467 = vmatprep.subr.bf16.mxu0 0
    %468 = vmatpush1.bf16.msra.mxu0 0
    %469 = vmatprep.mubr.bf16.mxu0 0
    %470 = vmatmul.mubr.bf16.gmra.mrb[0].mxu0 %v353
    %v471 = vpop.f32.mrb[0].mxu0
    %v472 = vadd.f32 %v130, %v471
    %v473 = vpop.f32.mrb[0].mxu0
    %v474 = vadd.f32 %v134, %v473
    %v475 = vpop.f32.mrb[0].mxu0
    %v476 = vpop.f32.mrb[0].mxu0
    %477 = vdwg.mxu0
    %478 = vmatprep.subr.bf16.mxu0 %v294
    %479 = vmatpush1.bf16.msra.mxu0 %v293
    %480 = vmatprep.subr.bf16.mxu0 %v310
    %481 = vmatpush1.bf16.msra.mxu0 %v309
    %482 = vmatprep.subr.bf16.mxu0 0
    %483 = vmatpush1.bf16.msra.mxu0 0
    %484 = vmatprep.subr.bf16.mxu0 0
    %485 = vmatpush1.bf16.msra.mxu0 0
    %486 = vmatprep.subr.bf16.mxu0 0
    %487 = vmatpush1.bf16.msra.mxu0 0
    %488 = vmatprep.subr.bf16.mxu0 0
    %489 = vmatpush1.bf16.msra.mxu0 0
    %490 = vmatprep.subr.bf16.mxu0 0
    %491 = vmatpush1.bf16.msra.mxu0 0
    %492 = vmatprep.subr.bf16.mxu0 0
    %493 = vmatpush1.bf16.msra.mxu0 0
    %494 = vmatprep.subr.bf16.mxu0 0
    %495 = vmatpush1.bf16.msra.mxu0 0
    %496 = vmatprep.subr.bf16.mxu0 0
    %497 = vmatpush1.bf16.msra.mxu0 0
    %498 = vmatprep.subr.bf16.mxu0 0
    %499 = vmatpush1.bf16.msra.mxu0 0
    %500 = vmatprep.subr.bf16.mxu0 0
    %501 = vmatpush1.bf16.msra.mxu0 0
    %502 = vmatprep.subr.bf16.mxu0 0
    %503 = vmatpush1.bf16.msra.mxu0 0
    %504 = vmatprep.subr.bf16.mxu0 0
    %505 = vmatpush1.bf16.msra.mxu0 0
    %506 = vmatprep.subr.bf16.mxu0 0
    %507 = vmatpush1.bf16.msra.mxu0 0
    %508 = vmatprep.subr.bf16.mxu0 0
    %509 = vmatpush1.bf16.msra.mxu0 0
    %510 = vmatprep.mubr.bf16.mxu0 0
    %511 = vmatmul.mubr.bf16.gmra.mrb[0].mxu0 %v353
    %v512 = vpop.f32.mrb[0].mxu0
    %v513 = vadd.f32 %v138, %v512
    %v514 = vpop.f32.mrb[0].mxu0
    %v515 = vadd.f32 %v142, %v514
    %v516 = vpop.f32.mrb[0].mxu0
    %v517 = vpop.f32.mrb[0].mxu0
    %518 = vdwg.mxu0
    %519 = vmatprep.subr.bf16.mxu0 %v296
    %520 = vmatpush1.bf16.msra.mxu0 %v295
    %521 = vmatprep.subr.bf16.mxu0 %v312
    %522 = vmatpush1.bf16.msra.mxu0 %v311
    %523 = vmatprep.subr.bf16.mxu0 0
    %524 = vmatpush1.bf16.msra.mxu0 0
    %525 = vmatprep.subr.bf16.mxu0 0
    %526 = vmatpush1.bf16.msra.mxu0 0
    %527 = vmatprep.subr.bf16.mxu0 0
    %528 = vmatpush1.bf16.msra.mxu0 0
    %529 = vmatprep.subr.bf16.mxu0 0
    %530 = vmatpush1.bf16.msra.mxu0 0
    %531 = vmatprep.subr.bf16.mxu0 0
    %532 = vmatpush1.bf16.msra.mxu0 0
    %533 = vmatprep.subr.bf16.mxu0 0
    %534 = vmatpush1.bf16.msra.mxu0 0
    %535 = vmatprep.subr.bf16.mxu0 0
    %536 = vmatpush1.bf16.msra.mxu0 0
    %537 = vmatprep.subr.bf16.mxu0 0
    %538 = vmatpush1.bf16.msra.mxu0 0
    %539 = vmatprep.subr.bf16.mxu0 0
    %540 = vmatpush1.bf16.msra.mxu0 0
    %541 = vmatprep.subr.bf16.mxu0 0
    %542 = vmatpush1.bf16.msra.mxu0 0
    %543 = vmatprep.subr.bf16.mxu0 0
    %544 = vmatpush1.bf16.msra.mxu0 0
    %545 = vmatprep.subr.bf16.mxu0 0
    %546 = vmatpush1.bf16.msra.mxu0 0
    %547 = vmatprep.subr.bf16.mxu0 0
    %548 = vmatpush1.bf16.msra.mxu0 0
    %549 = vmatprep.subr.bf16.mxu0 0
    %550 = vmatpush1.bf16.msra.mxu0 0
    %551 = vmatprep.mubr.bf16.mxu0 0
    %552 = vmatmul.mubr.bf16.gmra.mrb[0].mxu0 %v353
    %v553 = vpop.f32.mrb[0].mxu0
    %v554 = vadd.f32 %v146, %v553
    %v555 = vpop.f32.mrb[0].mxu0
    %v556 = vadd.f32 %v150, %v555
    %v557 = vpop.f32.mrb[0].mxu0
    %v558 = vpop.f32.mrb[0].mxu0
    %559 = vdwg.mxu0
    %560 = vmatprep.subr.bf16.mxu0 %v298
    %561 = vmatpush1.bf16.msra.mxu0 %v297
    %562 = vmatprep.subr.bf16.mxu0 %v314
    %563 = vmatpush1.bf16.msra.mxu0 %v313
    %564 = vmatprep.subr.bf16.mxu0 0
    %565 = vmatpush1.bf16.msra.mxu0 0
    %566 = vmatprep.subr.bf16.mxu0 0
    %567 = vmatpush1.bf16.msra.mxu0 0
    %568 = vmatprep.subr.bf16.mxu0 0
    %569 = vmatpush1.bf16.msra.mxu0 0
    %570 = vmatprep.subr.bf16.mxu0 0
    %571 = vmatpush1.bf16.msra.mxu0 0
    %572 = vmatprep.subr.bf16.mxu0 0
    %573 = vmatpush1.bf16.msra.mxu0 0
    %574 = vmatprep.subr.bf16.mxu0 0
    %575 = vmatpush1.bf16.msra.mxu0 0
    %576 = vmatprep.subr.bf16.mxu0 0
    %577 = vmatpush1.bf16.msra.mxu0 0
    %578 = vmatprep.subr.bf16.mxu0 0
    %579 = vmatpush1.bf16.msra.mxu0 0
    %580 = vmatprep.subr.bf16.mxu0 0
    %581 = vmatpush1.bf16.msra.mxu0 0
    %582 = vmatprep.subr.bf16.mxu0 0
    %583 = vmatpush1.bf16.msra.mxu0 0
    %584 = vmatprep.subr.bf16.mxu0 0
    %585 = vmatpush1.bf16.msra.mxu0 0
    %586 = vmatprep.subr.bf16.mxu0 0
    %587 = vmatpush1.bf16.msra.mxu0 0
    %588 = vmatprep.subr.bf16.mxu0 0
    %589 = vmatpush1.bf16.msra.mxu0 0
    %590 = vmatprep.subr.bf16.mxu0 0
    %591 = vmatpush1.bf16.msra.mxu0 0
    %592 = vmatprep.mubr.bf16.mxu0 0
    %593 = vmatmul.mubr.bf16.gmra.mrb[0].mxu0 %v353
    %v594 = vpop.f32.mrb[0].mxu0
    %v595 = vadd.f32 %v154, %v594
    %v596 = vpop.f32.mrb[0].mxu0
    %v597 = vadd.f32 %v158, %v596
    %v598 = vpop.f32.mrb[0].mxu0
    %v599 = vpop.f32.mrb[0].mxu0
    %600 = vdwg.mxu0
    %601 = vmatprep.subr.bf16.mxu0 %v300
    %602 = vmatpush1.bf16.msra.mxu0 %v299
    %603 = vmatprep.subr.bf16.mxu0 %v316
    %604 = vmatpush1.bf16.msra.mxu0 %v315
    %605 = vmatprep.subr.bf16.mxu0 0
    %606 = vmatpush1.bf16.msra.mxu0 0
    %607 = vmatprep.subr.bf16.mxu0 0
    %608 = vmatpush1.bf16.msra.mxu0 0
    %609 = vmatprep.subr.bf16.mxu0 0
    %610 = vmatpush1.bf16.msra.mxu0 0
    %611 = vmatprep.subr.bf16.mxu0 0
    %612 = vmatpush1.bf16.msra.mxu0 0
    %613 = vmatprep.subr.bf16.mxu0 0
    %614 = vmatpush1.bf16.msra.mxu0 0
    %615 = vmatprep.subr.bf16.mxu0 0
    %616 = vmatpush1.bf16.msra.mxu0 0
    %617 = vmatprep.subr.bf16.mxu0 0
    %618 = vmatpush1.bf16.msra.mxu0 0
    %619 = vmatprep.subr.bf16.mxu0 0
    %620 = vmatpush1.bf16.msra.mxu0 0
    %621 = vmatprep.subr.bf16.mxu0 0
    %622 = vmatpush1.bf16.msra.mxu0 0
    %623 = vmatprep.subr.bf16.mxu0 0
    %624 = vmatpush1.bf16.msra.mxu0 0
    %625 = vmatprep.subr.bf16.mxu0 0
    %626 = vmatpush1.bf16.msra.mxu0 0
    %627 = vmatprep.subr.bf16.mxu0 0
    %628 = vmatpush1.bf16.msra.mxu0 0
    %629 = vmatprep.subr.bf16.mxu0 0
    %630 = vmatpush1.bf16.msra.mxu0 0
    %631 = vmatprep.subr.bf16.mxu0 0
    %632 = vmatpush1.bf16.msra.mxu0 0
    %633 = vmatprep.mubr.bf16.mxu0 0
    %634 = vmatmul.mubr.bf16.gmra.mrb[0].mxu0 %v353
    %v635 = vpop.f32.mrb[0].mxu0
    %v636 = vadd.f32 %v162, %v635
    %v637 = vpop.f32.mrb[0].mxu0
    %v638 = vadd.f32 %v166, %v637
    %v639 = vpop.f32.mrb[0].mxu0
    %v640 = vpop.f32.mrb[0].mxu0
    %641 = vdwg.mxu0
    %642 = vmatprep.subr.bf16.mxu0 %v302
    %643 = vmatpush1.bf16.msra.mxu0 %v301
    %644 = vmatprep.subr.bf16.mxu0 %v318
    %645 = vmatpush1.bf16.msra.mxu0 %v317
    %646 = vmatprep.subr.bf16.mxu0 0
    %647 = vmatpush1.bf16.msra.mxu0 0
    %648 = vmatprep.subr.bf16.mxu0 0
    %649 = vmatpush1.bf16.msra.mxu0 0
    %650 = vmatprep.subr.bf16.mxu0 0
    %651 = vmatpush1.bf16.msra.mxu0 0
    %652 = vmatprep.subr.bf16.mxu0 0
    %653 = vmatpush1.bf16.msra.mxu0 0
    %654 = vmatprep.subr.bf16.mxu0 0
    %655 = vmatpush1.bf16.msra.mxu0 0
    %656 = vmatprep.subr.bf16.mxu0 0
    %657 = vmatpush1.bf16.msra.mxu0 0
    %658 = vmatprep.subr.bf16.mxu0 0
    %659 = vmatpush1.bf16.msra.mxu0 0
    %660 = vmatprep.subr.bf16.mxu0 0
    %661 = vmatpush1.bf16.msra.mxu0 0
    %662 = vmatprep.subr.bf16.mxu0 0
    %663 = vmatpush1.bf16.msra.mxu0 0
    %664 = vmatprep.subr.bf16.mxu0 0
    %665 = vmatpush1.bf16.msra.mxu0 0
    %666 = vmatprep.subr.bf16.mxu0 0
    %667 = vmatpush1.bf16.msra.mxu0 0
    %668 = vmatprep.subr.bf16.mxu0 0
    %669 = vmatpush1.bf16.msra.mxu0 0
    %670 = vmatprep.subr.bf16.mxu0 0
    %671 = vmatpush1.bf16.msra.mxu0 0
    %672 = vmatprep.subr.bf16.mxu0 0
    %673 = vmatpush1.bf16.msra.mxu0 0
    %674 = vmatprep.mubr.bf16.mxu0 0
    %675 = vmatmul.mubr.bf16.gmra.mrb[0].mxu0 %v353
    %v676 = vpop.f32.mrb[0].mxu0
    %v677 = vadd.f32 %v170, %v676
    %v678 = vpop.f32.mrb[0].mxu0
    %v679 = vadd.f32 %v174, %v678
    %v680 = vpop.f32.mrb[0].mxu0
    %v681 = vpop.f32.mrb[0].mxu0
    %682 = vdwg.mxu0
    %v683 = vmax.f32 %v390, 0.0
    %v684 = vmax.f32 %v392, 0.0
    %v685 = vmax.f32 %v431, 0.0
    %v686 = vmax.f32 %v433, 0.0
    %v687 = vmax.f32 %v472, 0.0
    %v688 = vmax.f32 %v474, 0.0
    %v689 = vmax.f32 %v513, 0.0
    %v690 = vmax.f32 %v515, 0.0
    %v691 = vmax.f32 %v554, 0.0
    %v692 = vmax.f32 %v556, 0.0
    %v693 = vmax.f32 %v595, 0.0
    %v694 = vmax.f32 %v597, 0.0
    %v695 = vmax.f32 %v636, 0.0
    %v696 = vmax.f32 %v638, 0.0
    %v697 = vmax.f32 %v677, 0.0
    %v698 = vmax.f32 %v679, 0.0
    %v699 = vpack.c.bf16 %v683, %v683
    %v700 = vpack.c.bf16 %v684, %v684
    %v701 = vpack.c.bf16 %v685, %v685
    %v702 = vpack.c.bf16 %v686, %v686
    %v703 = vpack.c.bf16 %v687, %v687
    %v704 = vpack.c.bf16 %v688, %v688
    %v705 = vpack.c.bf16 %v689, %v689
    %v706 = vpack.c.bf16 %v690, %v690
    %v707 = vpack.c.bf16 %v691, %v691
    %v708 = vpack.c.bf16 %v692, %v692
    %v709 = vpack.c.bf16 %v693, %v693
    %v710 = vpack.c.bf16 %v694, %v694
    %v711 = vpack.c.bf16 %v695, %v695
    %v712 = vpack.c.bf16 %v696, %v696
    %v713 = vpack.c.bf16 %v697, %v697
    %v714 = vpack.c.bf16 %v698, %v698
    %v715 = vld [vmem:[#allocation8] sm:$0xf]
    %v716 = vld [vmem:[#allocation8 + $0x4] sm:$0xf]
    %v717 = vld [vmem:[#allocation8 + $0x8] sm:$0xf]
    %v718 = vld [vmem:[#allocation8 + $0xc] sm:$0xf]
    %v719 = vld [vmem:[#allocation8 + $0x10] sm:$0xf]
    %v720 = vld [vmem:[#allocation8 + $0x14] sm:$0xf]
    %v721 = vld [vmem:[#allocation8 + $0x18] sm:$0xf]
    %v722 = vld [vmem:[#allocation8 + $0x1c] sm:$0xf]
    %v723 = vld [vmem:[#allocation8 + $0x20] sm:$0xf]
    %v724 = vld [vmem:[#allocation8 + $0x24] sm:$0xf]
    %v725 = vld [vmem:[#allocation8 + $0x28] sm:$0xf]
    %v726 = vld [vmem:[#allocation8 + $0x2c] sm:$0xf]
    %v727 = vld [vmem:[#allocation8 + $0x30] sm:$0xf]
    %v728 = vld [vmem:[#allocation8 + $0x34] sm:$0xf]
    %v729 = vld [vmem:[#allocation8 + $0x38] sm:$0xf]
    %v730 = vld [vmem:[#allocation8 + $0x3c] sm:$0xf]
    %v731 = vld [vmem:[#allocation8 + $0x40] sm:$0xf]
    %v732 = vld [vmem:[#allocation8 + $0x44] sm:$0xf]
    %v733 = vld [vmem:[#allocation8 + $0x48] sm:$0xf]
    %v734 = vld [vmem:[#allocation8 + $0x4c] sm:$0xf]
    %v735 = vld [vmem:[#allocation8 + $0x50] sm:$0xf]
    %v736 = vld [vmem:[#allocation8 + $0x54] sm:$0xf]
    %v737 = vld [vmem:[#allocation8 + $0x58] sm:$0xf]
    %v738 = vld [vmem:[#allocation8 + $0x5c] sm:$0xf]
    %v739 = vld [vmem:[#allocation8 + $0x60] sm:$0xf]
    %v740 = vld [vmem:[#allocation8 + $0x64] sm:$0xf]
    %v741 = vld [vmem:[#allocation8 + $0x68] sm:$0xf]
    %v742 = vld [vmem:[#allocation8 + $0x6c] sm:$0xf]
    %v743 = vld [vmem:[#allocation8 + $0x70] sm:$0xf]
    %v744 = vld [vmem:[#allocation8 + $0x74] sm:$0xf]
    %v745 = vld [vmem:[#allocation8 + $0x78] sm:$0xf]
    %v746 = vld [vmem:[#allocation8 + $0x7c] sm:$0xf]
    %v747 = vld [vmem:[#allocation8 + $0x80] sm:$0xf]
    %v748 = vld [vmem:[#allocation8 + $0x84] sm:$0xf]
    %v749 = vld [vmem:[#allocation8 + $0x88] sm:$0xf]
    %v750 = vld [vmem:[#allocation8 + $0x8c] sm:$0xf]
    %v751 = vld [vmem:[#allocation8 + $0x90] sm:$0xf]
    %v752 = vld [vmem:[#allocation8 + $0x94] sm:$0xf]
    %v753 = vld [vmem:[#allocation8 + $0x98] sm:$0xf]
    %v754 = vld [vmem:[#allocation8 + $0x9c] sm:$0xf]
    %v755 = vld [vmem:[#allocation8 + $0xa0] sm:$0xf]
    %v756 = vld [vmem:[#allocation8 + $0xa4] sm:$0xf]
    %v757 = vld [vmem:[#allocation8 + $0xa8] sm:$0xf]
    %v758 = vld [vmem:[#allocation8 + $0xac] sm:$0xf]
    %v759 = vld [vmem:[#allocation8 + $0xb0] sm:$0xf]
    %v760 = vld [vmem:[#allocation8 + $0xb4] sm:$0xf]
    %v761 = vld [vmem:[#allocation8 + $0xb8] sm:$0xf]
    %v762 = vld [vmem:[#allocation8 + $0xbc] sm:$0xf]
    %v763 = vld [vmem:[#allocation8 + $0xc0] sm:$0xf]
    %v764 = vld [vmem:[#allocation8 + $0xc4] sm:$0xf]
    %v765 = vld [vmem:[#allocation8 + $0xc8] sm:$0xf]
    %v766 = vld [vmem:[#allocation8 + $0xcc] sm:$0xf]
    %v767 = vld [vmem:[#allocation8 + $0xd0] sm:$0xf]
    %v768 = vld [vmem:[#allocation8 + $0xd4] sm:$0xf]
    %v769 = vld [vmem:[#allocation8 + $0xd8] sm:$0xf]
    %v770 = vld [vmem:[#allocation8 + $0xdc] sm:$0xf]
    %v771 = vld [vmem:[#allocation8 + $0xe0] sm:$0xf]
    %v772 = vld [vmem:[#allocation8 + $0xe4] sm:$0xf]
    %v773 = vld [vmem:[#allocation8 + $0xe8] sm:$0xf]
    %v774 = vld [vmem:[#allocation8 + $0xec] sm:$0xf]
    %v775 = vld [vmem:[#allocation8 + $0xf0] sm:$0xf]
    %v776 = vld [vmem:[#allocation8 + $0xf4] sm:$0xf]
    %v777 = vld [vmem:[#allocation8 + $0xf8] sm:$0xf]
    %v778 = vld [vmem:[#allocation8 + $0xfc] sm:$0xf]
    %v779 = vld [vmem:[#allocation8 + $0x100] sm:$0xf]
    %v780 = vld [vmem:[#allocation8 + $0x104] sm:$0xf]
    %v781 = vld [vmem:[#allocation8 + $0x108] sm:$0xf]
    %v782 = vld [vmem:[#allocation8 + $0x10c] sm:$0xf]
    %v783 = vld [vmem:[#allocation8 + $0x110] sm:$0xf]
    %v784 = vld [vmem:[#allocation8 + $0x114] sm:$0xf]
    %v785 = vld [vmem:[#allocation8 + $0x118] sm:$0xf]
    %v786 = vld [vmem:[#allocation8 + $0x11c] sm:$0xf]
    %v787 = vld [vmem:[#allocation8 + $0x120] sm:$0xf]
    %v788 = vld [vmem:[#allocation8 + $0x124] sm:$0xf]
    %v789 = vld [vmem:[#allocation8 + $0x128] sm:$0xf]
    %v790 = vld [vmem:[#allocation8 + $0x12c] sm:$0xf]
    %v791 = vld [vmem:[#allocation8 + $0x130] sm:$0xf]
    %v792 = vld [vmem:[#allocation8 + $0x134] sm:$0xf]
    %v793 = vld [vmem:[#allocation8 + $0x138] sm:$0xf]
    %v794 = vld [vmem:[#allocation8 + $0x13c] sm:$0xf]
    %v795 = vld [vmem:[#allocation8 + $0x140] sm:$0xf]
    %v796 = vld [vmem:[#allocation8 + $0x144] sm:$0xf]
    %v797 = vld [vmem:[#allocation8 + $0x148] sm:$0xf]
    %v798 = vld [vmem:[#allocation8 + $0x14c] sm:$0xf]
    %v799 = vld [vmem:[#allocation8 + $0x150] sm:$0xf]
    %v800 = vld [vmem:[#allocation8 + $0x154] sm:$0xf]
    %v801 = vld [vmem:[#allocation8 + $0x158] sm:$0xf]
    %v802 = vld [vmem:[#allocation8 + $0x15c] sm:$0xf]
    %v803 = vld [vmem:[#allocation8 + $0x160] sm:$0xf]
    %v804 = vld [vmem:[#allocation8 + $0x164] sm:$0xf]
    %v805 = vld [vmem:[#allocation8 + $0x168] sm:$0xf]
    %v806 = vld [vmem:[#allocation8 + $0x16c] sm:$0xf]
    %v807 = vld [vmem:[#allocation8 + $0x170] sm:$0xf]
    %v808 = vld [vmem:[#allocation8 + $0x174] sm:$0xf]
    %v809 = vld [vmem:[#allocation8 + $0x178] sm:$0xf]
    %v810 = vld [vmem:[#allocation8 + $0x17c] sm:$0xf]
    %v811 = vld [vmem:[#allocation8 + $0x180] sm:$0xf]
    %v812 = vld [vmem:[#allocation8 + $0x184] sm:$0xf]
    %v813 = vld [vmem:[#allocation8 + $0x188] sm:$0xf]
    %v814 = vld [vmem:[#allocation8 + $0x18c] sm:$0xf]
    %v815 = vld [vmem:[#allocation8 + $0x190] sm:$0xf]
    %v816 = vld [vmem:[#allocation8 + $0x194] sm:$0xf]
    %v817 = vld [vmem:[#allocation8 + $0x198] sm:$0xf]
    %v818 = vld [vmem:[#allocation8 + $0x19c] sm:$0xf]
    %v819 = vld [vmem:[#allocation8 + $0x1a0] sm:$0xf]
    %v820 = vld [vmem:[#allocation8 + $0x1a4] sm:$0xf]
    %v821 = vld [vmem:[#allocation8 + $0x1a8] sm:$0xf]
    %v822 = vld [vmem:[#allocation8 + $0x1ac] sm:$0xf]
    %v823 = vld [vmem:[#allocation8 + $0x1b0] sm:$0xf]
    %v824 = vld [vmem:[#allocation8 + $0x1b4] sm:$0xf]
    %v825 = vld [vmem:[#allocation8 + $0x1b8] sm:$0xf]
    %v826 = vld [vmem:[#allocation8 + $0x1bc] sm:$0xf]
    %v827 = vld [vmem:[#allocation8 + $0x1c0] sm:$0xf]
    %v828 = vld [vmem:[#allocation8 + $0x1c4] sm:$0xf]
    %v829 = vld [vmem:[#allocation8 + $0x1c8] sm:$0xf]
    %v830 = vld [vmem:[#allocation8 + $0x1cc] sm:$0xf]
    %v831 = vld [vmem:[#allocation8 + $0x1d0] sm:$0xf]
    %v832 = vld [vmem:[#allocation8 + $0x1d4] sm:$0xf]
    %v833 = vld [vmem:[#allocation8 + $0x1d8] sm:$0xf]
    %v834 = vld [vmem:[#allocation8 + $0x1dc] sm:$0xf]
    %v835 = vld [vmem:[#allocation8 + $0x1e0] sm:$0xf]
    %v836 = vld [vmem:[#allocation8 + $0x1e4] sm:$0xf]
    %v837 = vld [vmem:[#allocation8 + $0x1e8] sm:$0xf]
    %v838 = vld [vmem:[#allocation8 + $0x1ec] sm:$0xf]
    %v839 = vld [vmem:[#allocation8 + $0x1f0] sm:$0xf]
    %v840 = vld [vmem:[#allocation8 + $0x1f4] sm:$0xf]
    %v841 = vld [vmem:[#allocation8 + $0x1f8] sm:$0xf]
    %v842 = vld [vmem:[#allocation8 + $0x1fc] sm:$0xf]
    %v843 = vld [vmem:[#allocation8 + $0x200] sm:$0xf]
    %v844 = vld [vmem:[#allocation8 + $0x204] sm:$0xf]
    %v845 = vld [vmem:[#allocation8 + $0x208] sm:$0xf]
    %v846 = vld [vmem:[#allocation8 + $0x20c] sm:$0xf]
    %v847 = vld [vmem:[#allocation8 + $0x210] sm:$0xf]
    %v848 = vld [vmem:[#allocation8 + $0x214] sm:$0xf]
    %v849 = vld [vmem:[#allocation8 + $0x218] sm:$0xf]
    %v850 = vld [vmem:[#allocation8 + $0x21c] sm:$0xf]
    %v851 = vld [vmem:[#allocation8 + $0x220] sm:$0xf]
    %v852 = vld [vmem:[#allocation8 + $0x224] sm:$0xf]
    %v853 = vld [vmem:[#allocation8 + $0x228] sm:$0xf]
    %v854 = vld [vmem:[#allocation8 + $0x22c] sm:$0xf]
    %v855 = vld [vmem:[#allocation8 + $0x230] sm:$0xf]
    %v856 = vld [vmem:[#allocation8 + $0x234] sm:$0xf]
    %v857 = vld [vmem:[#allocation8 + $0x238] sm:$0xf]
    %v858 = vld [vmem:[#allocation8 + $0x23c] sm:$0xf]
    %v859 = vld [vmem:[#allocation8 + $0x240] sm:$0xf]
    %v860 = vld [vmem:[#allocation8 + $0x244] sm:$0xf]
    %v861 = vld [vmem:[#allocation8 + $0x248] sm:$0xf]
    %v862 = vld [vmem:[#allocation8 + $0x24c] sm:$0xf]
    %v863 = vld [vmem:[#allocation8 + $0x250] sm:$0xf]
    %v864 = vld [vmem:[#allocation8 + $0x254] sm:$0xf]
    %v865 = vld [vmem:[#allocation8 + $0x258] sm:$0xf]
    %v866 = vld [vmem:[#allocation8 + $0x25c] sm:$0xf]
    %v867 = vld [vmem:[#allocation8 + $0x260] sm:$0xf]
    %v868 = vld [vmem:[#allocation8 + $0x264] sm:$0xf]
    %v869 = vld [vmem:[#allocation8 + $0x268] sm:$0xf]
    %v870 = vld [vmem:[#allocation8 + $0x26c] sm:$0xf]
    %v871 = vld [vmem:[#allocation8 + $0x270] sm:$0xf]
    %v872 = vld [vmem:[#allocation8 + $0x274] sm:$0xf]
    %v873 = vld [vmem:[#allocation8 + $0x278] sm:$0xf]
    %v874 = vld [vmem:[#allocation8 + $0x27c] sm:$0xf]
    %v875 = vld [vmem:[#allocation8 + $0x280] sm:$0xf]
    %v876 = vld [vmem:[#allocation8 + $0x284] sm:$0xf]
    %v877 = vld [vmem:[#allocation8 + $0x288] sm:$0xf]
    %v878 = vld [vmem:[#allocation8 + $0x28c] sm:$0xf]
    %v879 = vld [vmem:[#allocation8 + $0x290] sm:$0xf]
    %v880 = vld [vmem:[#allocation8 + $0x294] sm:$0xf]
    %v881 = vld [vmem:[#allocation8 + $0x298] sm:$0xf]
    %v882 = vld [vmem:[#allocation8 + $0x29c] sm:$0xf]
    %v883 = vld [vmem:[#allocation8 + $0x2a0] sm:$0xf]
    %v884 = vld [vmem:[#allocation8 + $0x2a4] sm:$0xf]
    %v885 = vld [vmem:[#allocation8 + $0x2a8] sm:$0xf]
    %v886 = vld [vmem:[#allocation8 + $0x2ac] sm:$0xf]
    %v887 = vld [vmem:[#allocation8 + $0x2b0] sm:$0xf]
    %v888 = vld [vmem:[#allocation8 + $0x2b4] sm:$0xf]
    %v889 = vld [vmem:[#allocation8 + $0x2b8] sm:$0xf]
    %v890 = vld [vmem:[#allocation8 + $0x2bc] sm:$0xf]
    %v891 = vld [vmem:[#allocation8 + $0x2c0] sm:$0xf]
    %v892 = vld [vmem:[#allocation8 + $0x2c4] sm:$0xf]
    %v893 = vld [vmem:[#allocation8 + $0x2c8] sm:$0xf]
    %v894 = vld [vmem:[#allocation8 + $0x2cc] sm:$0xf]
    %v895 = vld [vmem:[#allocation8 + $0x2d0] sm:$0xf]
    %v896 = vld [vmem:[#allocation8 + $0x2d4] sm:$0xf]
    %v897 = vld [vmem:[#allocation8 + $0x2d8] sm:$0xf]
    %v898 = vld [vmem:[#allocation8 + $0x2dc] sm:$0xf]
    %v899 = vld [vmem:[#allocation8 + $0x2e0] sm:$0xf]
    %v900 = vld [vmem:[#allocation8 + $0x2e4] sm:$0xf]
    %v901 = vld [vmem:[#allocation8 + $0x2e8] sm:$0xf]
    %v902 = vld [vmem:[#allocation8 + $0x2ec] sm:$0xf]
    %v903 = vld [vmem:[#allocation8 + $0x2f0] sm:$0xf]
    %v904 = vld [vmem:[#allocation8 + $0x2f4] sm:$0xf]
    %v905 = vld [vmem:[#allocation8 + $0x2f8] sm:$0xf]
    %v906 = vld [vmem:[#allocation8 + $0x2fc] sm:$0xf]
    %v907 = vld [vmem:[#allocation8 + $0x300] sm:$0xf]
    %v908 = vld [vmem:[#allocation8 + $0x304] sm:$0xf]
    %v909 = vld [vmem:[#allocation8 + $0x308] sm:$0xf]
    %v910 = vld [vmem:[#allocation8 + $0x30c] sm:$0xf]
    %v911 = vld [vmem:[#allocation8 + $0x310] sm:$0xf]
    %v912 = vld [vmem:[#allocation8 + $0x314] sm:$0xf]
    %v913 = vld [vmem:[#allocation8 + $0x318] sm:$0xf]
    %v914 = vld [vmem:[#allocation8 + $0x31c] sm:$0xf]
    %v915 = vld [vmem:[#allocation8 + $0x320] sm:$0xf]
    %v916 = vld [vmem:[#allocation8 + $0x324] sm:$0xf]
    %v917 = vld [vmem:[#allocation8 + $0x328] sm:$0xf]
    %v918 = vld [vmem:[#allocation8 + $0x32c] sm:$0xf]
    %v919 = vld [vmem:[#allocation8 + $0x330] sm:$0xf]
    %v920 = vld [vmem:[#allocation8 + $0x334] sm:$0xf]
    %v921 = vld [vmem:[#allocation8 + $0x338] sm:$0xf]
    %v922 = vld [vmem:[#allocation8 + $0x33c] sm:$0xf]
    %v923 = vld [vmem:[#allocation8 + $0x340] sm:$0xf]
    %v924 = vld [vmem:[#allocation8 + $0x344] sm:$0xf]
    %v925 = vld [vmem:[#allocation8 + $0x348] sm:$0xf]
    %v926 = vld [vmem:[#allocation8 + $0x34c] sm:$0xf]
    %v927 = vld [vmem:[#allocation8 + $0x350] sm:$0xf]
    %v928 = vld [vmem:[#allocation8 + $0x354] sm:$0xf]
    %v929 = vld [vmem:[#allocation8 + $0x358] sm:$0xf]
    %v930 = vld [vmem:[#allocation8 + $0x35c] sm:$0xf]
    %v931 = vld [vmem:[#allocation8 + $0x360] sm:$0xf]
    %v932 = vld [vmem:[#allocation8 + $0x364] sm:$0xf]
    %v933 = vld [vmem:[#allocation8 + $0x368] sm:$0xf]
    %v934 = vld [vmem:[#allocation8 + $0x36c] sm:$0xf]
    %v935 = vld [vmem:[#allocation8 + $0x370] sm:$0xf]
    %v936 = vld [vmem:[#allocation8 + $0x374] sm:$0xf]
    %v937 = vld [vmem:[#allocation8 + $0x378] sm:$0xf]
    %v938 = vld [vmem:[#allocation8 + $0x37c] sm:$0xf]
    %v939 = vld [vmem:[#allocation8 + $0x380] sm:$0xf]
    %v940 = vld [vmem:[#allocation8 + $0x384] sm:$0xf]
    %v941 = vld [vmem:[#allocation8 + $0x388] sm:$0xf]
    %v942 = vld [vmem:[#allocation8 + $0x38c] sm:$0xf]
    %v943 = vld [vmem:[#allocation8 + $0x390] sm:$0xf]
    %v944 = vld [vmem:[#allocation8 + $0x394] sm:$0xf]
    %v945 = vld [vmem:[#allocation8 + $0x398] sm:$0xf]
    %v946 = vld [vmem:[#allocation8 + $0x39c] sm:$0xf]
    %v947 = vld [vmem:[#allocation8 + $0x3a0] sm:$0xf]
    %v948 = vld [vmem:[#allocation8 + $0x3a4] sm:$0xf]
    %v949 = vld [vmem:[#allocation8 + $0x3a8] sm:$0xf]
    %v950 = vld [vmem:[#allocation8 + $0x3ac] sm:$0xf]
    %v951 = vld [vmem:[#allocation8 + $0x3b0] sm:$0xf]
    %v952 = vld [vmem:[#allocation8 + $0x3b4] sm:$0xf]
    %v953 = vld [vmem:[#allocation8 + $0x3b8] sm:$0xf]
    %v954 = vld [vmem:[#allocation8 + $0x3bc] sm:$0xf]
    %v955 = vld [vmem:[#allocation8 + $0x3c0] sm:$0xf]
    %v956 = vld [vmem:[#allocation8 + $0x3c4] sm:$0xf]
    %v957 = vld [vmem:[#allocation8 + $0x3c8] sm:$0xf]
    %v958 = vld [vmem:[#allocation8 + $0x3cc] sm:$0xf]
    %v959 = vld [vmem:[#allocation8 + $0x3d0] sm:$0xf]
    %v960 = vld [vmem:[#allocation8 + $0x3d4] sm:$0xf]
    %v961 = vld [vmem:[#allocation8 + $0x3d8] sm:$0xf]
    %v962 = vld [vmem:[#allocation8 + $0x3dc] sm:$0xf]
    %v963 = vld [vmem:[#allocation8 + $0x3e0] sm:$0xf]
    %v964 = vld [vmem:[#allocation8 + $0x3e4] sm:$0xf]
    %v965 = vld [vmem:[#allocation8 + $0x3e8] sm:$0xf]
    %v966 = vld [vmem:[#allocation8 + $0x3ec] sm:$0xf]
    %v967 = vld [vmem:[#allocation8 + $0x3f0] sm:$0xf]
    %v968 = vld [vmem:[#allocation8 + $0x3f4] sm:$0xf]
    %v969 = vld [vmem:[#allocation8 + $0x3f8] sm:$0xf]
    %v970 = vld [vmem:[#allocation8 + $0x3fc] sm:$0xf]
    %v971 = vld [vmem:[%s4] sm:$0x1]
    %v973 = vlaneseq
    %v974 = vshrl.u32 %v973, 7
    %v975 = vsub.s32 0, %v974
    %v976 = vrot.slane %v971, %v975
    %v1234 = vunpack.c.l.b16 %v715
    %v1235 = vunpack.c.l.b16 %v716
    %v1236 = vunpack.c.l.b16 %v717
    %v1237 = vunpack.c.l.b16 %v718
    %v1238 = vunpack.c.l.b16 %v719
    %v1239 = vunpack.c.l.b16 %v720
    %v1240 = vunpack.c.l.b16 %v721
    %v1241 = vunpack.c.l.b16 %v722
    %v1242 = vunpack.c.l.b16 %v723
    %v1243 = vunpack.c.l.b16 %v724
    %v1244 = vunpack.c.l.b16 %v725
    %v1245 = vunpack.c.l.b16 %v726
    %v1246 = vunpack.c.l.b16 %v727
    %v1247 = vunpack.c.l.b16 %v728
    %v1248 = vunpack.c.l.b16 %v729
    %v1249 = vunpack.c.l.b16 %v730
    %v1250 = vunpack.c.l.b16 %v731
    %v1251 = vunpack.c.l.b16 %v732
    %v1252 = vunpack.c.l.b16 %v733
    %v1253 = vunpack.c.l.b16 %v734
    %v1254 = vunpack.c.l.b16 %v735
    %v1255 = vunpack.c.l.b16 %v736
    %v1256 = vunpack.c.l.b16 %v737
    %v1257 = vunpack.c.l.b16 %v738
    %v1258 = vunpack.c.l.b16 %v739
    %v1259 = vunpack.c.l.b16 %v740
    %v1260 = vunpack.c.l.b16 %v741
    %v1261 = vunpack.c.l.b16 %v742
    %v1262 = vunpack.c.l.b16 %v743
    %v1263 = vunpack.c.l.b16 %v744
    %v1264 = vunpack.c.l.b16 %v745
    %v1265 = vunpack.c.l.b16 %v746
    %v1266 = vunpack.c.l.b16 %v747
    %v1267 = vunpack.c.l.b16 %v748
    %v1268 = vunpack.c.l.b16 %v749
    %v1269 = vunpack.c.l.b16 %v750
    %v1270 = vunpack.c.l.b16 %v751
    %v1271 = vunpack.c.l.b16 %v752
    %v1272 = vunpack.c.l.b16 %v753
    %v1273 = vunpack.c.l.b16 %v754
    %v1274 = vunpack.c.l.b16 %v755
    %v1275 = vunpack.c.l.b16 %v756
    %v1276 = vunpack.c.l.b16 %v757
    %v1277 = vunpack.c.l.b16 %v758
    %v1278 = vunpack.c.l.b16 %v759
    %v1279 = vunpack.c.l.b16 %v760
    %v1280 = vunpack.c.l.b16 %v761
    %v1281 = vunpack.c.l.b16 %v762
    %v1282 = vunpack.c.l.b16 %v763
    %v1283 = vunpack.c.l.b16 %v764
    %v1284 = vunpack.c.l.b16 %v765
    %v1285 = vunpack.c.l.b16 %v766
    %v1286 = vunpack.c.l.b16 %v767
    %v1287 = vunpack.c.l.b16 %v768
    %v1288 = vunpack.c.l.b16 %v769
    %v1289 = vunpack.c.l.b16 %v770
    %v1290 = vunpack.c.l.b16 %v771
    %v1291 = vunpack.c.l.b16 %v772
    %v1292 = vunpack.c.l.b16 %v773
    %v1293 = vunpack.c.l.b16 %v774
    %v1294 = vunpack.c.l.b16 %v775
    %v1295 = vunpack.c.l.b16 %v776
    %v1296 = vunpack.c.l.b16 %v777
    %v1297 = vunpack.c.l.b16 %v778
    %v1298 = vunpack.c.l.b16 %v779
    %v1299 = vunpack.c.l.b16 %v780
    %v1300 = vunpack.c.l.b16 %v781
    %v1301 = vunpack.c.l.b16 %v782
    %v1302 = vunpack.c.l.b16 %v783
    %v1303 = vunpack.c.l.b16 %v784
    %v1304 = vunpack.c.l.b16 %v785
    %v1305 = vunpack.c.l.b16 %v786
    %v1306 = vunpack.c.l.b16 %v787
    %v1307 = vunpack.c.l.b16 %v788
    %v1308 = vunpack.c.l.b16 %v789
    %v1309 = vunpack.c.l.b16 %v790
    %v1310 = vunpack.c.l.b16 %v791
    %v1311 = vunpack.c.l.b16 %v792
    %v1312 = vunpack.c.l.b16 %v793
    %v1313 = vunpack.c.l.b16 %v794
    %v1314 = vunpack.c.l.b16 %v795
    %v1315 = vunpack.c.l.b16 %v796
    %v1316 = vunpack.c.l.b16 %v797
    %v1317 = vunpack.c.l.b16 %v798
    %v1318 = vunpack.c.l.b16 %v799
    %v1319 = vunpack.c.l.b16 %v800
    %v1320 = vunpack.c.l.b16 %v801
    %v1321 = vunpack.c.l.b16 %v802
    %v1322 = vunpack.c.l.b16 %v803
    %v1323 = vunpack.c.l.b16 %v804
    %v1324 = vunpack.c.l.b16 %v805
    %v1325 = vunpack.c.l.b16 %v806
    %v1326 = vunpack.c.l.b16 %v807
    %v1327 = vunpack.c.l.b16 %v808
    %v1328 = vunpack.c.l.b16 %v809
    %v1329 = vunpack.c.l.b16 %v810
    %v1330 = vunpack.c.l.b16 %v811
    %v1331 = vunpack.c.l.b16 %v812
    %v1332 = vunpack.c.l.b16 %v813
    %v1333 = vunpack.c.l.b16 %v814
    %v1334 = vunpack.c.l.b16 %v815
    %v1335 = vunpack.c.l.b16 %v816
    %v1336 = vunpack.c.l.b16 %v817
    %v1337 = vunpack.c.l.b16 %v818
    %v1338 = vunpack.c.l.b16 %v819
    %v1339 = vunpack.c.l.b16 %v820
    %v1340 = vunpack.c.l.b16 %v821
    %v1341 = vunpack.c.l.b16 %v822
    %v1342 = vunpack.c.l.b16 %v823
    %v1343 = vunpack.c.l.b16 %v824
    %v1344 = vunpack.c.l.b16 %v825
    %v1345 = vunpack.c.l.b16 %v826
    %v1346 = vunpack.c.l.b16 %v827
    %v1347 = vunpack.c.l.b16 %v828
    %v1348 = vunpack.c.l.b16 %v829
    %v1349 = vunpack.c.l.b16 %v830
    %v1350 = vunpack.c.l.b16 %v831
    %v1351 = vunpack.c.l.b16 %v832
    %v1352 = vunpack.c.l.b16 %v833
    %v1353 = vunpack.c.l.b16 %v834
    %v1354 = vunpack.c.l.b16 %v835
    %v1355 = vunpack.c.l.b16 %v836
    %v1356 = vunpack.c.l.b16 %v837
    %v1357 = vunpack.c.l.b16 %v838
    %v1358 = vunpack.c.l.b16 %v839
    %v1359 = vunpack.c.l.b16 %v840
    %v1360 = vunpack.c.l.b16 %v841
    %v1361 = vunpack.c.l.b16 %v842
    %v1362 = vunpack.c.l.b16 %v843
    %v1363 = vunpack.c.l.b16 %v844
    %v1364 = vunpack.c.l.b16 %v845
    %v1365 = vunpack.c.l.b16 %v846
    %v1366 = vunpack.c.l.b16 %v847
    %v1367 = vunpack.c.l.b16 %v848
    %v1368 = vunpack.c.l.b16 %v849
    %v1369 = vunpack.c.l.b16 %v850
    %v1370 = vunpack.c.l.b16 %v851
    %v1371 = vunpack.c.l.b16 %v852
    %v1372 = vunpack.c.l.b16 %v853
    %v1373 = vunpack.c.l.b16 %v854
    %v1374 = vunpack.c.l.b16 %v855
    %v1375 = vunpack.c.l.b16 %v856
    %v1376 = vunpack.c.l.b16 %v857
    %v1377 = vunpack.c.l.b16 %v858
    %v1378 = vunpack.c.l.b16 %v859
    %v1379 = vunpack.c.l.b16 %v860
    %v1380 = vunpack.c.l.b16 %v861
    %v1381 = vunpack.c.l.b16 %v862
    %v1382 = vunpack.c.l.b16 %v863
    %v1383 = vunpack.c.l.b16 %v864
    %v1384 = vunpack.c.l.b16 %v865
    %v1385 = vunpack.c.l.b16 %v866
    %v1386 = vunpack.c.l.b16 %v867
    %v1387 = vunpack.c.l.b16 %v868
    %v1388 = vunpack.c.l.b16 %v869
    %v1389 = vunpack.c.l.b16 %v870
    %v1390 = vunpack.c.l.b16 %v871
    %v1391 = vunpack.c.l.b16 %v872
    %v1392 = vunpack.c.l.b16 %v873
    %v1393 = vunpack.c.l.b16 %v874
    %v1394 = vunpack.c.l.b16 %v875
    %v1395 = vunpack.c.l.b16 %v876
    %v1396 = vunpack.c.l.b16 %v877
    %v1397 = vunpack.c.l.b16 %v878
    %v1398 = vunpack.c.l.b16 %v879
    %v1399 = vunpack.c.l.b16 %v880
    %v1400 = vunpack.c.l.b16 %v881
    %v1401 = vunpack.c.l.b16 %v882
    %v1402 = vunpack.c.l.b16 %v883
    %v1403 = vunpack.c.l.b16 %v884
    %v1404 = vunpack.c.l.b16 %v885
    %v1405 = vunpack.c.l.b16 %v886
    %v1406 = vunpack.c.l.b16 %v887
    %v1407 = vunpack.c.l.b16 %v888
    %v1408 = vunpack.c.l.b16 %v889
    %v1409 = vunpack.c.l.b16 %v890
    %v1410 = vunpack.c.l.b16 %v891
    %v1411 = vunpack.c.l.b16 %v892
    %v1412 = vunpack.c.l.b16 %v893
    %v1413 = vunpack.c.l.b16 %v894
    %v1414 = vunpack.c.l.b16 %v895
    %v1415 = vunpack.c.l.b16 %v896
    %v1416 = vunpack.c.l.b16 %v897
    %v1417 = vunpack.c.l.b16 %v898
    %v1418 = vunpack.c.l.b16 %v899
    %v1419 = vunpack.c.l.b16 %v900
    %v1420 = vunpack.c.l.b16 %v901
    %v1421 = vunpack.c.l.b16 %v902
    %v1422 = vunpack.c.l.b16 %v903
    %v1423 = vunpack.c.l.b16 %v904
    %v1424 = vunpack.c.l.b16 %v905
    %v1425 = vunpack.c.l.b16 %v906
    %v1426 = vunpack.c.l.b16 %v907
    %v1427 = vunpack.c.l.b16 %v908
    %v1428 = vunpack.c.l.b16 %v909
    %v1429 = vunpack.c.l.b16 %v910
    %v1430 = vunpack.c.l.b16 %v911
    %v1431 = vunpack.c.l.b16 %v912
    %v1432 = vunpack.c.l.b16 %v913
    %v1433 = vunpack.c.l.b16 %v914
    %v1434 = vunpack.c.l.b16 %v915
    %v1435 = vunpack.c.l.b16 %v916
    %v1436 = vunpack.c.l.b16 %v917
    %v1437 = vunpack.c.l.b16 %v918
    %v1438 = vunpack.c.l.b16 %v919
    %v1439 = vunpack.c.l.b16 %v920
    %v1440 = vunpack.c.l.b16 %v921
    %v1441 = vunpack.c.l.b16 %v922
    %v1442 = vunpack.c.l.b16 %v923
    %v1443 = vunpack.c.l.b16 %v924
    %v1444 = vunpack.c.l.b16 %v925
    %v1445 = vunpack.c.l.b16 %v926
    %v1446 = vunpack.c.l.b16 %v927
    %v1447 = vunpack.c.l.b16 %v928
    %v1448 = vunpack.c.l.b16 %v929
    %v1449 = vunpack.c.l.b16 %v930
    %v1450 = vunpack.c.l.b16 %v931
    %v1451 = vunpack.c.l.b16 %v932
    %v1452 = vunpack.c.l.b16 %v933
    %v1453 = vunpack.c.l.b16 %v934
    %v1454 = vunpack.c.l.b16 %v935
    %v1455 = vunpack.c.l.b16 %v936
    %v1456 = vunpack.c.l.b16 %v937
    %v1457 = vunpack.c.l.b16 %v938
    %v1458 = vunpack.c.l.b16 %v939
    %v1459 = vunpack.c.l.b16 %v940
    %v1460 = vunpack.c.l.b16 %v941
    %v1461 = vunpack.c.l.b16 %v942
    %v1462 = vunpack.c.l.b16 %v943
    %v1463 = vunpack.c.l.b16 %v944
    %v1464 = vunpack.c.l.b16 %v945
    %v1465 = vunpack.c.l.b16 %v946
    %v1466 = vunpack.c.l.b16 %v947
    %v1467 = vunpack.c.l.b16 %v948
    %v1468 = vunpack.c.l.b16 %v949
    %v1469 = vunpack.c.l.b16 %v950
    %v1470 = vunpack.c.l.b16 %v951
    %v1471 = vunpack.c.l.b16 %v952
    %v1472 = vunpack.c.l.b16 %v953
    %v1473 = vunpack.c.l.b16 %v954
    %v1474 = vunpack.c.l.b16 %v955
    %v1475 = vunpack.c.l.b16 %v956
    %v1476 = vunpack.c.l.b16 %v957
    %v1477 = vunpack.c.l.b16 %v958
    %v1478 = vunpack.c.l.b16 %v959
    %v1479 = vunpack.c.l.b16 %v960
    %v1480 = vunpack.c.l.b16 %v961
    %v1481 = vunpack.c.l.b16 %v962
    %v1482 = vunpack.c.l.b16 %v963
    %v1483 = vunpack.c.l.b16 %v964
    %v1484 = vunpack.c.l.b16 %v965
    %v1485 = vunpack.c.l.b16 %v966
    %v1486 = vunpack.c.l.b16 %v967
    %v1487 = vunpack.c.l.b16 %v968
    %v1488 = vunpack.c.l.b16 %v969
    %v1489 = vunpack.c.l.b16 %v970
    %v1490 = vpack.c.b16 %v1235, %v1234
    %v1491 = vpack.c.b16 %v1237, %v1236
    %v1492 = vpack.c.b16 %v1239, %v1238
    %v1493 = vpack.c.b16 %v1241, %v1240
    %v1494 = vpack.c.b16 %v1243, %v1242
    %v1495 = vpack.c.b16 %v1245, %v1244
    %v1496 = vpack.c.b16 %v1247, %v1246
    %v1497 = vpack.c.b16 %v1249, %v1248
    %v1498 = vpack.c.b16 %v1251, %v1250
    %v1499 = vpack.c.b16 %v1253, %v1252
    %v1500 = vpack.c.b16 %v1255, %v1254
    %v1501 = vpack.c.b16 %v1257, %v1256
    %v1502 = vpack.c.b16 %v1259, %v1258
    %v1503 = vpack.c.b16 %v1261, %v1260
    %v1504 = vpack.c.b16 %v1263, %v1262
    %v1505 = vpack.c.b16 %v1265, %v1264
    %v1506 = vpack.c.b16 %v1267, %v1266
    %v1507 = vpack.c.b16 %v1269, %v1268
    %v1508 = vpack.c.b16 %v1271, %v1270
    %v1509 = vpack.c.b16 %v1273, %v1272
    %v1510 = vpack.c.b16 %v1275, %v1274
    %v1511 = vpack.c.b16 %v1277, %v1276
    %v1512 = vpack.c.b16 %v1279, %v1278
    %v1513 = vpack.c.b16 %v1281, %v1280
    %v1514 = vpack.c.b16 %v1283, %v1282
    %v1515 = vpack.c.b16 %v1285, %v1284
    %v1516 = vpack.c.b16 %v1287, %v1286
    %v1517 = vpack.c.b16 %v1289, %v1288
    %v1518 = vpack.c.b16 %v1291, %v1290
    %v1519 = vpack.c.b16 %v1293, %v1292
    %v1520 = vpack.c.b16 %v1295, %v1294
    %v1521 = vpack.c.b16 %v1297, %v1296
    %v1522 = vpack.c.b16 %v1299, %v1298
    %v1523 = vpack.c.b16 %v1301, %v1300
    %v1524 = vpack.c.b16 %v1303, %v1302
    %v1525 = vpack.c.b16 %v1305, %v1304
    %v1526 = vpack.c.b16 %v1307, %v1306
    %v1527 = vpack.c.b16 %v1309, %v1308
    %v1528 = vpack.c.b16 %v1311, %v1310
    %v1529 = vpack.c.b16 %v1313, %v1312
    %v1530 = vpack.c.b16 %v1315, %v1314
    %v1531 = vpack.c.b16 %v1317, %v1316
    %v1532 = vpack.c.b16 %v1319, %v1318
    %v1533 = vpack.c.b16 %v1321, %v1320
    %v1534 = vpack.c.b16 %v1323, %v1322
    %v1535 = vpack.c.b16 %v1325, %v1324
    %v1536 = vpack.c.b16 %v1327, %v1326
    %v1537 = vpack.c.b16 %v1329, %v1328
    %v1538 = vpack.c.b16 %v1331, %v1330
    %v1539 = vpack.c.b16 %v1333, %v1332
    %v1540 = vpack.c.b16 %v1335, %v1334
    %v1541 = vpack.c.b16 %v1337, %v1336
    %v1542 = vpack.c.b16 %v1339, %v1338
    %v1543 = vpack.c.b16 %v1341, %v1340
    %v1544 = vpack.c.b16 %v1343, %v1342
    %v1545 = vpack.c.b16 %v1345, %v1344
    %v1546 = vpack.c.b16 %v1347, %v1346
    %v1547 = vpack.c.b16 %v1349, %v1348
    %v1548 = vpack.c.b16 %v1351, %v1350
    %v1549 = vpack.c.b16 %v1353, %v1352
    %v1550 = vpack.c.b16 %v1355, %v1354
    %v1551 = vpack.c.b16 %v1357, %v1356
    %v1552 = vpack.c.b16 %v1359, %v1358
    %v1553 = vpack.c.b16 %v1361, %v1360
    %v1554 = vpack.c.b16 %v1363, %v1362
    %v1555 = vpack.c.b16 %v1365, %v1364
    %v1556 = vpack.c.b16 %v1367, %v1366
    %v1557 = vpack.c.b16 %v1369, %v1368
    %v1558 = vpack.c.b16 %v1371, %v1370
    %v1559 = vpack.c.b16 %v1373, %v1372
    %v1560 = vpack.c.b16 %v1375, %v1374
    %v1561 = vpack.c.b16 %v1377, %v1376
    %v1562 = vpack.c.b16 %v1379, %v1378
    %v1563 = vpack.c.b16 %v1381, %v1380
    %v1564 = vpack.c.b16 %v1383, %v1382
    %v1565 = vpack.c.b16 %v1385, %v1384
    %v1566 = vpack.c.b16 %v1387, %v1386
    %v1567 = vpack.c.b16 %v1389, %v1388
    %v1568 = vpack.c.b16 %v1391, %v1390
    %v1569 = vpack.c.b16 %v1393, %v1392
    %v1570 = vpack.c.b16 %v1395, %v1394
    %v1571 = vpack.c.b16 %v1397, %v1396
    %v1572 = vpack.c.b16 %v1399, %v1398
    %v1573 = vpack.c.b16 %v1401, %v1400
    %v1574 = vpack.c.b16 %v1403, %v1402
    %v1575 = vpack.c.b16 %v1405, %v1404
    %v1576 = vpack.c.b16 %v1407, %v1406
    %v1577 = vpack.c.b16 %v1409, %v1408
    %v1578 = vpack.c.b16 %v1411, %v1410
    %v1579 = vpack.c.b16 %v1413, %v1412
    %v1580 = vpack.c.b16 %v1415, %v1414
    %v1581 = vpack.c.b16 %v1417, %v1416
    %v1582 = vpack.c.b16 %v1419, %v1418
    %v1583 = vpack.c.b16 %v1421, %v1420
    %v1584 = vpack.c.b16 %v1423, %v1422
    %v1585 = vpack.c.b16 %v1425, %v1424
    %v1586 = vpack.c.b16 %v1427, %v1426
    %v1587 = vpack.c.b16 %v1429, %v1428
    %v1588 = vpack.c.b16 %v1431, %v1430
    %v1589 = vpack.c.b16 %v1433, %v1432
    %v1590 = vpack.c.b16 %v1435, %v1434
    %v1591 = vpack.c.b16 %v1437, %v1436
    %v1592 = vpack.c.b16 %v1439, %v1438
    %v1593 = vpack.c.b16 %v1441, %v1440
    %v1594 = vpack.c.b16 %v1443, %v1442
    %v1595 = vpack.c.b16 %v1445, %v1444
    %v1596 = vpack.c.b16 %v1447, %v1446
    %v1597 = vpack.c.b16 %v1449, %v1448
    %v1598 = vpack.c.b16 %v1451, %v1450
    %v1599 = vpack.c.b16 %v1453, %v1452
    %v1600 = vpack.c.b16 %v1455, %v1454
    %v1601 = vpack.c.b16 %v1457, %v1456
    %v1602 = vpack.c.b16 %v1459, %v1458
    %v1603 = vpack.c.b16 %v1461, %v1460
    %v1604 = vpack.c.b16 %v1463, %v1462
    %v1605 = vpack.c.b16 %v1465, %v1464
    %v1606 = vpack.c.b16 %v1467, %v1466
    %v1607 = vpack.c.b16 %v1469, %v1468
    %v1608 = vpack.c.b16 %v1471, %v1470
    %v1609 = vpack.c.b16 %v1473, %v1472
    %v1610 = vpack.c.b16 %v1475, %v1474
    %v1611 = vpack.c.b16 %v1477, %v1476
    %v1612 = vpack.c.b16 %v1479, %v1478
    %v1613 = vpack.c.b16 %v1481, %v1480
    %v1614 = vpack.c.b16 %v1483, %v1482
    %v1615 = vpack.c.b16 %v1485, %v1484
    %v1616 = vpack.c.b16 %v1487, %v1486
    %v1617 = vpack.c.b16 %v1489, %v1488
    %1746 = vmatprep.subr.bf16.mxu0 0
    %1747 = vmatpush1.bf16.msra.mxu0 %v1490
    %1748 = vmatprep.subr.bf16.mxu0 0
    %1749 = vmatpush1.bf16.msra.mxu0 %v1491
    %1750 = vmatprep.subr.bf16.mxu0 0
    %1751 = vmatpush1.bf16.msra.mxu0 %v1492
    %1752 = vmatprep.subr.bf16.mxu0 0
    %1753 = vmatpush1.bf16.msra.mxu0 %v1493
    %1754 = vmatprep.subr.bf16.mxu0 0
    %1755 = vmatpush1.bf16.msra.mxu0 %v1494
    %1756 = vmatprep.subr.bf16.mxu0 0
    %1757 = vmatpush1.bf16.msra.mxu0 %v1495
    %1758 = vmatprep.subr.bf16.mxu0 0
    %1759 = vmatpush1.bf16.msra.mxu0 %v1496
    %1760 = vmatprep.subr.bf16.mxu0 0
    %1761 = vmatpush1.bf16.msra.mxu0 %v1497
    %1762 = vmatprep.subr.bf16.mxu0 0
    %1763 = vmatpush1.bf16.msra.mxu0 %v1498
    %1764 = vmatprep.subr.bf16.mxu0 0
    %1765 = vmatpush1.bf16.msra.mxu0 %v1499
    %1766 = vmatprep.subr.bf16.mxu0 0
    %1767 = vmatpush1.bf16.msra.mxu0 %v1500
    %1768 = vmatprep.subr.bf16.mxu0 0
    %1769 = vmatpush1.bf16.msra.mxu0 %v1501
    %1770 = vmatprep.subr.bf16.mxu0 0
    %1771 = vmatpush1.bf16.msra.mxu0 %v1502
    %1772 = vmatprep.subr.bf16.mxu0 0
    %1773 = vmatpush1.bf16.msra.mxu0 %v1503
    %1774 = vmatprep.subr.bf16.mxu0 0
    %1775 = vmatpush1.bf16.msra.mxu0 %v1504
    %1776 = vmatprep.subr.bf16.mxu0 0
    %1777 = vmatpush1.bf16.msra.mxu0 %v1505
    %1778 = vmatprep.mubr.bf16.mxu0 %v700
    %1779 = vmatmul.mubr.bf16.gmra.mrb[0].mxu0 %v699
    %v1780 = vpop.f32.mrb[0].mxu0
    %v1781 = vadd.f32 %v976, %v1780
    %v1782 = vpop.f32.mrb[0].mxu0
    %v1783 = vpop.f32.mrb[0].mxu0
    %v1784 = vpop.f32.mrb[0].mxu0
    %1785 = vdwg.mxu0
    %1786 = vmatprep.subr.bf16.mxu0 0
    %1787 = vmatpush1.bf16.msra.mxu0 %v1506
    %1788 = vmatprep.subr.bf16.mxu0 0
    %1789 = vmatpush1.bf16.msra.mxu0 %v1507
    %1790 = vmatprep.subr.bf16.mxu0 0
    %1791 = vmatpush1.bf16.msra.mxu0 %v1508
    %1792 = vmatprep.subr.bf16.mxu0 0
    %1793 = vmatpush1.bf16.msra.mxu0 %v1509
    %1794 = vmatprep.subr.bf16.mxu0 0
    %1795 = vmatpush1.bf16.msra.mxu0 %v1510
    %1796 = vmatprep.subr.bf16.mxu0 0
    %1797 = vmatpush1.bf16.msra.mxu0 %v1511
    %1798 = vmatprep.subr.bf16.mxu0 0
    %1799 = vmatpush1.bf16.msra.mxu0 %v1512
    %1800 = vmatprep.subr.bf16.mxu0 0
    %1801 = vmatpush1.bf16.msra.mxu0 %v1513
    %1802 = vmatprep.subr.bf16.mxu0 0
    %1803 = vmatpush1.bf16.msra.mxu0 %v1514
    %1804 = vmatprep.subr.bf16.mxu0 0
    %1805 = vmatpush1.bf16.msra.mxu0 %v1515
    %1806 = vmatprep.subr.bf16.mxu0 0
    %1807 = vmatpush1.bf16.msra.mxu0 %v1516
    %1808 = vmatprep.subr.bf16.mxu0 0
    %1809 = vmatpush1.bf16.msra.mxu0 %v1517
    %1810 = vmatprep.subr.bf16.mxu0 0
    %1811 = vmatpush1.bf16.msra.mxu0 %v1518
    %1812 = vmatprep.subr.bf16.mxu0 0
    %1813 = vmatpush1.bf16.msra.mxu0 %v1519
    %1814 = vmatprep.subr.bf16.mxu0 0
    %1815 = vmatpush1.bf16.msra.mxu0 %v1520
    %1816 = vmatprep.subr.bf16.mxu0 0
    %1817 = vmatpush1.bf16.msra.mxu0 %v1521
    %1818 = vmatprep.mubr.bf16.mxu0 %v702
    %1819 = vmatmul.mubr.bf16.gmra.mrb[0].mxu0 %v701
    %v1820 = vpop.f32.mrb[0].mxu0
    %v1821 = vadd.f32 %v1781, %v1820
    %v1822 = vpop.f32.mrb[0].mxu0
    %v1823 = vpop.f32.mrb[0].mxu0
    %v1824 = vpop.f32.mrb[0].mxu0
    %1825 = vdwg.mxu0
    %1826 = vmatprep.subr.bf16.mxu0 0
    %1827 = vmatpush1.bf16.msra.mxu0 %v1522
    %1828 = vmatprep.subr.bf16.mxu0 0
    %1829 = vmatpush1.bf16.msra.mxu0 %v1523
    %1830 = vmatprep.subr.bf16.mxu0 0
    %1831 = vmatpush1.bf16.msra.mxu0 %v1524
    %1832 = vmatprep.subr.bf16.mxu0 0
    %1833 = vmatpush1.bf16.msra.mxu0 %v1525
    %1834 = vmatprep.subr.bf16.mxu0 0
    %1835 = vmatpush1.bf16.msra.mxu0 %v1526
    %1836 = vmatprep.subr.bf16.mxu0 0
    %1837 = vmatpush1.bf16.msra.mxu0 %v1527
    %1838 = vmatprep.subr.bf16.mxu0 0
    %1839 = vmatpush1.bf16.msra.mxu0 %v1528
    %1840 = vmatprep.subr.bf16.mxu0 0
    %1841 = vmatpush1.bf16.msra.mxu0 %v1529
    %1842 = vmatprep.subr.bf16.mxu0 0
    %1843 = vmatpush1.bf16.msra.mxu0 %v1530
    %1844 = vmatprep.subr.bf16.mxu0 0
    %1845 = vmatpush1.bf16.msra.mxu0 %v1531
    %1846 = vmatprep.subr.bf16.mxu0 0
    %1847 = vmatpush1.bf16.msra.mxu0 %v1532
    %1848 = vmatprep.subr.bf16.mxu0 0
    %1849 = vmatpush1.bf16.msra.mxu0 %v1533
    %1850 = vmatprep.subr.bf16.mxu0 0
    %1851 = vmatpush1.bf16.msra.mxu0 %v1534
    %1852 = vmatprep.subr.bf16.mxu0 0
    %1853 = vmatpush1.bf16.msra.mxu0 %v1535
    %1854 = vmatprep.subr.bf16.mxu0 0
    %1855 = vmatpush1.bf16.msra.mxu0 %v1536
    %1856 = vmatprep.subr.bf16.mxu0 0
    %1857 = vmatpush1.bf16.msra.mxu0 %v1537
    %1858 = vmatprep.mubr.bf16.mxu0 %v704
    %1859 = vmatmul.mubr.bf16.gmra.mrb[0].mxu0 %v703
    %v1860 = vpop.f32.mrb[0].mxu0
    %v1861 = vadd.f32 %v1821, %v1860
    %v1862 = vpop.f32.mrb[0].mxu0
    %v1863 = vpop.f32.mrb[0].mxu0
    %v1864 = vpop.f32.mrb[0].mxu0
    %1865 = vdwg.mxu0
    %1866 = vmatprep.subr.bf16.mxu0 0
    %1867 = vmatpush1.bf16.msra.mxu0 %v1538
    %1868 = vmatprep.subr.bf16.mxu0 0
    %1869 = vmatpush1.bf16.msra.mxu0 %v1539
    %1870 = vmatprep.subr.bf16.mxu0 0
    %1871 = vmatpush1.bf16.msra.mxu0 %v1540
    %1872 = vmatprep.subr.bf16.mxu0 0
    %1873 = vmatpush1.bf16.msra.mxu0 %v1541
    %1874 = vmatprep.subr.bf16.mxu0 0
    %1875 = vmatpush1.bf16.msra.mxu0 %v1542
    %1876 = vmatprep.subr.bf16.mxu0 0
    %1877 = vmatpush1.bf16.msra.mxu0 %v1543
    %1878 = vmatprep.subr.bf16.mxu0 0
    %1879 = vmatpush1.bf16.msra.mxu0 %v1544
    %1880 = vmatprep.subr.bf16.mxu0 0
    %1881 = vmatpush1.bf16.msra.mxu0 %v1545
    %1882 = vmatprep.subr.bf16.mxu0 0
    %1883 = vmatpush1.bf16.msra.mxu0 %v1546
    %1884 = vmatprep.subr.bf16.mxu0 0
    %1885 = vmatpush1.bf16.msra.mxu0 %v1547
    %1886 = vmatprep.subr.bf16.mxu0 0
    %1887 = vmatpush1.bf16.msra.mxu0 %v1548
    %1888 = vmatprep.subr.bf16.mxu0 0
    %1889 = vmatpush1.bf16.msra.mxu0 %v1549
    %1890 = vmatprep.subr.bf16.mxu0 0
    %1891 = vmatpush1.bf16.msra.mxu0 %v1550
    %1892 = vmatprep.subr.bf16.mxu0 0
    %1893 = vmatpush1.bf16.msra.mxu0 %v1551
    %1894 = vmatprep.subr.bf16.mxu0 0
    %1895 = vmatpush1.bf16.msra.mxu0 %v1552
    %1896 = vmatprep.subr.bf16.mxu0 0
    %1897 = vmatpush1.bf16.msra.mxu0 %v1553
    %1898 = vmatprep.mubr.bf16.mxu0 %v706
    %1899 = vmatmul.mubr.bf16.gmra.mrb[0].mxu0 %v705
    %v1900 = vpop.f32.mrb[0].mxu0
    %v1901 = vadd.f32 %v1861, %v1900
    %v1902 = vpop.f32.mrb[0].mxu0
    %v1903 = vpop.f32.mrb[0].mxu0
    %v1904 = vpop.f32.mrb[0].mxu0
    %1905 = vdwg.mxu0
    %1906 = vmatprep.subr.bf16.mxu0 0
    %1907 = vmatpush1.bf16.msra.mxu0 %v1554
    %1908 = vmatprep.subr.bf16.mxu0 0
    %1909 = vmatpush1.bf16.msra.mxu0 %v1555
    %1910 = vmatprep.subr.bf16.mxu0 0
    %1911 = vmatpush1.bf16.msra.mxu0 %v1556
    %1912 = vmatprep.subr.bf16.mxu0 0
    %1913 = vmatpush1.bf16.msra.mxu0 %v1557
    %1914 = vmatprep.subr.bf16.mxu0 0
    %1915 = vmatpush1.bf16.msra.mxu0 %v1558
    %1916 = vmatprep.subr.bf16.mxu0 0
    %1917 = vmatpush1.bf16.msra.mxu0 %v1559
    %1918 = vmatprep.subr.bf16.mxu0 0
    %1919 = vmatpush1.bf16.msra.mxu0 %v1560
    %1920 = vmatprep.subr.bf16.mxu0 0
    %1921 = vmatpush1.bf16.msra.mxu0 %v1561
    %1922 = vmatprep.subr.bf16.mxu0 0
    %1923 = vmatpush1.bf16.msra.mxu0 %v1562
    %1924 = vmatprep.subr.bf16.mxu0 0
    %1925 = vmatpush1.bf16.msra.mxu0 %v1563
    %1926 = vmatprep.subr.bf16.mxu0 0
    %1927 = vmatpush1.bf16.msra.mxu0 %v1564
    %1928 = vmatprep.subr.bf16.mxu0 0
    %1929 = vmatpush1.bf16.msra.mxu0 %v1565
    %1930 = vmatprep.subr.bf16.mxu0 0
    %1931 = vmatpush1.bf16.msra.mxu0 %v1566
    %1932 = vmatprep.subr.bf16.mxu0 0
    %1933 = vmatpush1.bf16.msra.mxu0 %v1567
    %1934 = vmatprep.subr.bf16.mxu0 0
    %1935 = vmatpush1.bf16.msra.mxu0 %v1568
    %1936 = vmatprep.subr.bf16.mxu0 0
    %1937 = vmatpush1.bf16.msra.mxu0 %v1569
    %1938 = vmatprep.mubr.bf16.mxu0 %v708
    %1939 = vmatmul.mubr.bf16.gmra.mrb[0].mxu0 %v707
    %v1940 = vpop.f32.mrb[0].mxu0
    %v1941 = vadd.f32 %v1901, %v1940
    %v1942 = vpop.f32.mrb[0].mxu0
    %v1943 = vpop.f32.mrb[0].mxu0
    %v1944 = vpop.f32.mrb[0].mxu0
    %1945 = vdwg.mxu0
    %1946 = vmatprep.subr.bf16.mxu0 0
    %1947 = vmatpush1.bf16.msra.mxu0 %v1570
    %1948 = vmatprep.subr.bf16.mxu0 0
    %1949 = vmatpush1.bf16.msra.mxu0 %v1571
    %1950 = vmatprep.subr.bf16.mxu0 0
    %1951 = vmatpush1.bf16.msra.mxu0 %v1572
    %1952 = vmatprep.subr.bf16.mxu0 0
    %1953 = vmatpush1.bf16.msra.mxu0 %v1573
    %1954 = vmatprep.subr.bf16.mxu0 0
    %1955 = vmatpush1.bf16.msra.mxu0 %v1574
    %1956 = vmatprep.subr.bf16.mxu0 0
    %1957 = vmatpush1.bf16.msra.mxu0 %v1575
    %1958 = vmatprep.subr.bf16.mxu0 0
    %1959 = vmatpush1.bf16.msra.mxu0 %v1576
    %1960 = vmatprep.subr.bf16.mxu0 0
    %1961 = vmatpush1.bf16.msra.mxu0 %v1577
    %1962 = vmatprep.subr.bf16.mxu0 0
    %1963 = vmatpush1.bf16.msra.mxu0 %v1578
    %1964 = vmatprep.subr.bf16.mxu0 0
    %1965 = vmatpush1.bf16.msra.mxu0 %v1579
    %1966 = vmatprep.subr.bf16.mxu0 0
    %1967 = vmatpush1.bf16.msra.mxu0 %v1580
    %1968 = vmatprep.subr.bf16.mxu0 0
    %1969 = vmatpush1.bf16.msra.mxu0 %v1581
    %1970 = vmatprep.subr.bf16.mxu0 0
    %1971 = vmatpush1.bf16.msra.mxu0 %v1582
    %1972 = vmatprep.subr.bf16.mxu0 0
    %1973 = vmatpush1.bf16.msra.mxu0 %v1583
    %1974 = vmatprep.subr.bf16.mxu0 0
    %1975 = vmatpush1.bf16.msra.mxu0 %v1584
    %1976 = vmatprep.subr.bf16.mxu0 0
    %1977 = vmatpush1.bf16.msra.mxu0 %v1585
    %1978 = vmatprep.mubr.bf16.mxu0 %v710
    %1979 = vmatmul.mubr.bf16.gmra.mrb[0].mxu0 %v709
    %v1980 = vpop.f32.mrb[0].mxu0
    %v1981 = vadd.f32 %v1941, %v1980
    %v1982 = vpop.f32.mrb[0].mxu0
    %v1983 = vpop.f32.mrb[0].mxu0
    %v1984 = vpop.f32.mrb[0].mxu0
    %1985 = vdwg.mxu0
    %1986 = vmatprep.subr.bf16.mxu0 0
    %1987 = vmatpush1.bf16.msra.mxu0 %v1586
    %1988 = vmatprep.subr.bf16.mxu0 0
    %1989 = vmatpush1.bf16.msra.mxu0 %v1587
    %1990 = vmatprep.subr.bf16.mxu0 0
    %1991 = vmatpush1.bf16.msra.mxu0 %v1588
    %1992 = vmatprep.subr.bf16.mxu0 0
    %1993 = vmatpush1.bf16.msra.mxu0 %v1589
    %1994 = vmatprep.subr.bf16.mxu0 0
    %1995 = vmatpush1.bf16.msra.mxu0 %v1590
    %1996 = vmatprep.subr.bf16.mxu0 0
    %1997 = vmatpush1.bf16.msra.mxu0 %v1591
    %1998 = vmatprep.subr.bf16.mxu0 0
    %1999 = vmatpush1.bf16.msra.mxu0 %v1592
    %2000 = vmatprep.subr.bf16.mxu0 0
    %2001 = vmatpush1.bf16.msra.mxu0 %v1593
    %2002 = vmatprep.subr.bf16.mxu0 0
    %2003 = vmatpush1.bf16.msra.mxu0 %v1594
    %2004 = vmatprep.subr.bf16.mxu0 0
    %2005 = vmatpush1.bf16.msra.mxu0 %v1595
    %2006 = vmatprep.subr.bf16.mxu0 0
    %2007 = vmatpush1.bf16.msra.mxu0 %v1596
    %2008 = vmatprep.subr.bf16.mxu0 0
    %2009 = vmatpush1.bf16.msra.mxu0 %v1597
    %2010 = vmatprep.subr.bf16.mxu0 0
    %2011 = vmatpush1.bf16.msra.mxu0 %v1598
    %2012 = vmatprep.subr.bf16.mxu0 0
    %2013 = vmatpush1.bf16.msra.mxu0 %v1599
    %2014 = vmatprep.subr.bf16.mxu0 0
    %2015 = vmatpush1.bf16.msra.mxu0 %v1600
    %2016 = vmatprep.subr.bf16.mxu0 0
    %2017 = vmatpush1.bf16.msra.mxu0 %v1601
    %2018 = vmatprep.mubr.bf16.mxu0 %v712
    %2019 = vmatmul.mubr.bf16.gmra.mrb[0].mxu0 %v711
    %v2020 = vpop.f32.mrb[0].mxu0
    %v2021 = vadd.f32 %v1981, %v2020
    %v2022 = vpop.f32.mrb[0].mxu0
    %v2023 = vpop.f32.mrb[0].mxu0
    %v2024 = vpop.f32.mrb[0].mxu0
    %2025 = vdwg.mxu0
    %2026 = vmatprep.subr.bf16.mxu0 0
    %2027 = vmatpush1.bf16.msra.mxu0 %v1602
    %2028 = vmatprep.subr.bf16.mxu0 0
    %2029 = vmatpush1.bf16.msra.mxu0 %v1603
    %2030 = vmatprep.subr.bf16.mxu0 0
    %2031 = vmatpush1.bf16.msra.mxu0 %v1604
    %2032 = vmatprep.subr.bf16.mxu0 0
    %2033 = vmatpush1.bf16.msra.mxu0 %v1605
    %2034 = vmatprep.subr.bf16.mxu0 0
    %2035 = vmatpush1.bf16.msra.mxu0 %v1606
    %2036 = vmatprep.subr.bf16.mxu0 0
    %2037 = vmatpush1.bf16.msra.mxu0 %v1607
    %2038 = vmatprep.subr.bf16.mxu0 0
    %2039 = vmatpush1.bf16.msra.mxu0 %v1608
    %2040 = vmatprep.subr.bf16.mxu0 0
    %2041 = vmatpush1.bf16.msra.mxu0 %v1609
    %2042 = vmatprep.subr.bf16.mxu0 0
    %2043 = vmatpush1.bf16.msra.mxu0 %v1610
    %2044 = vmatprep.subr.bf16.mxu0 0
    %2045 = vmatpush1.bf16.msra.mxu0 %v1611
    %2046 = vmatprep.subr.bf16.mxu0 0
    %2047 = vmatpush1.bf16.msra.mxu0 %v1612
    %2048 = vmatprep.subr.bf16.mxu0 0
    %2049 = vmatpush1.bf16.msra.mxu0 %v1613
    %2050 = vmatprep.subr.bf16.mxu0 0
    %2051 = vmatpush1.bf16.msra.mxu0 %v1614
    %2052 = vmatprep.subr.bf16.mxu0 0
    %2053 = vmatpush1.bf16.msra.mxu0 %v1615
    %2054 = vmatprep.subr.bf16.mxu0 0
    %2055 = vmatpush1.bf16.msra.mxu0 %v1616
    %2056 = vmatprep.subr.bf16.mxu0 0
    %2057 = vmatpush1.bf16.msra.mxu0 %v1617
    %2058 = vmatprep.mubr.bf16.mxu0 %v714
    %2059 = vmatmul.mubr.bf16.gmra.mrb[0].mxu0 %v713
    %v2060 = vpop.f32.mrb[0].mxu0
    %v2061 = vadd.f32 %v2021, %v2060
    %v2062 = vpop.f32.mrb[0].mxu0
    %v2063 = vpop.f32.mrb[0].mxu0
    %v2064 = vpop.f32.mrb[0].mxu0
    %2065 = vdwg.mxu0
    %vm2066 = vcmask 1041408
    %v2067 = vsel %vm2066, %v2061, -inf
    %2068 = vmax.xlane.f32.xlu0 %v2067
    %v2069 = vpop.xlane.xlu0 %2068
    %v2070 = vsub.f32 %v2061, %v2069
    %v2071 = vmul.f32 %v2070, 1.442695
    %v2072 = vpow.pop %v2071
    %v2073 = vsel %vm2066, %v2072, 0.0
    %2074 = vadd.xlane.f32.xlu0 %v2073
    %v2075 = vpop.xlane.xlu0 %2074
    %v2076 = vlog2.pop %v2075
    %v2077 = vmul.f32 %v2076, 0.6931472
    %v2078 = vadd.f32 %v2077, %v2069
    %v2079 = vsub.f32 %v2061, %v2078
    %vm2080 = vcmask 140288
    %2081 = vst.msk [vmem:[#allocation10] sm:$0x3] %vm2080, %v2079
    // Predicated region
    $region38: #{tpu_custom_call.1} parent=1 // pred_check
      _
    $region39: #{tpu_custom_call.1} parent=1 // pred_check_branch
      %2083 = sbr.rel (0) target = $region41
    $region40: #{tpu_custom_call.1} parent=1 // pred_region
      %s2085 = ssub.s32 32, 32
      %2086 = vsyncadd [#allocation4], %s2085
      %s2088 = sshll.u32 [#allocation10], 4
      %s2089 = int_to_ptr.vmem [resolvable:$true] %s2088
      %2091 = dma.vmem_to_hbm [thread:$0]  %s2089, 32, %s5, [#allocation4]
    $region41: #{tpu_custom_call.1} parent=1 // pred_fallthru
      _
    // Predicated region
    $region42: #{tpu_custom_call.1} parent=1 // pred_check
      _
    $region43: #{tpu_custom_call.1} parent=1 // pred_check_branch
      %2093 = sbr.rel (0) target = $region45
    $region44: #{tpu_custom_call.1} parent=1 // pred_region
      %2094 = dma.done [#allocation4], 32
    $region45: #{tpu_custom_call.1} parent=1 // pred_fallthru
      _
    %2095 = vsyncpa [#allocation3], 1
    %2096 = vsyncpa [#allocation6], 1
    %2097 = vsyncpa [#allocation9], 1
    %2098 = vsyncpa [#allocation4], 1

</llo_original>
